<compile_context>
chip_gen: v5e
topology: v5e:2x2
jax: 0.10.0
libtpu: 0.0.40
codegen_flags: <defaults>
</compile_context>

<pallas_src>
import functools

import jax
import jax.numpy as jnp
from jax.experimental import pallas as pl
from jax.experimental.pallas import tpu as pltpu


def _ceil_to(x, m):
    return ((x + m - 1) // m) * m


def _pick_tile_m(m_total, target):
    """Largest power-of-two row tile <= target that divides m_total (>= 8).

    Falls back to the full M when no such divisor exists (legal: the block's
    second-to-last dim then equals the full array dim)."""
    best = None
    t = 8
    lim = min(m_total, target)
    while t <= lim:
        if m_total % t == 0:
            best = t
        t *= 2
    return m_total if best is None else best


# ----------------------------------------------------------------------------
# Pallas kernels
# ----------------------------------------------------------------------------
def _conv_kernel(x_ref, w_ref, b_ref, o_ref):
    """Plain conv-as-GEMM (conv1: no BN stats, no fused pre-activation)."""
    acc = jnp.dot(x_ref[...], w_ref[...], preferred_element_type=jnp.float32)
    acc = acc + b_ref[...]
    o_ref[...] = acc.astype(o_ref.dtype)          # lane-dense bf16 store


def _conv_bn_kernel(x_ref, ps_ref, pb_ref, w_ref, b_ref, o_ref, st_ref):
    """Fused (prev-layer BN affine + LeakyReLU) -> GEMM -> bias -> BN stats."""
    # previous layer's BN affine + LeakyReLU(0.2), computed in f32
    x = x_ref[...].astype(jnp.float32) * ps_ref[...] + pb_ref[...]
    x = jnp.where(x > 0, x, 0.2 * x)
    acc = jnp.dot(x.astype(jnp.bfloat16), w_ref[...],
                  preferred_element_type=jnp.float32)
    acc = acc + b_ref[...]
    # per-tile channel statistics for this layer's BatchNorm (acc is resident,
    # so this avoids an extra HBM pass); full-sublane (8, Cp) slab.
    s = jnp.sum(acc, axis=0, keepdims=True)
    sq = jnp.sum(acc * acc, axis=0, keepdims=True)
    st_ref[...] = jnp.concatenate(
        [s, sq, jnp.zeros((6, acc.shape[1]), jnp.float32)], axis=0)
    o_ref[...] = acc.astype(o_ref.dtype)


# ----------------------------------------------------------------------------
# One conv layer = one pallas_call over row tiles of (M_total, K) patches
# ----------------------------------------------------------------------------
def conv_layer(patches, w_mat, bias, pre_scale=None, pre_bias=None, *,
               tile_m=512):
    """patches: (M_total, K) bf16 packed taps (raw, pre-activation values).
    w_mat: (K, Cout) f32.  bias: (Cout,) f32.
    pre_scale/pre_bias: per-K f32 affine (previous layer's folded BN) applied
      with LeakyReLU before the GEMM; None -> plain path (conv1).
    Returns (out, stats): out (M_total, Cp) bf16 raw pre-activations,
      stats (grid_m, 8, Cp) f32 per-tile [sum; sum^2] rows (None if plain)."""
    m_total, k = patches.shape
    cout = w_mat.shape[1]
    cp = _ceil_to(cout, 128)                    # lane-dense output
    tm = _pick_tile_m(m_total, tile_m)
    grid_m = m_total // tm

    w_p = jnp.zeros((k, cp), jnp.bfloat16).at[:, :cout].set(
        w_mat.astype(jnp.bfloat16))
    b_p = jnp.zeros((1, cp), jnp.float32).at[0, :cout].set(
        bias.astype(jnp.float32))

    cparams = pltpu.CompilerParams(
        dimension_semantics=("parallel",),
        vmem_limit_bytes=32 * 1024 * 1024)

    if pre_scale is None:
        out = pl.pallas_call(
            _conv_kernel,
            out_shape=jax.ShapeDtypeStruct((m_total, cp), jnp.bfloat16),
            grid=(grid_m,),
            in_specs=[pl.BlockSpec((tm, k), lambda i: (i, 0)),
                      pl.BlockSpec((k, cp), lambda i: (0, 0)),
                      pl.BlockSpec((1, cp), lambda i: (0, 0))],
            out_specs=pl.BlockSpec((tm, cp), lambda i: (i, 0)),
            compiler_params=cparams,
        )(patches, w_p, b_p)
        return out, None

    ps_p = pre_scale.reshape(1, k).astype(jnp.float32)
    pb_p = pre_bias.reshape(1, k).astype(jnp.float32)
    out, stats = pl.pallas_call(
        _conv_bn_kernel,
        out_shape=(jax.ShapeDtypeStruct((m_total, cp), jnp.bfloat16),
                   jax.ShapeDtypeStruct((grid_m, 8, cp), jnp.float32)),
        grid=(grid_m,),
        in_specs=[pl.BlockSpec((tm, k), lambda i: (i, 0)),
                  pl.BlockSpec((1, k), lambda i: (0, 0)),
                  pl.BlockSpec((1, k), lambda i: (0, 0)),
                  pl.BlockSpec((k, cp), lambda i: (0, 0)),
                  pl.BlockSpec((1, cp), lambda i: (0, 0))],
        out_specs=(pl.BlockSpec((tm, cp), lambda i: (i, 0)),
                   pl.BlockSpec((None, 8, cp), lambda i: (i, 0, 0))),
        compiler_params=cparams,
    )(patches, ps_p, pb_p, w_p, b_p)
    return out, stats


# ----------------------------------------------------------------------------
# JAX glue: layout only (space-to-depth tap packing, weight reorder, BN fold)
# ----------------------------------------------------------------------------
def _pack_patches_s2(x, pad_val):
    """Patches for Conv2d(k=4, s=2, p=1): (N,H,W,C) -> (N*(H/2)*(W/2), 16*C) bf16.

    The spatial border is filled with per-channel `pad_val` (the raw value the
    next kernel's affine+LeakyReLU maps to exactly 0)."""
    n, h, w, c = x.shape
    xp = jnp.broadcast_to(pad_val.astype(x.dtype).reshape(1, 1, 1, c),
                          (n, h + 2, w + 2, c))
    xp = xp.at[:, 1:-1, 1:-1, :].set(x)
    hs, ws = (h + 2) // 2, (w + 2) // 2
    xs = xp.reshape(n, hs, 2, ws, 2, c)
    xs = jnp.transpose(xs, (0, 1, 3, 2, 4, 5)).reshape(n, hs, ws, 4 * c)
    ho, wo = h // 2, w // 2
    pat = jnp.concatenate([xs[:, 0:ho,     0:wo,     :],
                           xs[:, 0:ho,     1:wo + 1, :],
                           xs[:, 1:ho + 1, 0:wo,     :],
                           xs[:, 1:ho + 1, 1:wo + 1, :]], axis=-1)
    return pat.reshape(n * ho * wo, 16 * c).astype(jnp.bfloat16)


def _repack(y, n, h, c, scale, bias):
    """Previous layer's raw output (N*h*h, Cp) -> packed patches for the next
    conv, with the spatial border set to the BN-affine-neutral value."""
    y = y.reshape(n, h, h, -1)[:, :, :, :c]        # drop lane padding
    safe = jnp.where(scale == 0.0, 1.0, scale)
    pad = jnp.where(scale == 0.0, 0.0, -bias / safe)
    return _pack_patches_s2(y, pad)


def _w_to_mat_s2(w_pt):
    """PyTorch (Cout, Cin, 4, 4) -> (16*Cin, Cout) matching _pack_patches_s2."""
    cout, cin, _, _ = w_pt.shape
    wr = jnp.transpose(w_pt, (2, 3, 1, 0))             # (ki, kj, ci, co)
    wr = wr.reshape(2, 2, 2, 2, cin, cout)             # (bi, di, bj, dj, ci, co)
    wr = jnp.transpose(wr, (0, 2, 1, 3, 4, 5))         # (bi, bj, di, dj, ci, co)
    return wr.reshape(16 * cin, cout)


def _w_to_mat_s1(w_pt):
    """PyTorch (Cout, Cin, 4, 4) -> (16*Cin, Cout) for the flattened 4x4 dot."""
    cout, cin, _, _ = w_pt.shape
    return jnp.transpose(w_pt, (2, 3, 1, 0)).reshape(16 * cin, cout)


def _bn_fold(stats, cout, count, gamma, beta, eps=1e-5):
    """Training-mode BN (biased variance) folded to per-channel scale/bias."""
    s = jnp.sum(stats[:, 0, :cout], axis=0)
    sq = jnp.sum(stats[:, 1, :cout], axis=0)
    mean = s / count
    var = jnp.maximum(sq / count - mean * mean, 0.0)
    scale = gamma / jnp.sqrt(var + eps)
    bias = beta - mean * scale
    return scale, bias


# ----------------------------------------------------------------------------
# Discriminator forward
# ----------------------------------------------------------------------------
def discriminator_forward(x, p, *, d):
    """x: (N, 1, 64, 64) -> (N, 1, 1, 1), matching the PyTorch module."""
    n = x.shape[0]
    x = x.reshape(n, 1, 64, 64).astype(jnp.float32)   # input.view(N,1,64,64)
    x = jnp.transpose(x, (0, 2, 3, 1))                # NHWC (N,64,64,1)

    # conv1 (no BN). Its LeakyReLU is fused as conv2's pre-activation.
    pat = _pack_patches_s2(x, jnp.zeros((1,), jnp.float32))   # (N*1024, 16)
    y1, _ = conv_layer(pat, _w_to_mat_s2(p["w1"]), p["b1"], tile_m=512)

    # conv2 + BN2
    s1 = jnp.ones((d,), jnp.float32)
    b1 = jnp.zeros((d,), jnp.float32)
    pat = _repack(y1, n, 32, d, s1, b1)                        # (N*256, 16d)
    y2, st2 = conv_layer(pat, _w_to_mat_s2(p["w2"]), p["b2"],
                         jnp.tile(s1, 16), jnp.tile(b1, 16), tile_m=256)
    s2, bb2 = _bn_fold(st2, 2 * d, y2.shape[0], p["g2"], p["be2"])

    # conv3 + BN3  (pre-act = LeakyReLU(BN2(.)))
    pat = _repack(y2, n, 16, 2 * d, s2, bb2)                   # (N*64, 32d)
    y3, st3 = conv_layer(pat, _w_to_mat_s2(p["w3"]), p["b3"],
                         jnp.tile(s2, 16), jnp.tile(bb2, 16), tile_m=1024)
    s3, bb3 = _bn_fold(st3, 4 * d, y3.shape[0], p["g3"], p["be3"])

    # conv4 + BN4
    pat = _repack(y3, n, 8, 4 * d, s3, bb3)                    # (N*16, 64d)
    y4, st4 = conv_layer(pat, _w_to_mat_s2(p["w4"]), p["b4"],
                         jnp.tile(s3, 16), jnp.tile(bb3, 16), tile_m=1024)
    s4, bb4 = _bn_fold(st4, 8 * d, y4.shape[0], p["g4"], p["be4"])

    # conv5 (4x4, stride 1, pad 0 on a 4x4 map -> one dot per image, Cout=1).
    # Plain jnp per the review: a pallas_call here would DMA a 128x
    # zero-padded weight and run an M=1 GEMM for ~2 MFLOP.
    y4f = y4.reshape(n, 16, -1)[:, :, :8 * d].astype(jnp.float32)
    x5 = y4f * s4 + bb4
    x5 = jnp.where(x5 > 0, x5, 0.2 * x5).reshape(n, 16 * 8 * d)
    w5 = _w_to_mat_s1(p["w5"]).astype(jnp.float32)             # (16*8d, 1)
    logit = x5 @ w5 + p["b5"].astype(jnp.float32)
    return jax.nn.sigmoid(logit).reshape(n, 1, 1, 1)


# ----------------------------------------------------------------------------
# Parameter init (DCGAN-style, PyTorch layouts)
# ----------------------------------------------------------------------------
def init_params(key, d):
    ks = jax.random.split(key, 16)

    def conv(kw, kb, cout, cin):
        return (0.02 * jax.random.normal(kw, (cout, cin, 4, 4), jnp.float32),
                0.01 * jax.random.normal(kb, (cout,), jnp.float32))

    def bn(kg, kb, c):
        return (1.0 + 0.1 * jax.random.normal(kg, (c,), jnp.float32),
                0.1 * jax.random.normal(kb, (c,), jnp.float32))

    p = {}
    p["w1"], p["b1"] = conv(ks[0], ks[1], d, 1)
    p["w2"], p["b2"] = conv(ks[2], ks[3], 2 * d, d)
    p["g2"], p["be2"] = bn(ks[4], ks[5], 2 * d)
    p["w3"], p["b3"] = conv(ks[6], ks[7], 4 * d, 2 * d)
    p["g3"], p["be3"] = bn(ks[8], ks[9], 4 * d)
    p["w4"], p["b4"] = conv(ks[10], ks[11], 8 * d, 4 * d)
    p["g4"], p["be4"] = bn(ks[12], ks[13], 8 * d)
    p["w5"], p["b5"] = conv(ks[14], ks[15], 1, 8 * d)
    return p


if __name__ == "__main__":
    # small shapes: batch=2, base width d=8, fixed 64x64 single-channel input
    N, D = 2, 8

    key = jax.random.PRNGKey(0)
    k_params, k_x = jax.random.split(key)
    params = init_params(k_params, D)
    x = jax.random.normal(k_x, (N, 1, 64, 64), jnp.float32)

    fwd = jax.jit(functools.partial(discriminator_forward, d=D))
    out = jax.block_until_ready(fwd(x, params))

    assert out.shape == (N, 1, 1, 1), out.shape
    assert bool(jnp.all(jnp.isfinite(out)))
    assert bool(jnp.all((out >= 0.0) & (out <= 1.0)))   # sigmoid range
    print("KERNEL_OK")
</pallas_src>

<mosaic_0001>
module attributes {stable_mosaic.version = 11 : i64} {
  func.func @_conv_kernel(%arg0: i32, %arg1: memref<512x16xbf16, #tpu.memory_space<vmem>>, %arg2: memref<16x128xbf16, #tpu.memory_space<vmem>>, %arg3: memref<1x128xf32, #tpu.memory_space<vmem>>, %arg4: memref<512x128xbf16, #tpu.memory_space<vmem>>) attributes {dimension_semantics = [#tpu.dimension_semantics<parallel>], iteration_bounds = array<i64: 4>, scalar_prefetch = 0 : i64, scratch_operands = 0 : i64, tpu.core_type = #tpu.core_type<tc>, window_params = [{transform_indices = @transform_0, window_bounds = array<i64: 512, 16>}, {pipeline_mode = #tpu.pipeline_mode<synchronous>, transform_indices = @transform_1, window_bounds = array<i64: 16, 128>}, {pipeline_mode = #tpu.pipeline_mode<synchronous>, transform_indices = @transform_2, window_bounds = array<i64: 1, 128>}, {transform_indices = @transform_3, window_bounds = array<i64: 512, 128>}]} {
    %c0 = arith.constant 0 : index
    %c0_0 = arith.constant 0 : index
    %0 = vector.load %arg1[%c0, %c0_0] : memref<512x16xbf16, #tpu.memory_space<vmem>>, vector<512x16xbf16>
    %c0_1 = arith.constant 0 : index
    %c0_2 = arith.constant 0 : index
    %1 = vector.load %arg2[%c0_1, %c0_2] : memref<16x128xbf16, #tpu.memory_space<vmem>>, vector<16x128xbf16>
    %cst = arith.constant dense<0.000000e+00> : vector<512x128xf32>
    %2 = tpu.matmul %0, %1, %cst {dimension_numbers = #tpu.dot_dimension_numbers<[1], [0], [0], [1], [0, 0, 1, 1], [], []>} : vector<512x16xbf16>, vector<16x128xbf16>, vector<512x128xf32> -> vector<512x128xf32>
    %c0_3 = arith.constant 0 : index
    %c0_4 = arith.constant 0 : index
    %3 = vector.load %arg3[%c0_3, %c0_4] : memref<1x128xf32, #tpu.memory_space<vmem>>, vector<1x128xf32>
    %4 = vector.broadcast %3 : vector<1x128xf32> to vector<512x128xf32>
    %5 = arith.addf %2, %4 : vector<512x128xf32>
    %6 = arith.truncf %5 : vector<512x128xf32> to vector<512x128xbf16>
    %c0_5 = arith.constant 0 : index
    %c0_6 = arith.constant 0 : index
    %7 = vector.load %arg4[%c0_5, %c0_6] : memref<512x128xbf16, #tpu.memory_space<vmem>>, vector<512x128xbf16>
    tpu.vector_store %arg4[%c0_5, %c0_6], %6 {strides = array<i32>} : memref<512x128xbf16, #tpu.memory_space<vmem>>, vector<512x128xbf16>,
    return
  }
  func.func @transform_0(%arg0: i32) -> (i32, i32) {
    %c0_i32 = arith.constant 0 : i32
    %c0_i32_0 = arith.constant 0 : i32
    return %arg0, %c0_i32 : i32, i32
  }
  func.func @transform_1(%arg0: i32) -> (i32, i32) {
    %c0_i32 = arith.constant 0 : i32
    %c0_i32_0 = arith.constant 0 : i32
    %c0_i32_1 = arith.constant 0 : i32
    return %c0_i32, %c0_i32_0 : i32, i32
  }
  func.func @transform_2(%arg0: i32) -> (i32, i32) {
    %c0_i32 = arith.constant 0 : i32
    %c0_i32_0 = arith.constant 0 : i32
    %c0_i32_1 = arith.constant 0 : i32
    return %c0_i32, %c0_i32_0 : i32, i32
  }
  func.func @transform_3(%arg0: i32) -> (i32, i32) {
    %c0_i32 = arith.constant 0 : i32
    %c0_i32_0 = arith.constant 0 : i32
    return %arg0, %c0_i32 : i32, i32
  }
}

module attributes {stable_mosaic.version = 11 : i64} {
  func.func @_conv_bn_kernel(%arg0: i32, %arg1: memref<256x128xbf16, #tpu.memory_space<vmem>>, %arg2: memref<1x128xf32, #tpu.memory_space<vmem>>, %arg3: memref<1x128xf32, #tpu.memory_space<vmem>>, %arg4: memref<128x128xbf16, #tpu.memory_space<vmem>>, %arg5: memref<1x128xf32, #tpu.memory_space<vmem>>, %arg6: memref<256x128xbf16, #tpu.memory_space<vmem>>, %arg7: memref<1x8x128xf32, #tpu.memory_space<vmem>>) attributes {dimension_semantics = [#tpu.dimension_semantics<parallel>], iteration_bounds = array<i64: 2>, scalar_prefetch = 0 : i64, scratch_operands = 0 : i64, tpu.core_type = #tpu.core_type<tc>, window_params = [{transform_indices = @transform_0, window_bounds = array<i64: 256, 128>}, {pipeline_mode = #tpu.pipeline_mode<synchronous>, transform_indices = @transform_1, window_bounds = array<i64: 1, 128>}, {pipeline_mode = #tpu.pipeline_mode<synchronous>, transform_indices = @transform_2, window_bounds = array<i64: 1, 128>}, {pipeline_mode = #tpu.pipeline_mode<synchronous>, transform_indices = @transform_3, window_bounds = array<i64: 128, 128>}, {pipeline_mode = #tpu.pipeline_mode<synchronous>, transform_indices = @transform_4, window_bounds = array<i64: 1, 128>}, {transform_indices = @transform_5, window_bounds = array<i64: 256, 128>}, {transform_indices = @transform_6, window_bounds = array<i64: 1, 8, 128>}]} {
    %c0 = arith.constant 0 : index
    %c0_0 = arith.constant 0 : index
    %0 = vector.load %arg1[%c0, %c0_0] : memref<256x128xbf16, #tpu.memory_space<vmem>>, vector<256x128xbf16>
    %1 = arith.extf %0 : vector<256x128xbf16> to vector<256x128xf32>
    %c0_1 = arith.constant 0 : index
    %c0_2 = arith.constant 0 : index
    %2 = vector.load %arg2[%c0_1, %c0_2] : memref<1x128xf32, #tpu.memory_space<vmem>>, vector<1x128xf32>
    %3 = vector.broadcast %2 : vector<1x128xf32> to vector<256x128xf32>
    %4 = arith.mulf %1, %3 : vector<256x128xf32>
    %c0_3 = arith.constant 0 : index
    %c0_4 = arith.constant 0 : index
    %5 = vector.load %arg3[%c0_3, %c0_4] : memref<1x128xf32, #tpu.memory_space<vmem>>, vector<1x128xf32>
    %6 = vector.broadcast %5 : vector<1x128xf32> to vector<256x128xf32>
    %7 = arith.addf %4, %6 : vector<256x128xf32>
    %cst = arith.constant 0.000000e+00 : f32
    %8 = vector.broadcast %cst : f32 to vector<256x128xf32>
    %9 = arith.cmpf ogt, %7, %8 : vector<256x128xf32>
    %cst_5 = arith.constant 2.000000e-01 : f32
    %10 = vector.broadcast %cst_5 : f32 to vector<256x128xf32>
    %11 = arith.mulf %10, %7 : vector<256x128xf32>
    %12 = arith.select %9, %7, %11 : vector<256x128xi1>, vector<256x128xf32>
    %13 = arith.truncf %12 : vector<256x128xf32> to vector<256x128xbf16>
    %c0_6 = arith.constant 0 : index
    %c0_7 = arith.constant 0 : index
    %14 = vector.load %arg4[%c0_6, %c0_7] : memref<128x128xbf16, #tpu.memory_space<vmem>>, vector<128x128xbf16>
    %cst_8 = arith.constant dense<0.000000e+00> : vector<256x128xf32>
    %15 = tpu.matmul %13, %14, %cst_8 {dimension_numbers = #tpu.dot_dimension_numbers<[1], [0], [0], [1], [0, 0, 1, 1], [], []>} : vector<256x128xbf16>, vector<128x128xbf16>, vector<256x128xf32> -> vector<256x128xf32>
    %c0_9 = arith.constant 0 : index
    %c0_10 = arith.constant 0 : index
    %16 = vector.load %arg5[%c0_9, %c0_10] : memref<1x128xf32, #tpu.memory_space<vmem>>, vector<1x128xf32>
    %17 = vector.broadcast %16 : vector<1x128xf32> to vector<256x128xf32>
    %18 = arith.addf %15, %17 : vector<256x128xf32>
    %cst_11 = arith.constant dense<0.000000e+00> : vector<128xf32>
    %19 = vector.multi_reduction <add>, %18, %cst_11 [0] : vector<256x128xf32> to vector<128xf32>
    %20 = vector.shape_cast %19 : vector<128xf32> to vector<1x128xf32>
    %21 = arith.mulf %18, %18 : vector<256x128xf32>
    %cst_12 = arith.constant dense<0.000000e+00> : vector<128xf32>
    %22 = vector.multi_reduction <add>, %21, %cst_12 [0] : vector<256x128xf32> to vector<128xf32>
    %23 = vector.shape_cast %22 : vector<128xf32> to vector<1x128xf32>
    %cst_13 = arith.constant 0.000000e+00 : f32
    %24 = vector.broadcast %cst_13 : f32 to vector<6x128xf32>
    %25 = tpu.concatenate %20, %23, %24 in 0 : vector<1x128xf32>, vector<1x128xf32>, vector<6x128xf32> -> vector<8x128xf32>
    %c0_14 = arith.constant 0 : index
    %c0_15 = arith.constant 0 : index
    %c0_16 = arith.constant 0 : index
    %26 = vector.load %arg7[%c0_14, %c0_15, %c0_16] : memref<1x8x128xf32, #tpu.memory_space<vmem>>, vector<1x8x128xf32>
    %27 = vector.shape_cast %26 : vector<1x8x128xf32> to vector<8x128xf32>
    %28 = vector.shape_cast %25 : vector<8x128xf32> to vector<1x8x128xf32>
    tpu.vector_store %arg7[%c0_14, %c0_15, %c0_16], %28 {strides = array<i32>} : memref<1x8x128xf32, #tpu.memory_space<vmem>>, vector<1x8x128xf32>,
    %29 = arith.truncf %18 : vector<256x128xf32> to vector<256x128xbf16>
    %c0_17 = arith.constant 0 : index
    %c0_18 = arith.constant 0 : index
    %30 = vector.load %arg6[%c0_17, %c0_18] : memref<256x128xbf16, #tpu.memory_space<vmem>>, vector<256x128xbf16>
    tpu.vector_store %arg6[%c0_17, %c0_18], %29 {strides = array<i32>} : memref<256x128xbf16, #tpu.memory_space<vmem>>, vector<256x128xbf16>,
    return
  }
  func.func @transform_0(%arg0: i32) -> (i32, i32) {
    %c0_i32 = arith.constant 0 : i32
    %c0_i32_0 = arith.constant 0 : i32
    return %arg0, %c0_i32 : i32, i32
  }
  func.func @transform_1(%arg0: i32) -> (i32, i32) {
    %c0_i32 = arith.constant 0 : i32
    %c0_i32_0 = arith.constant 0 : i32
    %c0_i32_1 = arith.constant 0 : i32
    return %c0_i32, %c0_i32_0 : i32, i32
  }
  func.func @transform_2(%arg0: i32) -> (i32, i32) {
    %c0_i32 = arith.constant 0 : i32
    %c0_i32_0 = arith.constant 0 : i32
    %c0_i32_1 = arith.constant 0 : i32
    return %c0_i32, %c0_i32_0 : i32, i32
  }
  func.func @transform_3(%arg0: i32) -> (i32, i32) {
    %c0_i32 = arith.constant 0 : i32
    %c0_i32_0 = arith.constant 0 : i32
    %c0_i32_1 = arith.constant 0 : i32
    return %c0_i32, %c0_i32_0 : i32, i32
  }
  func.func @transform_4(%arg0: i32) -> (i32, i32) {
    %c0_i32 = arith.constant 0 : i32
    %c0_i32_0 = arith.constant 0 : i32
    %c0_i32_1 = arith.constant 0 : i32
    return %c0_i32, %c0_i32_0 : i32, i32
  }
  func.func @transform_5(%arg0: i32) -> (i32, i32) {
    %c0_i32 = arith.constant 0 : i32
    %c0_i32_0 = arith.constant 0 : i32
    return %arg0, %c0_i32 : i32, i32
  }
  func.func @transform_6(%arg0: i32) -> (i32, i32, i32) {
    %c0_i32 = arith.constant 0 : i32
    %c0_i32_0 = arith.constant 0 : i32
    %c0_i32_1 = arith.constant 0 : i32
    return %arg0, %c0_i32, %c0_i32_0 : i32, i32, i32
  }
}

module attributes {stable_mosaic.version = 11 : i64} {
  func.func @_conv_bn_kernel(%arg0: i32, %arg1: memref<128x256xbf16, #tpu.memory_space<vmem>>, %arg2: memref<1x256xf32, #tpu.memory_space<vmem>>, %arg3: memref<1x256xf32, #tpu.memory_space<vmem>>, %arg4: memref<256x128xbf16, #tpu.memory_space<vmem>>, %arg5: memref<1x128xf32, #tpu.memory_space<vmem>>, %arg6: memref<128x128xbf16, #tpu.memory_space<vmem>>, %arg7: memref<1x8x128xf32, #tpu.memory_space<vmem>>) attributes {dimension_semantics = [#tpu.dimension_semantics<parallel>], iteration_bounds = array<i64: 1>, scalar_prefetch = 0 : i64, scratch_operands = 0 : i64, tpu.core_type = #tpu.core_type<tc>, window_params = [{transform_indices = @transform_0, window_bounds = array<i64: 128, 256>}, {pipeline_mode = #tpu.pipeline_mode<synchronous>, transform_indices = @transform_1, window_bounds = array<i64: 1, 256>}, {pipeline_mode = #tpu.pipeline_mode<synchronous>, transform_indices = @transform_2, window_bounds = array<i64: 1, 256>}, {pipeline_mode = #tpu.pipeline_mode<synchronous>, transform_indices = @transform_3, window_bounds = array<i64: 256, 128>}, {pipeline_mode = #tpu.pipeline_mode<synchronous>, transform_indices = @transform_4, window_bounds = array<i64: 1, 128>}, {transform_indices = @transform_5, window_bounds = array<i64: 128, 128>}, {transform_indices = @transform_6, window_bounds = array<i64: 1, 8, 128>}]} {
    %c0 = arith.constant 0 : index
    %c0_0 = arith.constant 0 : index
    %0 = vector.load %arg1[%c0, %c0_0] : memref<128x256xbf16, #tpu.memory_space<vmem>>, vector<128x256xbf16>
    %1 = arith.extf %0 : vector<128x256xbf16> to vector<128x256xf32>
    %c0_1 = arith.constant 0 : index
    %c0_2 = arith.constant 0 : index
    %2 = vector.load %arg2[%c0_1, %c0_2] : memref<1x256xf32, #tpu.memory_space<vmem>>, vector<1x256xf32>
    %3 = vector.broadcast %2 : vector<1x256xf32> to vector<128x256xf32>
    %4 = arith.mulf %1, %3 : vector<128x256xf32>
    %c0_3 = arith.constant 0 : index
    %c0_4 = arith.constant 0 : index
    %5 = vector.load %arg3[%c0_3, %c0_4] : memref<1x256xf32, #tpu.memory_space<vmem>>, vector<1x256xf32>
    %6 = vector.broadcast %5 : vector<1x256xf32> to vector<128x256xf32>
    %7 = arith.addf %4, %6 : vector<128x256xf32>
    %cst = arith.constant 0.000000e+00 : f32
    %8 = vector.broadcast %cst : f32 to vector<128x256xf32>
    %9 = arith.cmpf ogt, %7, %8 : vector<128x256xf32>
    %cst_5 = arith.constant 2.000000e-01 : f32
    %10 = vector.broadcast %cst_5 : f32 to vector<128x256xf32>
    %11 = arith.mulf %10, %7 : vector<128x256xf32>
    %12 = arith.select %9, %7, %11 : vector<128x256xi1>, vector<128x256xf32>
    %13 = arith.truncf %12 : vector<128x256xf32> to vector<128x256xbf16>
    %c0_6 = arith.constant 0 : index
    %c0_7 = arith.constant 0 : index
    %14 = vector.load %arg4[%c0_6, %c0_7] : memref<256x128xbf16, #tpu.memory_space<vmem>>, vector<256x128xbf16>
    %cst_8 = arith.constant dense<0.000000e+00> : vector<128x128xf32>
    %15 = tpu.matmul %13, %14, %cst_8 {dimension_numbers = #tpu.dot_dimension_numbers<[1], [0], [0], [1], [0, 0, 1, 1], [], []>} : vector<128x256xbf16>, vector<256x128xbf16>, vector<128x128xf32> -> vector<128x128xf32>
    %c0_9 = arith.constant 0 : index
    %c0_10 = arith.constant 0 : index
    %16 = vector.load %arg5[%c0_9, %c0_10] : memref<1x128xf32, #tpu.memory_space<vmem>>, vector<1x128xf32>
    %17 = vector.broadcast %16 : vector<1x128xf32> to vector<128x128xf32>
    %18 = arith.addf %15, %17 : vector<128x128xf32>
    %cst_11 = arith.constant dense<0.000000e+00> : vector<128xf32>
    %19 = vector.multi_reduction <add>, %18, %cst_11 [0] : vector<128x128xf32> to vector<128xf32>
    %20 = vector.shape_cast %19 : vector<128xf32> to vector<1x128xf32>
    %21 = arith.mulf %18, %18 : vector<128x128xf32>
    %cst_12 = arith.constant dense<0.000000e+00> : vector<128xf32>
    %22 = vector.multi_reduction <add>, %21, %cst_12 [0] : vector<128x128xf32> to vector<128xf32>
    %23 = vector.shape_cast %22 : vector<128xf32> to vector<1x128xf32>
    %cst_13 = arith.constant 0.000000e+00 : f32
    %24 = vector.broadcast %cst_13 : f32 to vector<6x128xf32>
    %25 = tpu.concatenate %20, %23, %24 in 0 : vector<1x128xf32>, vector<1x128xf32>, vector<6x128xf32> -> vector<8x128xf32>
    %c0_14 = arith.constant 0 : index
    %c0_15 = arith.constant 0 : index
    %c0_16 = arith.constant 0 : index
    %26 = vector.load %arg7[%c0_14, %c0_15, %c0_16] : memref<1x8x128xf32, #tpu.memory_space<vmem>>, vector<1x8x128xf32>
    %27 = vector.shape_cast %26 : vector<1x8x128xf32> to vector<8x128xf32>
    %28 = vector.shape_cast %25 : vector<8x128xf32> to vector<1x8x128xf32>
    tpu.vector_store %arg7[%c0_14, %c0_15, %c0_16], %28 {strides = array<i32>} : memref<1x8x128xf32, #tpu.memory_space<vmem>>, vector<1x8x128xf32>,
    %29 = arith.truncf %18 : vector<128x128xf32> to vector<128x128xbf16>
    %c0_17 = arith.constant 0 : index
    %c0_18 = arith.constant 0 : index
    %30 = vector.load %arg6[%c0_17, %c0_18] : memref<128x128xbf16, #tpu.memory_space<vmem>>, vector<128x128xbf16>
    tpu.vector_store %arg6[%c0_17, %c0_18], %29 {strides = array<i32>} : memref<128x128xbf16, #tpu.memory_space<vmem>>, vector<128x128xbf16>,
    return
  }
  func.func @transform_0(%arg0: i32) -> (i32, i32) {
    %c0_i32 = arith.constant 0 : i32
    %c0_i32_0 = arith.constant 0 : i32
    return %arg0, %c0_i32 : i32, i32
  }
  func.func @transform_1(%arg0: i32) -> (i32, i32) {
    %c0_i32 = arith.constant 0 : i32
    %c0_i32_0 = arith.constant 0 : i32
    %c0_i32_1 = arith.constant 0 : i32
    return %c0_i32, %c0_i32_0 : i32, i32
  }
  func.func @transform_2(%arg0: i32) -> (i32, i32) {
    %c0_i32 = arith.constant 0 : i32
    %c0_i32_0 = arith.constant 0 : i32
    %c0_i32_1 = arith.constant 0 : i32
    return %c0_i32, %c0_i32_0 : i32, i32
  }
  func.func @transform_3(%arg0: i32) -> (i32, i32) {
    %c0_i32 = arith.constant 0 : i32
    %c0_i32_0 = arith.constant 0 : i32
    %c0_i32_1 = arith.constant 0 : i32
    return %c0_i32, %c0_i32_0 : i32, i32
  }
  func.func @transform_4(%arg0: i32) -> (i32, i32) {
    %c0_i32 = arith.constant 0 : i32
    %c0_i32_0 = arith.constant 0 : i32
    %c0_i32_1 = arith.constant 0 : i32
    return %c0_i32, %c0_i32_0 : i32, i32
  }
  func.func @transform_5(%arg0: i32) -> (i32, i32) {
    %c0_i32 = arith.constant 0 : i32
    %c0_i32_0 = arith.constant 0 : i32
    return %arg0, %c0_i32 : i32, i32
  }
  func.func @transform_6(%arg0: i32) -> (i32, i32, i32) {
    %c0_i32 = arith.constant 0 : i32
    %c0_i32_0 = arith.constant 0 : i32
    %c0_i32_1 = arith.constant 0 : i32
    return %arg0, %c0_i32, %c0_i32_0 : i32, i32, i32
  }
}

module attributes {stable_mosaic.version = 11 : i64} {
  func.func @_conv_bn_kernel(%arg0: i32, %arg1: memref<32x512xbf16, #tpu.memory_space<vmem>>, %arg2: memref<1x512xf32, #tpu.memory_space<vmem>>, %arg3: memref<1x512xf32, #tpu.memory_space<vmem>>, %arg4: memref<512x128xbf16, #tpu.memory_space<vmem>>, %arg5: memref<1x128xf32, #tpu.memory_space<vmem>>, %arg6: memref<32x128xbf16, #tpu.memory_space<vmem>>, %arg7: memref<1x8x128xf32, #tpu.memory_space<vmem>>) attributes {dimension_semantics = [#tpu.dimension_semantics<parallel>], iteration_bounds = array<i64: 1>, scalar_prefetch = 0 : i64, scratch_operands = 0 : i64, tpu.core_type = #tpu.core_type<tc>, window_params = [{transform_indices = @transform_0, window_bounds = array<i64: 32, 512>}, {pipeline_mode = #tpu.pipeline_mode<synchronous>, transform_indices = @transform_1, window_bounds = array<i64: 1, 512>}, {pipeline_mode = #tpu.pipeline_mode<synchronous>, transform_indices = @transform_2, window_bounds = array<i64: 1, 512>}, {pipeline_mode = #tpu.pipeline_mode<synchronous>, transform_indices = @transform_3, window_bounds = array<i64: 512, 128>}, {pipeline_mode = #tpu.pipeline_mode<synchronous>, transform_indices = @transform_4, window_bounds = array<i64: 1, 128>}, {transform_indices = @transform_5, window_bounds = array<i64: 32, 128>}, {transform_indices = @transform_6, window_bounds = array<i64: 1, 8, 128>}]} {
    %c0 = arith.constant 0 : index
    %c0_0 = arith.constant 0 : index
    %0 = vector.load %arg1[%c0, %c0_0] : memref<32x512xbf16, #tpu.memory_space<vmem>>, vector<32x512xbf16>
    %1 = arith.extf %0 : vector<32x512xbf16> to vector<32x512xf32>
    %c0_1 = arith.constant 0 : index
    %c0_2 = arith.constant 0 : index
    %2 = vector.load %arg2[%c0_1, %c0_2] : memref<1x512xf32, #tpu.memory_space<vmem>>, vector<1x512xf32>
    %3 = vector.broadcast %2 : vector<1x512xf32> to vector<32x512xf32>
    %4 = arith.mulf %1, %3 : vector<32x512xf32>
    %c0_3 = arith.constant 0 : index
    %c0_4 = arith.constant 0 : index
    %5 = vector.load %arg3[%c0_3, %c0_4] : memref<1x512xf32, #tpu.memory_space<vmem>>, vector<1x512xf32>
    %6 = vector.broadcast %5 : vector<1x512xf32> to vector<32x512xf32>
    %7 = arith.addf %4, %6 : vector<32x512xf32>
    %cst = arith.constant 0.000000e+00 : f32
    %8 = vector.broadcast %cst : f32 to vector<32x512xf32>
    %9 = arith.cmpf ogt, %7, %8 : vector<32x512xf32>
    %cst_5 = arith.constant 2.000000e-01 : f32
    %10 = vector.broadcast %cst_5 : f32 to vector<32x512xf32>
    %11 = arith.mulf %10, %7 : vector<32x512xf32>
    %12 = arith.select %9, %7, %11 : vector<32x512xi1>, vector<32x512xf32>
    %13 = arith.truncf %12 : vector<32x512xf32> to vector<32x512xbf16>
    %c0_6 = arith.constant 0 : index
    %c0_7 = arith.constant 0 : index
    %14 = vector.load %arg4[%c0_6, %c0_7] : memref<512x128xbf16, #tpu.memory_space<vmem>>, vector<512x128xbf16>
    %cst_8 = arith.constant dense<0.000000e+00> : vector<32x128xf32>
    %15 = tpu.matmul %13, %14, %cst_8 {dimension_numbers = #tpu.dot_dimension_numbers<[1], [0], [0], [1], [0, 0, 1, 1], [], []>} : vector<32x512xbf16>, vector<512x128xbf16>, vector<32x128xf32> -> vector<32x128xf32>
    %c0_9 = arith.constant 0 : index
    %c0_10 = arith.constant 0 : index
    %16 = vector.load %arg5[%c0_9, %c0_10] : memref<1x128xf32, #tpu.memory_space<vmem>>, vector<1x128xf32>
    %17 = vector.broadcast %16 : vector<1x128xf32> to vector<32x128xf32>
    %18 = arith.addf %15, %17 : vector<32x128xf32>
    %cst_11 = arith.constant dense<0.000000e+00> : vector<128xf32>
    %19 = vector.multi_reduction <add>, %18, %cst_11 [0] : vector<32x128xf32> to vector<128xf32>
    %20 = vector.shape_cast %19 : vector<128xf32> to vector<1x128xf32>
    %21 = arith.mulf %18, %18 : vector<32x128xf32>
    %cst_12 = arith.constant dense<0.000000e+00> : vector<128xf32>
    %22 = vector.multi_reduction <add>, %21, %cst_12 [0] : vector<32x128xf32> to vector<128xf32>
    %23 = vector.shape_cast %22 : vector<128xf32> to vector<1x128xf32>
    %cst_13 = arith.constant 0.000000e+00 : f32
    %24 = vector.broadcast %cst_13 : f32 to vector<6x128xf32>
    %25 = tpu.concatenate %20, %23, %24 in 0 : vector<1x128xf32>, vector<1x128xf32>, vector<6x128xf32> -> vector<8x128xf32>
    %c0_14 = arith.constant 0 : index
    %c0_15 = arith.constant 0 : index
    %c0_16 = arith.constant 0 : index
    %26 = vector.load %arg7[%c0_14, %c0_15, %c0_16] : memref<1x8x128xf32, #tpu.memory_space<vmem>>, vector<1x8x128xf32>
    %27 = vector.shape_cast %26 : vector<1x8x128xf32> to vector<8x128xf32>
    %28 = vector.shape_cast %25 : vector<8x128xf32> to vector<1x8x128xf32>
    tpu.vector_store %arg7[%c0_14, %c0_15, %c0_16], %28 {strides = array<i32>} : memref<1x8x128xf32, #tpu.memory_space<vmem>>, vector<1x8x128xf32>,
    %29 = arith.truncf %18 : vector<32x128xf32> to vector<32x128xbf16>
    %c0_17 = arith.constant 0 : index
    %c0_18 = arith.constant 0 : index
    %30 = vector.load %arg6[%c0_17, %c0_18] : memref<32x128xbf16, #tpu.memory_space<vmem>>, vector<32x128xbf16>
    tpu.vector_store %arg6[%c0_17, %c0_18], %29 {strides = array<i32>} : memref<32x128xbf16, #tpu.memory_space<vmem>>, vector<32x128xbf16>,
    return
  }
  func.func @transform_0(%arg0: i32) -> (i32, i32) {
    %c0_i32 = arith.constant 0 : i32
    %c0_i32_0 = arith.constant 0 : i32
    return %arg0, %c0_i32 : i32, i32
  }
  func.func @transform_1(%arg0: i32) -> (i32, i32) {
    %c0_i32 = arith.constant 0 : i32
    %c0_i32_0 = arith.constant 0 : i32
    %c0_i32_1 = arith.constant 0 : i32
    return %c0_i32, %c0_i32_0 : i32, i32
  }
  func.func @transform_2(%arg0: i32) -> (i32, i32) {
    %c0_i32 = arith.constant 0 : i32
    %c0_i32_0 = arith.constant 0 : i32
    %c0_i32_1 = arith.constant 0 : i32
    return %c0_i32, %c0_i32_0 : i32, i32
  }
  func.func @transform_3(%arg0: i32) -> (i32, i32) {
    %c0_i32 = arith.constant 0 : i32
    %c0_i32_0 = arith.constant 0 : i32
    %c0_i32_1 = arith.constant 0 : i32
    return %c0_i32, %c0_i32_0 : i32, i32
  }
  func.func @transform_4(%arg0: i32) -> (i32, i32) {
    %c0_i32 = arith.constant 0 : i32
    %c0_i32_0 = arith.constant 0 : i32
    %c0_i32_1 = arith.constant 0 : i32
    return %c0_i32, %c0_i32_0 : i32, i32
  }
  func.func @transform_5(%arg0: i32) -> (i32, i32) {
    %c0_i32 = arith.constant 0 : i32
    %c0_i32_0 = arith.constant 0 : i32
    return %arg0, %c0_i32 : i32, i32
  }
  func.func @transform_6(%arg0: i32) -> (i32, i32, i32) {
    %c0_i32 = arith.constant 0 : i32
    %c0_i32_0 = arith.constant 0 : i32
    %c0_i32_1 = arith.constant 0 : i32
    return %arg0, %c0_i32, %c0_i32_0 : i32, i32, i32
  }
}

</mosaic_0001>

<llo_original>
// kernel: discriminator_forward.4
$region0: #{discriminator_forward.4}
  #allocation0 [shape = 'u32[]', space=smem, size = 0x4, offset = 0x4, fixed_abs, tag = 'smem constant byte address 0x4 - core index']
  #allocation1 [shape = 'u32[72,128]{1,0:T(1,128)}', space=vmem, size = 0x9000, scoped, tag = 'internal scratch']
  %s0 = inlined_call_operand.vmem [shape: bf16[2048,16], index: 0, kind: input, shape index: {}]
  %s1 = inlined_call_operand.vmem [shape: bf16[16,128], index: 1, kind: input, shape index: {}]
  %s2 = inlined_call_operand.vmem [shape: f32[1,128], index: 2, kind: input, shape index: {}]
  %s3 = inlined_call_operand.vmem [shape: bf16[2048,128], index: 3, kind: output, shape index: {}]
  %s4 = sld [smem:[#allocation0]]
  $region45: #{discriminator_forward.4} parent=0
    _
  %s6 = ssub.s32 1, %s4
  %s7 = scalar_select 0, %s6, %s4
  loop: start=0, step=1, limit=6
  $region2: #{discriminator_forward.4} parent=0 // loop_pre_header
    _
  $region3: #{discriminator_forward.4} parent=0 // loop_header
    %s9 = sphi 0, %s13
    %p10 = scmp.ge.s32.totalorder %s9, 6
    %s19 = sphi 0, %s21
    %s22 = sphi 0, %s19
    %s23 = sphi 0, %s22
    %s39 = sphi 0, %s23
    %s43 = sphi 0, %s43
    %s45 = sphi 0, %s43
    %s46 = sphi 0, %s45
    %s60 = sphi 0, %s46
    %s64 = sphi 0, %s64
    %s66 = sphi 0, %s64
    %s67 = sphi 0, %s66
    %s81 = sphi 0, %s67
    %s87 = sphi 0, %s89
    %s90 = sphi 0, %s87
    %s91 = sphi 0, %s90
    %s107 = sphi 0, %s91
  $region4: #{discriminator_forward.4} parent=0 // loop_header_branch
    %12 = sbr.rel (%p10) target = $region8
  $region5: #{discriminator_forward.4} parent=0 // loop_body
    %s14 = ssub.s32 %s9, 1
    %s15 = ssub.s32 %s9, 2
    %s16 = sadd.s32 %s9, 1
    %s17 = ssub.s32 %s9, %s16
    %p18 = scmp.eq.s32.totalorder %s17, 0
    %s20 = sadd.s32 %s19, 1
    %s21 = scalar_select %p18, %s19, %s20
    %p24 = pneg %p18
    %p25 = scmp.eq.s32.totalorder %s9, 3
    %p26 = por %p24, %p25
    %p27 = scmp.ne.s32.totalorder %s19, %s22
    %p28 = scmp.eq.s32.totalorder %s9, 0
    %p29 = por %p27, %p28
    %p30 = scmp.ne.s32.totalorder %s19, %s22
    %p31 = scmp.eq.s32.totalorder %s14, 3
    %p32 = por %p30, %p31
    %p33 = scmp.ne.s32.totalorder %s22, %s23
    %p34 = scmp.eq.s32.totalorder %s14, 0
    %p35 = por %p33, %p34
    %p36 = scmp.ne.s32.totalorder %s22, %s23
    %p37 = scmp.eq.s32.totalorder %s15, 3
    %p38 = por %p36, %p37
    %p40 = scmp.ne.s32.totalorder %s23, %s39
    %p41 = scmp.eq.s32.totalorder %s15, 0
    %p42 = por %p40, %p41
    %s44 = sadd.s32 %s43, 1
    %p47 = scmp.eq.s32.totalorder %s9, 3
    %p48 = scmp.ne.s32.totalorder %s43, %s45
    %p49 = scmp.eq.s32.totalorder %s9, 0
    %p50 = por %p48, %p49
    %p51 = scmp.ne.s32.totalorder %s43, %s45
    %p52 = scmp.eq.s32.totalorder %s14, 3
    %p53 = por %p51, %p52
    %p54 = scmp.ne.s32.totalorder %s45, %s46
    %p55 = scmp.eq.s32.totalorder %s14, 0
    %p56 = por %p54, %p55
    %p57 = scmp.ne.s32.totalorder %s45, %s46
    %p58 = scmp.eq.s32.totalorder %s15, 3
    %p59 = por %p57, %p58
    %p61 = scmp.ne.s32.totalorder %s46, %s60
    %p62 = scmp.eq.s32.totalorder %s15, 0
    %p63 = por %p61, %p62
    %s65 = sadd.s32 %s64, 1
    %p68 = scmp.eq.s32.totalorder %s9, 3
    %p69 = scmp.ne.s32.totalorder %s64, %s66
    %p70 = scmp.eq.s32.totalorder %s9, 0
    %p71 = por %p69, %p70
    %p72 = scmp.ne.s32.totalorder %s64, %s66
    %p73 = scmp.eq.s32.totalorder %s14, 3
    %p74 = por %p72, %p73
    %p75 = scmp.ne.s32.totalorder %s66, %s67
    %p76 = scmp.eq.s32.totalorder %s14, 0
    %p77 = por %p75, %p76
    %p78 = scmp.ne.s32.totalorder %s66, %s67
    %p79 = scmp.eq.s32.totalorder %s15, 3
    %p80 = por %p78, %p79
    %p82 = scmp.ne.s32.totalorder %s67, %s81
    %p83 = scmp.eq.s32.totalorder %s15, 0
    %p84 = por %p82, %p83
    %s85 = ssub.s32 %s9, %s16
    %p86 = scmp.eq.s32.totalorder %s85, 0
    %s88 = sadd.s32 %s87, 1
    %s89 = scalar_select %p86, %s87, %s88
    %p92 = pneg %p86
    %p93 = scmp.eq.s32.totalorder %s9, 3
    %p94 = por %p92, %p93
    %p95 = scmp.ne.s32.totalorder %s87, %s90
    %p96 = scmp.eq.s32.totalorder %s9, 0
    %p97 = por %p95, %p96
    %p98 = scmp.ne.s32.totalorder %s87, %s90
    %p99 = scmp.eq.s32.totalorder %s14, 3
    %p100 = por %p98, %p99
    %p101 = scmp.ne.s32.totalorder %s90, %s91
    %p102 = scmp.eq.s32.totalorder %s14, 0
    %p103 = por %p101, %p102
    %p104 = scmp.ne.s32.totalorder %s90, %s91
    %p105 = scmp.eq.s32.totalorder %s15, 3
    %p106 = por %p104, %p105
    %p108 = scmp.ne.s32.totalorder %s91, %s107
    %p109 = scmp.eq.s32.totalorder %s15, 0
    %p110 = por %p108, %p109
    %p111 = scmp.le.s32.totalorder 1, %s9
    %p112 = scmp.lt.s32.totalorder %s9, 5
    %p113 = pnand %p111, %p112
    %p114 = pneg %p113
    // Predicated region
    $region9: #{discriminator_forward.4} parent=5 // pred_check
      _
    $region10: #{discriminator_forward.4} parent=5 // pred_check_branch
      %116 = sbr.rel (%p113) target = $region12
    $region11: #{discriminator_forward.4} parent=5 // pred_region
      %s117 = ssub.s32 %s9, 1
      // Predicated region
      $region13: #{discriminator_forward.4} parent=11 // pred_check
        %p118 = pneg %p56
      $region14: #{discriminator_forward.4} parent=11 // pred_check_branch
        %120 = sbr.rel (%p118) target = $region16
      $region15: #{discriminator_forward.4} parent=11 // pred_region
        _
      $region16: #{discriminator_forward.4} parent=11 // pred_fallthru
        _
      // Predicated region
      $region17: #{discriminator_forward.4} parent=11 // pred_check
        %p121 = pneg %p77
      $region18: #{discriminator_forward.4} parent=11 // pred_check_branch
        %123 = sbr.rel (%p121) target = $region20
      $region19: #{discriminator_forward.4} parent=11 // pred_region
        _
      $region20: #{discriminator_forward.4} parent=11 // pred_fallthru
        _
    $region12: #{discriminator_forward.4} parent=5 // pred_fallthru
      _
    %p124 = scmp.lt.s32.totalorder %s9, 4
    // Predicated region
    $region21: #{discriminator_forward.4} parent=5 // pred_check
      %p125 = pneg %p124
    $region22: #{discriminator_forward.4} parent=5 // pred_check_branch
      %127 = sbr.rel (%p125) target = $region24
    $region23: #{discriminator_forward.4} parent=5 // pred_region
      // Predicated region
      $region25: #{discriminator_forward.4} parent=23 // pred_check
        %p128 = pneg %p29
      $region26: #{discriminator_forward.4} parent=23 // pred_check_branch
        %130 = sbr.rel (%p128) target = $region28
      $region27: #{discriminator_forward.4} parent=23 // pred_region
        %s131 = smul.u32 64, %s9
        %p132 = scmp.lt.s32.totalorder %s131, 255
        %s133 = scalar_select %p132, %s131, 255
        %s134 = smul.addr %s133, 4
        %s135 = scalar_lea.vmem %s0, %s134
        %s136 = smul.u32 64, %s9
      $region28: #{discriminator_forward.4} parent=23 // pred_fallthru
        _
    $region24: #{discriminator_forward.4} parent=5 // pred_fallthru
      _
    %p137 = scmp.le.s32.totalorder 1, %s9
    %p138 = scmp.lt.s32.totalorder %s9, 5
    %p139 = pnand %p137, %p138
    %p140 = pneg %p139
    // Predicated region
    $region29: #{discriminator_forward.4} parent=5 // pred_check
      _
    $region30: #{discriminator_forward.4} parent=5 // pred_check_branch
      %142 = sbr.rel (%p139) target = $region32
    $region31: #{discriminator_forward.4} parent=5 // pred_region
      %s143 = ssub.s32 %s9, 1
      %s144 = smul.u32 64, %s14
      %p145 = scmp.lt.s32.totalorder %s144, 255
      %s146 = scalar_select %p145, %s144, 255
      %s147 = smul.addr %s146, 4
      %s148 = scalar_lea.vmem %s0, %s147
      %p149 = pneg %p35
      %p150 = pneg %p32
      %p151 = pneg %p56
      %p152 = pneg %p53
      %p153 = pneg %p77
      %p154 = pneg %p74
      %p155 = pneg %p103
      %p156 = pneg %p100
      %s157 = smul.u32 64, %s14
      %p158 = scmp.lt.s32.totalorder %s157, 255
      %s159 = scalar_select %p158, %s157, 255
      %s160 = smul.addr %s159, 4
      %s161 = scalar_lea.vmem %s3, %s160
      %s162 = smul.u32 64, %s14
      %p163 = scmp.lt.s32.totalorder %s162, 255
      %s164 = scalar_select %p163, %s162, 255
      %s165 = smul.addr %s164, 4
      %s166 = scalar_lea.vmem %s0, %s165
      %s167 = smul.u32 64, %s14
      %s168 = smul.u32 64, %s14
      %p169 = scmp.lt.s32.totalorder %s168, 255
      %s170 = scalar_select %p169, %s168, 255
      %s171 = smul.addr %s170, 4
      %s172 = scalar_lea.vmem %s3, %s171
      %s173 = smul.u32 64, %s14
      %v175 = vld [vmem:[%s166] sm:$0xf]
      %v176 = vld [vmem:[%s166 + $0x4] sm:$0xf]
      %v177 = vld [vmem:[%s166 + $0x8] sm:$0xf]
      %v178 = vld [vmem:[%s166 + $0xc] sm:$0xf]
      %v179 = vld [vmem:[%s166 + $0x10] sm:$0xf]
      %v180 = vld [vmem:[%s166 + $0x14] sm:$0xf]
      %v181 = vld [vmem:[%s166 + $0x18] sm:$0xf]
      %v182 = vld [vmem:[%s166 + $0x1c] sm:$0xf]
      %v183 = vld [vmem:[%s166 + $0x20] sm:$0xf]
      %v184 = vld [vmem:[%s166 + $0x24] sm:$0xf]
      %v185 = vld [vmem:[%s166 + $0x28] sm:$0xf]
      %v186 = vld [vmem:[%s166 + $0x2c] sm:$0xf]
      %v187 = vld [vmem:[%s166 + $0x30] sm:$0xf]
      %v188 = vld [vmem:[%s166 + $0x34] sm:$0xf]
      %v189 = vld [vmem:[%s166 + $0x38] sm:$0xf]
      %v190 = vld [vmem:[%s166 + $0x3c] sm:$0xf]
      %v191 = vld [vmem:[%s166 + $0x40] sm:$0xf]
      %v192 = vld [vmem:[%s166 + $0x44] sm:$0xf]
      %v193 = vld [vmem:[%s166 + $0x48] sm:$0xf]
      %v194 = vld [vmem:[%s166 + $0x4c] sm:$0xf]
      %v195 = vld [vmem:[%s166 + $0x50] sm:$0xf]
      %v196 = vld [vmem:[%s166 + $0x54] sm:$0xf]
      %v197 = vld [vmem:[%s166 + $0x58] sm:$0xf]
      %v198 = vld [vmem:[%s166 + $0x5c] sm:$0xf]
      %v199 = vld [vmem:[%s166 + $0x60] sm:$0xf]
      %v200 = vld [vmem:[%s166 + $0x64] sm:$0xf]
      %v201 = vld [vmem:[%s166 + $0x68] sm:$0xf]
      %v202 = vld [vmem:[%s166 + $0x6c] sm:$0xf]
      %v203 = vld [vmem:[%s166 + $0x70] sm:$0xf]
      %v204 = vld [vmem:[%s166 + $0x74] sm:$0xf]
      %v205 = vld [vmem:[%s166 + $0x78] sm:$0xf]
      %v206 = vld [vmem:[%s166 + $0x7c] sm:$0xf]
      %v207 = vld [vmem:[%s166 + $0x80] sm:$0xf]
      %v208 = vld [vmem:[%s166 + $0x84] sm:$0xf]
      %v209 = vld [vmem:[%s166 + $0x88] sm:$0xf]
      %v210 = vld [vmem:[%s166 + $0x8c] sm:$0xf]
      %v211 = vld [vmem:[%s166 + $0x90] sm:$0xf]
      %v212 = vld [vmem:[%s166 + $0x94] sm:$0xf]
      %v213 = vld [vmem:[%s166 + $0x98] sm:$0xf]
      %v214 = vld [vmem:[%s166 + $0x9c] sm:$0xf]
      %v215 = vld [vmem:[%s166 + $0xa0] sm:$0xf]
      %v216 = vld [vmem:[%s166 + $0xa4] sm:$0xf]
      %v217 = vld [vmem:[%s166 + $0xa8] sm:$0xf]
      %v218 = vld [vmem:[%s166 + $0xac] sm:$0xf]
      %v219 = vld [vmem:[%s166 + $0xb0] sm:$0xf]
      %v220 = vld [vmem:[%s166 + $0xb4] sm:$0xf]
      %v221 = vld [vmem:[%s166 + $0xb8] sm:$0xf]
      %v222 = vld [vmem:[%s166 + $0xbc] sm:$0xf]
      %v223 = vld [vmem:[%s166 + $0xc0] sm:$0xf]
      %v224 = vld [vmem:[%s166 + $0xc4] sm:$0xf]
      %v225 = vld [vmem:[%s166 + $0xc8] sm:$0xf]
      %v226 = vld [vmem:[%s166 + $0xcc] sm:$0xf]
      %v227 = vld [vmem:[%s166 + $0xd0] sm:$0xf]
      %v228 = vld [vmem:[%s166 + $0xd4] sm:$0xf]
      %v229 = vld [vmem:[%s166 + $0xd8] sm:$0xf]
      %v230 = vld [vmem:[%s166 + $0xdc] sm:$0xf]
      %v231 = vld [vmem:[%s166 + $0xe0] sm:$0xf]
      %v232 = vld [vmem:[%s166 + $0xe4] sm:$0xf]
      %v233 = vld [vmem:[%s166 + $0xe8] sm:$0xf]
      %v234 = vld [vmem:[%s166 + $0xec] sm:$0xf]
      %v235 = vld [vmem:[%s166 + $0xf0] sm:$0xf]
      %v236 = vld [vmem:[%s166 + $0xf4] sm:$0xf]
      %v237 = vld [vmem:[%s166 + $0xf8] sm:$0xf]
      %v238 = vld [vmem:[%s166 + $0xfc] sm:$0xf]
      %v239 = vld [vmem:[%s1] sm:$0xf]
      %v240 = vld [vmem:[%s1 + $0x4] sm:$0xf]
      %v241 = vld [vmem:[%s2] sm:$0x1]
      %v243 = vperm.slane %v241, 0
      %v309 = vunpack.c.l.b16 %v175
      %v310 = vunpack.c.l.b16 %v176
      %v311 = vunpack.c.l.b16 %v177
      %v312 = vunpack.c.l.b16 %v178
      %v313 = vunpack.c.l.b16 %v179
      %v314 = vunpack.c.l.b16 %v180
      %v315 = vunpack.c.l.b16 %v181
      %v316 = vunpack.c.l.b16 %v182
      %v317 = vunpack.c.l.b16 %v183
      %v318 = vunpack.c.l.b16 %v184
      %v319 = vunpack.c.l.b16 %v185
      %v320 = vunpack.c.l.b16 %v186
      %v321 = vunpack.c.l.b16 %v187
      %v322 = vunpack.c.l.b16 %v188
      %v323 = vunpack.c.l.b16 %v189
      %v324 = vunpack.c.l.b16 %v190
      %v325 = vunpack.c.l.b16 %v191
      %v326 = vunpack.c.l.b16 %v192
      %v327 = vunpack.c.l.b16 %v193
      %v328 = vunpack.c.l.b16 %v194
      %v329 = vunpack.c.l.b16 %v195
      %v330 = vunpack.c.l.b16 %v196
      %v331 = vunpack.c.l.b16 %v197
      %v332 = vunpack.c.l.b16 %v198
      %v333 = vunpack.c.l.b16 %v199
      %v334 = vunpack.c.l.b16 %v200
      %v335 = vunpack.c.l.b16 %v201
      %v336 = vunpack.c.l.b16 %v202
      %v337 = vunpack.c.l.b16 %v203
      %v338 = vunpack.c.l.b16 %v204
      %v339 = vunpack.c.l.b16 %v205
      %v340 = vunpack.c.l.b16 %v206
      %v341 = vunpack.c.l.b16 %v207
      %v342 = vunpack.c.l.b16 %v208
      %v343 = vunpack.c.l.b16 %v209
      %v344 = vunpack.c.l.b16 %v210
      %v345 = vunpack.c.l.b16 %v211
      %v346 = vunpack.c.l.b16 %v212
      %v347 = vunpack.c.l.b16 %v213
      %v348 = vunpack.c.l.b16 %v214
      %v349 = vunpack.c.l.b16 %v215
      %v350 = vunpack.c.l.b16 %v216
      %v351 = vunpack.c.l.b16 %v217
      %v352 = vunpack.c.l.b16 %v218
      %v353 = vunpack.c.l.b16 %v219
      %v354 = vunpack.c.l.b16 %v220
      %v355 = vunpack.c.l.b16 %v221
      %v356 = vunpack.c.l.b16 %v222
      %v357 = vunpack.c.l.b16 %v223
      %v358 = vunpack.c.l.b16 %v224
      %v359 = vunpack.c.l.b16 %v225
      %v360 = vunpack.c.l.b16 %v226
      %v361 = vunpack.c.l.b16 %v227
      %v362 = vunpack.c.l.b16 %v228
      %v363 = vunpack.c.l.b16 %v229
      %v364 = vunpack.c.l.b16 %v230
      %v365 = vunpack.c.l.b16 %v231
      %v366 = vunpack.c.l.b16 %v232
      %v367 = vunpack.c.l.b16 %v233
      %v368 = vunpack.c.l.b16 %v234
      %v369 = vunpack.c.l.b16 %v235
      %v370 = vunpack.c.l.b16 %v236
      %v371 = vunpack.c.l.b16 %v237
      %v372 = vunpack.c.l.b16 %v238
      %v373 = vpack.c.b16 %v310, %v309
      %v374 = vpack.c.b16 %v312, %v311
      %v375 = vpack.c.b16 %v314, %v313
      %v376 = vpack.c.b16 %v316, %v315
      %v377 = vpack.c.b16 %v318, %v317
      %v378 = vpack.c.b16 %v320, %v319
      %v379 = vpack.c.b16 %v322, %v321
      %v380 = vpack.c.b16 %v324, %v323
      %v381 = vpack.c.b16 %v326, %v325
      %v382 = vpack.c.b16 %v328, %v327
      %v383 = vpack.c.b16 %v330, %v329
      %v384 = vpack.c.b16 %v332, %v331
      %v385 = vpack.c.b16 %v334, %v333
      %v386 = vpack.c.b16 %v336, %v335
      %v387 = vpack.c.b16 %v338, %v337
      %v388 = vpack.c.b16 %v340, %v339
      %v389 = vpack.c.b16 %v342, %v341
      %v390 = vpack.c.b16 %v344, %v343
      %v391 = vpack.c.b16 %v346, %v345
      %v392 = vpack.c.b16 %v348, %v347
      %v393 = vpack.c.b16 %v350, %v349
      %v394 = vpack.c.b16 %v352, %v351
      %v395 = vpack.c.b16 %v354, %v353
      %v396 = vpack.c.b16 %v356, %v355
      %v397 = vpack.c.b16 %v358, %v357
      %v398 = vpack.c.b16 %v360, %v359
      %v399 = vpack.c.b16 %v362, %v361
      %v400 = vpack.c.b16 %v364, %v363
      %v401 = vpack.c.b16 %v366, %v365
      %v402 = vpack.c.b16 %v368, %v367
      %v403 = vpack.c.b16 %v370, %v369
      %v404 = vpack.c.b16 %v372, %v371
      %v407 = vunpack.c.l.b16 %v239
      %v408 = vunpack.c.l.b16 %v240
      %v409 = vpack.c.b16 %v408, %v407
      %vm411 = vcmask 130048
      %v413 = vsel %vm411, %v373, 0
      %v416 = vsel %vm411, %v374, 0
      %v419 = vsel %vm411, %v375, 0
      %v422 = vsel %vm411, %v376, 0
      %v425 = vsel %vm411, %v377, 0
      %v428 = vsel %vm411, %v378, 0
      %v431 = vsel %vm411, %v379, 0
      %v434 = vsel %vm411, %v380, 0
      %v437 = vsel %vm411, %v381, 0
      %v440 = vsel %vm411, %v382, 0
      %v443 = vsel %vm411, %v383, 0
      %v446 = vsel %vm411, %v384, 0
      %v449 = vsel %vm411, %v385, 0
      %v452 = vsel %vm411, %v386, 0
      %v455 = vsel %vm411, %v387, 0
      %v458 = vsel %vm411, %v388, 0
      %v461 = vsel %vm411, %v389, 0
      %v464 = vsel %vm411, %v390, 0
      %v467 = vsel %vm411, %v391, 0
      %v470 = vsel %vm411, %v392, 0
      %v473 = vsel %vm411, %v393, 0
      %v476 = vsel %vm411, %v394, 0
      %v479 = vsel %vm411, %v395, 0
      %v482 = vsel %vm411, %v396, 0
      %v485 = vsel %vm411, %v397, 0
      %v488 = vsel %vm411, %v398, 0
      %v491 = vsel %vm411, %v399, 0
      %v494 = vsel %vm411, %v400, 0
      %v497 = vsel %vm411, %v401, 0
      %v500 = vsel %vm411, %v402, 0
      %v503 = vsel %vm411, %v403, 0
      %v506 = vsel %vm411, %v404, 0
      %508 = vmatpush.bf16.msra.mxu0 0
      %509 = vmatpush.bf16.msra.mxu0 0
      %510 = vmatpush.bf16.msra.mxu0 0
      %511 = vmatpush.bf16.msra.mxu0 0
      %512 = vmatpush.bf16.msra.mxu0 0
      %513 = vmatpush.bf16.msra.mxu0 0
      %514 = vmatpush.bf16.msra.mxu0 0
      %515 = vmatpush.bf16.msra.mxu0 %v409
      %516 = vmatmul.bf16.gmra.mxu0 %v413
      %v517 = vpop.f32.mrf.mxu0
      %v518 = vadd.f32 %v243, %v517
      %v519 = vpop.f32.mrf.mxu0
      %v520 = vadd.f32 %v243, %v519
      %521 = vmatmul.bf16.gmra.mxu0 %v416
      %v522 = vpop.f32.mrf.mxu0
      %v523 = vadd.f32 %v243, %v522
      %v524 = vpop.f32.mrf.mxu0
      %v525 = vadd.f32 %v243, %v524
      %526 = vmatmul.bf16.gmra.mxu0 %v419
      %v527 = vpop.f32.mrf.mxu0
      %v528 = vadd.f32 %v243, %v527
      %v529 = vpop.f32.mrf.mxu0
      %v530 = vadd.f32 %v243, %v529
      %531 = vmatmul.bf16.gmra.mxu0 %v422
      %v532 = vpop.f32.mrf.mxu0
      %v533 = vadd.f32 %v243, %v532
      %v534 = vpop.f32.mrf.mxu0
      %v535 = vadd.f32 %v243, %v534
      %536 = vmatmul.bf16.gmra.mxu0 %v425
      %v537 = vpop.f32.mrf.mxu0
      %v538 = vadd.f32 %v243, %v537
      %v539 = vpop.f32.mrf.mxu0
      %v540 = vadd.f32 %v243, %v539
      %541 = vmatmul.bf16.gmra.mxu0 %v428
      %v542 = vpop.f32.mrf.mxu0
      %v543 = vadd.f32 %v243, %v542
      %v544 = vpop.f32.mrf.mxu0
      %v545 = vadd.f32 %v243, %v544
      %546 = vmatmul.bf16.gmra.mxu0 %v431
      %v547 = vpop.f32.mrf.mxu0
      %v548 = vadd.f32 %v243, %v547
      %v549 = vpop.f32.mrf.mxu0
      %v550 = vadd.f32 %v243, %v549
      %551 = vmatmul.bf16.gmra.mxu0 %v434
      %v552 = vpop.f32.mrf.mxu0
      %v553 = vadd.f32 %v243, %v552
      %v554 = vpop.f32.mrf.mxu0
      %v555 = vadd.f32 %v243, %v554
      %556 = vmatmul.bf16.gmra.mxu0 %v437
      %v557 = vpop.f32.mrf.mxu0
      %v558 = vadd.f32 %v243, %v557
      %v559 = vpop.f32.mrf.mxu0
      %v560 = vadd.f32 %v243, %v559
      %561 = vmatmul.bf16.gmra.mxu0 %v440
      %v562 = vpop.f32.mrf.mxu0
      %v563 = vadd.f32 %v243, %v562
      %v564 = vpop.f32.mrf.mxu0
      %v565 = vadd.f32 %v243, %v564
      %566 = vmatmul.bf16.gmra.mxu0 %v443
      %v567 = vpop.f32.mrf.mxu0
      %v568 = vadd.f32 %v243, %v567
      %v569 = vpop.f32.mrf.mxu0
      %v570 = vadd.f32 %v243, %v569
      %571 = vmatmul.bf16.gmra.mxu0 %v446
      %v572 = vpop.f32.mrf.mxu0
      %v573 = vadd.f32 %v243, %v572
      %v574 = vpop.f32.mrf.mxu0
      %v575 = vadd.f32 %v243, %v574
      %576 = vmatmul.bf16.gmra.mxu0 %v449
      %v577 = vpop.f32.mrf.mxu0
      %v578 = vadd.f32 %v243, %v577
      %v579 = vpop.f32.mrf.mxu0
      %v580 = vadd.f32 %v243, %v579
      %581 = vmatmul.bf16.gmra.mxu0 %v452
      %v582 = vpop.f32.mrf.mxu0
      %v583 = vadd.f32 %v243, %v582
      %v584 = vpop.f32.mrf.mxu0
      %v585 = vadd.f32 %v243, %v584
      %586 = vmatmul.bf16.gmra.mxu0 %v455
      %v587 = vpop.f32.mrf.mxu0
      %v588 = vadd.f32 %v243, %v587
      %v589 = vpop.f32.mrf.mxu0
      %v590 = vadd.f32 %v243, %v589
      %591 = vmatmul.bf16.gmra.mxu0 %v458
      %v592 = vpop.f32.mrf.mxu0
      %v593 = vadd.f32 %v243, %v592
      %v594 = vpop.f32.mrf.mxu0
      %v595 = vadd.f32 %v243, %v594
      %596 = vmatmul.bf16.gmra.mxu0 %v461
      %v597 = vpop.f32.mrf.mxu0
      %v598 = vadd.f32 %v243, %v597
      %v599 = vpop.f32.mrf.mxu0
      %v600 = vadd.f32 %v243, %v599
      %601 = vmatmul.bf16.gmra.mxu0 %v464
      %v602 = vpop.f32.mrf.mxu0
      %v603 = vadd.f32 %v243, %v602
      %v604 = vpop.f32.mrf.mxu0
      %v605 = vadd.f32 %v243, %v604
      %606 = vmatmul.bf16.gmra.mxu0 %v467
      %v607 = vpop.f32.mrf.mxu0
      %v608 = vadd.f32 %v243, %v607
      %v609 = vpop.f32.mrf.mxu0
      %v610 = vadd.f32 %v243, %v609
      %611 = vmatmul.bf16.gmra.mxu0 %v470
      %v612 = vpop.f32.mrf.mxu0
      %v613 = vadd.f32 %v243, %v612
      %v614 = vpop.f32.mrf.mxu0
      %v615 = vadd.f32 %v243, %v614
      %616 = vmatmul.bf16.gmra.mxu0 %v473
      %v617 = vpop.f32.mrf.mxu0
      %v618 = vadd.f32 %v243, %v617
      %v619 = vpop.f32.mrf.mxu0
      %v620 = vadd.f32 %v243, %v619
      %621 = vmatmul.bf16.gmra.mxu0 %v476
      %v622 = vpop.f32.mrf.mxu0
      %v623 = vadd.f32 %v243, %v622
      %v624 = vpop.f32.mrf.mxu0
      %v625 = vadd.f32 %v243, %v624
      %626 = vmatmul.bf16.gmra.mxu0 %v479
      %v627 = vpop.f32.mrf.mxu0
      %v628 = vadd.f32 %v243, %v627
      %v629 = vpop.f32.mrf.mxu0
      %v630 = vadd.f32 %v243, %v629
      %631 = vmatmul.bf16.gmra.mxu0 %v482
      %v632 = vpop.f32.mrf.mxu0
      %v633 = vadd.f32 %v243, %v632
      %v634 = vpop.f32.mrf.mxu0
      %v635 = vadd.f32 %v243, %v634
      %636 = vmatmul.bf16.gmra.mxu0 %v485
      %v637 = vpop.f32.mrf.mxu0
      %v638 = vadd.f32 %v243, %v637
      %v639 = vpop.f32.mrf.mxu0
      %v640 = vadd.f32 %v243, %v639
      %641 = vmatmul.bf16.gmra.mxu0 %v488
      %v642 = vpop.f32.mrf.mxu0
      %v643 = vadd.f32 %v243, %v642
      %v644 = vpop.f32.mrf.mxu0
      %v645 = vadd.f32 %v243, %v644
      %646 = vmatmul.bf16.gmra.mxu0 %v491
      %v647 = vpop.f32.mrf.mxu0
      %v648 = vadd.f32 %v243, %v647
      %v649 = vpop.f32.mrf.mxu0
      %v650 = vadd.f32 %v243, %v649
      %651 = vmatmul.bf16.gmra.mxu0 %v494
      %v652 = vpop.f32.mrf.mxu0
      %v653 = vadd.f32 %v243, %v652
      %v654 = vpop.f32.mrf.mxu0
      %v655 = vadd.f32 %v243, %v654
      %656 = vmatmul.bf16.gmra.mxu0 %v497
      %v657 = vpop.f32.mrf.mxu0
      %v658 = vadd.f32 %v243, %v657
      %v659 = vpop.f32.mrf.mxu0
      %v660 = vadd.f32 %v243, %v659
      %661 = vmatmul.bf16.gmra.mxu0 %v500
      %v662 = vpop.f32.mrf.mxu0
      %v663 = vadd.f32 %v243, %v662
      %v664 = vpop.f32.mrf.mxu0
      %v665 = vadd.f32 %v243, %v664
      %666 = vmatmul.bf16.gmra.mxu0 %v503
      %v667 = vpop.f32.mrf.mxu0
      %v668 = vadd.f32 %v243, %v667
      %v669 = vpop.f32.mrf.mxu0
      %v670 = vadd.f32 %v243, %v669
      %671 = vmatmul.bf16.gmra.mxu0 %v506
      %v672 = vpop.f32.mrf.mxu0
      %v673 = vadd.f32 %v243, %v672
      %v674 = vpop.f32.mrf.mxu0
      %v675 = vadd.f32 %v243, %v674
      %676 = vdwg.mxu0
      %v677 = vpack.c.bf16 %v518, %v518
      %v678 = vpack.c.bf16 %v520, %v520
      %v679 = vpack.c.bf16 %v523, %v523
      %v680 = vpack.c.bf16 %v525, %v525
      %v681 = vpack.c.bf16 %v528, %v528
      %v682 = vpack.c.bf16 %v530, %v530
      %v683 = vpack.c.bf16 %v533, %v533
      %v684 = vpack.c.bf16 %v535, %v535
      %v685 = vpack.c.bf16 %v538, %v538
      %v686 = vpack.c.bf16 %v540, %v540
      %v687 = vpack.c.bf16 %v543, %v543
      %v688 = vpack.c.bf16 %v545, %v545
      %v689 = vpack.c.bf16 %v548, %v548
      %v690 = vpack.c.bf16 %v550, %v550
      %v691 = vpack.c.bf16 %v553, %v553
      %v692 = vpack.c.bf16 %v555, %v555
      %v693 = vpack.c.bf16 %v558, %v558
      %v694 = vpack.c.bf16 %v560, %v560
      %v695 = vpack.c.bf16 %v563, %v563
      %v696 = vpack.c.bf16 %v565, %v565
      %v697 = vpack.c.bf16 %v568, %v568
      %v698 = vpack.c.bf16 %v570, %v570
      %v699 = vpack.c.bf16 %v573, %v573
      %v700 = vpack.c.bf16 %v575, %v575
      %v701 = vpack.c.bf16 %v578, %v578
      %v702 = vpack.c.bf16 %v580, %v580
      %v703 = vpack.c.bf16 %v583, %v583
      %v704 = vpack.c.bf16 %v585, %v585
      %v705 = vpack.c.bf16 %v588, %v588
      %v706 = vpack.c.bf16 %v590, %v590
      %v707 = vpack.c.bf16 %v593, %v593
      %v708 = vpack.c.bf16 %v595, %v595
      %v709 = vpack.c.bf16 %v598, %v598
      %v710 = vpack.c.bf16 %v600, %v600
      %v711 = vpack.c.bf16 %v603, %v603
      %v712 = vpack.c.bf16 %v605, %v605
      %v713 = vpack.c.bf16 %v608, %v608
      %v714 = vpack.c.bf16 %v610, %v610
      %v715 = vpack.c.bf16 %v613, %v613
      %v716 = vpack.c.bf16 %v615, %v615
      %v717 = vpack.c.bf16 %v618, %v618
      %v718 = vpack.c.bf16 %v620, %v620
      %v719 = vpack.c.bf16 %v623, %v623
      %v720 = vpack.c.bf16 %v625, %v625
      %v721 = vpack.c.bf16 %v628, %v628
      %v722 = vpack.c.bf16 %v630, %v630
      %v723 = vpack.c.bf16 %v633, %v633
      %v724 = vpack.c.bf16 %v635, %v635
      %v725 = vpack.c.bf16 %v638, %v638
      %v726 = vpack.c.bf16 %v640, %v640
      %v727 = vpack.c.bf16 %v643, %v643
      %v728 = vpack.c.bf16 %v645, %v645
      %v729 = vpack.c.bf16 %v648, %v648
      %v730 = vpack.c.bf16 %v650, %v650
      %v731 = vpack.c.bf16 %v653, %v653
      %v732 = vpack.c.bf16 %v655, %v655
      %v733 = vpack.c.bf16 %v658, %v658
      %v734 = vpack.c.bf16 %v660, %v660
      %v735 = vpack.c.bf16 %v663, %v663
      %v736 = vpack.c.bf16 %v665, %v665
      %v737 = vpack.c.bf16 %v668, %v668
      %v738 = vpack.c.bf16 %v670, %v670
      %v739 = vpack.c.bf16 %v673, %v673
      %v740 = vpack.c.bf16 %v675, %v675
      %741 = vst [vmem:[%s172] sm:$0xf] %v677
      %742 = vst [vmem:[%s172 + $0x4] sm:$0xf] %v678
      %743 = vst [vmem:[%s172 + $0x8] sm:$0xf] %v679
      %744 = vst [vmem:[%s172 + $0xc] sm:$0xf] %v680
      %745 = vst [vmem:[%s172 + $0x10] sm:$0xf] %v681
      %746 = vst [vmem:[%s172 + $0x14] sm:$0xf] %v682
      %747 = vst [vmem:[%s172 + $0x18] sm:$0xf] %v683
      %748 = vst [vmem:[%s172 + $0x1c] sm:$0xf] %v684
      %749 = vst [vmem:[%s172 + $0x20] sm:$0xf] %v685
      %750 = vst [vmem:[%s172 + $0x24] sm:$0xf] %v686
      %751 = vst [vmem:[%s172 + $0x28] sm:$0xf] %v687
      %752 = vst [vmem:[%s172 + $0x2c] sm:$0xf] %v688
      %753 = vst [vmem:[%s172 + $0x30] sm:$0xf] %v689
      %754 = vst [vmem:[%s172 + $0x34] sm:$0xf] %v690
      %755 = vst [vmem:[%s172 + $0x38] sm:$0xf] %v691
      %756 = vst [vmem:[%s172 + $0x3c] sm:$0xf] %v692
      %757 = vst [vmem:[%s172 + $0x40] sm:$0xf] %v693
      %758 = vst [vmem:[%s172 + $0x44] sm:$0xf] %v694
      %759 = vst [vmem:[%s172 + $0x48] sm:$0xf] %v695
      %760 = vst [vmem:[%s172 + $0x4c] sm:$0xf] %v696
      %761 = vst [vmem:[%s172 + $0x50] sm:$0xf] %v697
      %762 = vst [vmem:[%s172 + $0x54] sm:$0xf] %v698
      %763 = vst [vmem:[%s172 + $0x58] sm:$0xf] %v699
      %764 = vst [vmem:[%s172 + $0x5c] sm:$0xf] %v700
      %765 = vst [vmem:[%s172 + $0x60] sm:$0xf] %v701
      %766 = vst [vmem:[%s172 + $0x64] sm:$0xf] %v702
      %767 = vst [vmem:[%s172 + $0x68] sm:$0xf] %v703
      %768 = vst [vmem:[%s172 + $0x6c] sm:$0xf] %v704
      %769 = vst [vmem:[%s172 + $0x70] sm:$0xf] %v705
      %770 = vst [vmem:[%s172 + $0x74] sm:$0xf] %v706
      %771 = vst [vmem:[%s172 + $0x78] sm:$0xf] %v707
      %772 = vst [vmem:[%s172 + $0x7c] sm:$0xf] %v708
      %773 = vst [vmem:[%s172 + $0x80] sm:$0xf] %v709
      %774 = vst [vmem:[%s172 + $0x84] sm:$0xf] %v710
      %775 = vst [vmem:[%s172 + $0x88] sm:$0xf] %v711
      %776 = vst [vmem:[%s172 + $0x8c] sm:$0xf] %v712
      %777 = vst [vmem:[%s172 + $0x90] sm:$0xf] %v713
      %778 = vst [vmem:[%s172 + $0x94] sm:$0xf] %v714
      %779 = vst [vmem:[%s172 + $0x98] sm:$0xf] %v715
      %780 = vst [vmem:[%s172 + $0x9c] sm:$0xf] %v716
      %781 = vst [vmem:[%s172 + $0xa0] sm:$0xf] %v717
      %782 = vst [vmem:[%s172 + $0xa4] sm:$0xf] %v718
      %783 = vst [vmem:[%s172 + $0xa8] sm:$0xf] %v719
      %784 = vst [vmem:[%s172 + $0xac] sm:$0xf] %v720
      %785 = vst [vmem:[%s172 + $0xb0] sm:$0xf] %v721
      %786 = vst [vmem:[%s172 + $0xb4] sm:$0xf] %v722
      %787 = vst [vmem:[%s172 + $0xb8] sm:$0xf] %v723
      %788 = vst [vmem:[%s172 + $0xbc] sm:$0xf] %v724
      %789 = vst [vmem:[%s172 + $0xc0] sm:$0xf] %v725
      %790 = vst [vmem:[%s172 + $0xc4] sm:$0xf] %v726
      %791 = vst [vmem:[%s172 + $0xc8] sm:$0xf] %v727
      %792 = vst [vmem:[%s172 + $0xcc] sm:$0xf] %v728
      %793 = vst [vmem:[%s172 + $0xd0] sm:$0xf] %v729
      %794 = vst [vmem:[%s172 + $0xd4] sm:$0xf] %v730
      %795 = vst [vmem:[%s172 + $0xd8] sm:$0xf] %v731
      %796 = vst [vmem:[%s172 + $0xdc] sm:$0xf] %v732
      %797 = vst [vmem:[%s172 + $0xe0] sm:$0xf] %v733
      %798 = vst [vmem:[%s172 + $0xe4] sm:$0xf] %v734
      %799 = vst [vmem:[%s172 + $0xe8] sm:$0xf] %v735
      %800 = vst [vmem:[%s172 + $0xec] sm:$0xf] %v736
      %801 = vst [vmem:[%s172 + $0xf0] sm:$0xf] %v737
      %802 = vst [vmem:[%s172 + $0xf4] sm:$0xf] %v738
      %803 = vst [vmem:[%s172 + $0xf8] sm:$0xf] %v739
      %804 = vst [vmem:[%s172 + $0xfc] sm:$0xf] %v740
      %s805 = smul.u32 64, %s14
      %p806 = scmp.lt.s32.totalorder %s805, 255
      %s807 = scalar_select %p806, %s805, 255
      %s808 = smul.addr %s807, 4
      %s809 = scalar_lea.vmem %s3, %s808
      // Predicated region
      $region33: #{discriminator_forward.4} parent=31 // pred_check
        %p810 = pneg %p100
      $region34: #{discriminator_forward.4} parent=31 // pred_check_branch
        %812 = sbr.rel (%p810) target = $region36
      $region35: #{discriminator_forward.4} parent=31 // pred_region
        %s813 = smul.u32 64, %s14
      $region36: #{discriminator_forward.4} parent=31 // pred_fallthru
        _
    $region32: #{discriminator_forward.4} parent=5 // pred_fallthru
      _
    %p814 = scmp.le.s32.totalorder 2, %s9
    // Predicated region
    $region37: #{discriminator_forward.4} parent=5 // pred_check
      %p815 = pneg %p814
    $region38: #{discriminator_forward.4} parent=5 // pred_check_branch
      %817 = sbr.rel (%p815) target = $region40
    $region39: #{discriminator_forward.4} parent=5 // pred_region
      %s818 = ssub.s32 %s9, 2
      // Predicated region
      $region41: #{discriminator_forward.4} parent=39 // pred_check
        %p819 = pneg %p106
      $region42: #{discriminator_forward.4} parent=39 // pred_check_branch
        %821 = sbr.rel (%p819) target = $region44
      $region43: #{discriminator_forward.4} parent=39 // pred_region
        %s822 = smul.u32 64, %s15
        %p823 = scmp.lt.s32.totalorder %s822, 255
        %s824 = scalar_select %p823, %s822, 255
        %s825 = smul.addr %s824, 4
        %s826 = scalar_lea.vmem %s3, %s825
      $region44: #{discriminator_forward.4} parent=39 // pred_fallthru
        _
    $region40: #{discriminator_forward.4} parent=5 // pred_fallthru
      _
  $region6: #{discriminator_forward.4} parent=0 // loop_footer
    %s13 = sadd.s32 1, %s9
  $region7: #{discriminator_forward.4} parent=0 // loop_footer_branch
    %8 = sbr.rel target = $region3
  $region8: #{discriminator_forward.4} parent=0 // loop_exit
    _

// kernel: discriminator_forward.5
$region0: #{discriminator_forward.5}
  #allocation0 [shape = 'u32[]', space=smem, size = 0x4, offset = 0x4, fixed_abs, tag = 'smem constant byte address 0x4 - core index']
  #allocation1 [shape = 'u32[72,128]{1,0:T(1,128)}', space=vmem, size = 0x9000, scoped, tag = 'internal scratch']
  %s0 = inlined_call_operand.vmem [shape: bf16[512,128], index: 0, kind: input, shape index: {}]
  %s1 = inlined_call_operand.vmem [shape: f32[1,128], index: 1, kind: input, shape index: {}]
  %s2 = inlined_call_operand.vmem [shape: f32[1,128], index: 2, kind: input, shape index: {}]
  %s3 = inlined_call_operand.vmem [shape: bf16[128,128], index: 3, kind: input, shape index: {}]
  %s4 = inlined_call_operand.vmem [shape: f32[1,128], index: 4, kind: input, shape index: {}]
  %s5 = inlined_call_operand.vmem [shape: bf16[512,128], index: 5, kind: output, shape index: {0}]
  %s6 = inlined_call_operand.vmem [shape: f32[2,8,128], index: 6, kind: output, shape index: {1}]
  %7 = xla_tuple %s5, %s6
  %s8 = sld [smem:[#allocation0]]
  $region61: #{discriminator_forward.5} parent=0
    _
  %s10 = ssub.s32 1, %s8
  %s11 = scalar_select 0, %s10, %s8
  loop: start=0, step=1, limit=4
  $region2: #{discriminator_forward.5} parent=0 // loop_pre_header
    _
  $region3: #{discriminator_forward.5} parent=0 // loop_header
    %s13 = sphi 0, %s17
    %p14 = scmp.ge.s32.totalorder %s13, 4
    %s23 = sphi 0, %s25
    %s26 = sphi 0, %s23
    %s27 = sphi 0, %s26
    %s43 = sphi 0, %s27
    %s47 = sphi 0, %s47
    %s49 = sphi 0, %s47
    %s50 = sphi 0, %s49
    %s64 = sphi 0, %s50
    %s68 = sphi 0, %s68
    %s70 = sphi 0, %s68
    %s71 = sphi 0, %s70
    %s85 = sphi 0, %s71
    %s89 = sphi 0, %s89
    %s91 = sphi 0, %s89
    %s92 = sphi 0, %s91
    %s106 = sphi 0, %s92
    %s110 = sphi 0, %s110
    %s112 = sphi 0, %s110
    %s113 = sphi 0, %s112
    %s127 = sphi 0, %s113
    %s133 = sphi 0, %s135
    %s136 = sphi 0, %s133
    %s137 = sphi 0, %s136
    %s153 = sphi 0, %s137
    %s159 = sphi 0, %s161
    %s162 = sphi 0, %s159
    %s163 = sphi 0, %s162
    %s179 = sphi 0, %s163
  $region4: #{discriminator_forward.5} parent=0 // loop_header_branch
    %16 = sbr.rel (%p14) target = $region8
  $region5: #{discriminator_forward.5} parent=0 // loop_body
    %s18 = ssub.s32 %s13, 1
    %s19 = ssub.s32 %s13, 2
    %s20 = sadd.s32 %s13, 1
    %s21 = ssub.s32 %s13, %s20
    %p22 = scmp.eq.s32.totalorder %s21, 0
    %s24 = sadd.s32 %s23, 1
    %s25 = scalar_select %p22, %s23, %s24
    %p28 = pneg %p22
    %p29 = scmp.eq.s32.totalorder %s13, 1
    %p30 = por %p28, %p29
    %p31 = scmp.ne.s32.totalorder %s23, %s26
    %p32 = scmp.eq.s32.totalorder %s13, 0
    %p33 = por %p31, %p32
    %p34 = scmp.ne.s32.totalorder %s23, %s26
    %p35 = scmp.eq.s32.totalorder %s18, 1
    %p36 = por %p34, %p35
    %p37 = scmp.ne.s32.totalorder %s26, %s27
    %p38 = scmp.eq.s32.totalorder %s18, 0
    %p39 = por %p37, %p38
    %p40 = scmp.ne.s32.totalorder %s26, %s27
    %p41 = scmp.eq.s32.totalorder %s19, 1
    %p42 = por %p40, %p41
    %p44 = scmp.ne.s32.totalorder %s27, %s43
    %p45 = scmp.eq.s32.totalorder %s19, 0
    %p46 = por %p44, %p45
    %s48 = sadd.s32 %s47, 1
    %p51 = scmp.eq.s32.totalorder %s13, 1
    %p52 = scmp.ne.s32.totalorder %s47, %s49
    %p53 = scmp.eq.s32.totalorder %s13, 0
    %p54 = por %p52, %p53
    %p55 = scmp.ne.s32.totalorder %s47, %s49
    %p56 = scmp.eq.s32.totalorder %s18, 1
    %p57 = por %p55, %p56
    %p58 = scmp.ne.s32.totalorder %s49, %s50
    %p59 = scmp.eq.s32.totalorder %s18, 0
    %p60 = por %p58, %p59
    %p61 = scmp.ne.s32.totalorder %s49, %s50
    %p62 = scmp.eq.s32.totalorder %s19, 1
    %p63 = por %p61, %p62
    %p65 = scmp.ne.s32.totalorder %s50, %s64
    %p66 = scmp.eq.s32.totalorder %s19, 0
    %p67 = por %p65, %p66
    %s69 = sadd.s32 %s68, 1
    %p72 = scmp.eq.s32.totalorder %s13, 1
    %p73 = scmp.ne.s32.totalorder %s68, %s70
    %p74 = scmp.eq.s32.totalorder %s13, 0
    %p75 = por %p73, %p74
    %p76 = scmp.ne.s32.totalorder %s68, %s70
    %p77 = scmp.eq.s32.totalorder %s18, 1
    %p78 = por %p76, %p77
    %p79 = scmp.ne.s32.totalorder %s70, %s71
    %p80 = scmp.eq.s32.totalorder %s18, 0
    %p81 = por %p79, %p80
    %p82 = scmp.ne.s32.totalorder %s70, %s71
    %p83 = scmp.eq.s32.totalorder %s19, 1
    %p84 = por %p82, %p83
    %p86 = scmp.ne.s32.totalorder %s71, %s85
    %p87 = scmp.eq.s32.totalorder %s19, 0
    %p88 = por %p86, %p87
    %s90 = sadd.s32 %s89, 1
    %p93 = scmp.eq.s32.totalorder %s13, 1
    %p94 = scmp.ne.s32.totalorder %s89, %s91
    %p95 = scmp.eq.s32.totalorder %s13, 0
    %p96 = por %p94, %p95
    %p97 = scmp.ne.s32.totalorder %s89, %s91
    %p98 = scmp.eq.s32.totalorder %s18, 1
    %p99 = por %p97, %p98
    %p100 = scmp.ne.s32.totalorder %s91, %s92
    %p101 = scmp.eq.s32.totalorder %s18, 0
    %p102 = por %p100, %p101
    %p103 = scmp.ne.s32.totalorder %s91, %s92
    %p104 = scmp.eq.s32.totalorder %s19, 1
    %p105 = por %p103, %p104
    %p107 = scmp.ne.s32.totalorder %s92, %s106
    %p108 = scmp.eq.s32.totalorder %s19, 0
    %p109 = por %p107, %p108
    %s111 = sadd.s32 %s110, 1
    %p114 = scmp.eq.s32.totalorder %s13, 1
    %p115 = scmp.ne.s32.totalorder %s110, %s112
    %p116 = scmp.eq.s32.totalorder %s13, 0
    %p117 = por %p115, %p116
    %p118 = scmp.ne.s32.totalorder %s110, %s112
    %p119 = scmp.eq.s32.totalorder %s18, 1
    %p120 = por %p118, %p119
    %p121 = scmp.ne.s32.totalorder %s112, %s113
    %p122 = scmp.eq.s32.totalorder %s18, 0
    %p123 = por %p121, %p122
    %p124 = scmp.ne.s32.totalorder %s112, %s113
    %p125 = scmp.eq.s32.totalorder %s19, 1
    %p126 = por %p124, %p125
    %p128 = scmp.ne.s32.totalorder %s113, %s127
    %p129 = scmp.eq.s32.totalorder %s19, 0
    %p130 = por %p128, %p129
    %s131 = ssub.s32 %s13, %s20
    %p132 = scmp.eq.s32.totalorder %s131, 0
    %s134 = sadd.s32 %s133, 1
    %s135 = scalar_select %p132, %s133, %s134
    %p138 = pneg %p132
    %p139 = scmp.eq.s32.totalorder %s13, 1
    %p140 = por %p138, %p139
    %p141 = scmp.ne.s32.totalorder %s133, %s136
    %p142 = scmp.eq.s32.totalorder %s13, 0
    %p143 = por %p141, %p142
    %p144 = scmp.ne.s32.totalorder %s133, %s136
    %p145 = scmp.eq.s32.totalorder %s18, 1
    %p146 = por %p144, %p145
    %p147 = scmp.ne.s32.totalorder %s136, %s137
    %p148 = scmp.eq.s32.totalorder %s18, 0
    %p149 = por %p147, %p148
    %p150 = scmp.ne.s32.totalorder %s136, %s137
    %p151 = scmp.eq.s32.totalorder %s19, 1
    %p152 = por %p150, %p151
    %p154 = scmp.ne.s32.totalorder %s137, %s153
    %p155 = scmp.eq.s32.totalorder %s19, 0
    %p156 = por %p154, %p155
    %s157 = ssub.s32 %s13, %s20
    %p158 = scmp.eq.s32.totalorder %s157, 0
    %s160 = sadd.s32 %s159, 1
    %s161 = scalar_select %p158, %s159, %s160
    %p164 = pneg %p158
    %p165 = scmp.eq.s32.totalorder %s13, 1
    %p166 = por %p164, %p165
    %p167 = scmp.ne.s32.totalorder %s159, %s162
    %p168 = scmp.eq.s32.totalorder %s13, 0
    %p169 = por %p167, %p168
    %p170 = scmp.ne.s32.totalorder %s159, %s162
    %p171 = scmp.eq.s32.totalorder %s18, 1
    %p172 = por %p170, %p171
    %p173 = scmp.ne.s32.totalorder %s162, %s163
    %p174 = scmp.eq.s32.totalorder %s18, 0
    %p175 = por %p173, %p174
    %p176 = scmp.ne.s32.totalorder %s162, %s163
    %p177 = scmp.eq.s32.totalorder %s19, 1
    %p178 = por %p176, %p177
    %p180 = scmp.ne.s32.totalorder %s163, %s179
    %p181 = scmp.eq.s32.totalorder %s19, 0
    %p182 = por %p180, %p181
    %p183 = scmp.le.s32.totalorder 1, %s13
    %p184 = scmp.lt.s32.totalorder %s13, 3
    %p185 = pnand %p183, %p184
    %p186 = pneg %p185
    // Predicated region
    $region9: #{discriminator_forward.5} parent=5 // pred_check
      _
    $region10: #{discriminator_forward.5} parent=5 // pred_check_branch
      %188 = sbr.rel (%p185) target = $region12
    $region11: #{discriminator_forward.5} parent=5 // pred_region
      %s189 = ssub.s32 %s13, 1
      // Predicated region
      $region13: #{discriminator_forward.5} parent=11 // pred_check
        %p190 = pneg %p60
      $region14: #{discriminator_forward.5} parent=11 // pred_check_branch
        %192 = sbr.rel (%p190) target = $region16
      $region15: #{discriminator_forward.5} parent=11 // pred_region
        _
      $region16: #{discriminator_forward.5} parent=11 // pred_fallthru
        _
      // Predicated region
      $region17: #{discriminator_forward.5} parent=11 // pred_check
        %p193 = pneg %p81
      $region18: #{discriminator_forward.5} parent=11 // pred_check_branch
        %195 = sbr.rel (%p193) target = $region20
      $region19: #{discriminator_forward.5} parent=11 // pred_region
        _
      $region20: #{discriminator_forward.5} parent=11 // pred_fallthru
        _
      // Predicated region
      $region21: #{discriminator_forward.5} parent=11 // pred_check
        %p196 = pneg %p102
      $region22: #{discriminator_forward.5} parent=11 // pred_check_branch
        %198 = sbr.rel (%p196) target = $region24
      $region23: #{discriminator_forward.5} parent=11 // pred_region
        _
      $region24: #{discriminator_forward.5} parent=11 // pred_fallthru
        _
      // Predicated region
      $region25: #{discriminator_forward.5} parent=11 // pred_check
        %p199 = pneg %p123
      $region26: #{discriminator_forward.5} parent=11 // pred_check_branch
        %201 = sbr.rel (%p199) target = $region28
      $region27: #{discriminator_forward.5} parent=11 // pred_region
        _
      $region28: #{discriminator_forward.5} parent=11 // pred_fallthru
        _
    $region12: #{discriminator_forward.5} parent=5 // pred_fallthru
      _
    %p202 = scmp.lt.s32.totalorder %s13, 2
    // Predicated region
    $region29: #{discriminator_forward.5} parent=5 // pred_check
      %p203 = pneg %p202
    $region30: #{discriminator_forward.5} parent=5 // pred_check_branch
      %205 = sbr.rel (%p203) target = $region32
    $region31: #{discriminator_forward.5} parent=5 // pred_region
      // Predicated region
      $region33: #{discriminator_forward.5} parent=31 // pred_check
        %p206 = pneg %p33
      $region34: #{discriminator_forward.5} parent=31 // pred_check_branch
        %208 = sbr.rel (%p206) target = $region36
      $region35: #{discriminator_forward.5} parent=31 // pred_region
        %s209 = smul.u32 32, %s13
        %p210 = scmp.lt.s32.totalorder %s209, 63
        %s211 = scalar_select %p210, %s209, 63
        %s212 = smul.addr %s211, 4
        %s213 = scalar_lea.vmem %s0, %s212
        %s214 = smul.u32 32, %s13
      $region36: #{discriminator_forward.5} parent=31 // pred_fallthru
        _
    $region32: #{discriminator_forward.5} parent=5 // pred_fallthru
      _
    %p215 = scmp.le.s32.totalorder 1, %s13
    %p216 = scmp.lt.s32.totalorder %s13, 3
    %p217 = pnand %p215, %p216
    %p218 = pneg %p217
    // Predicated region
    $region37: #{discriminator_forward.5} parent=5 // pred_check
      _
    $region38: #{discriminator_forward.5} parent=5 // pred_check_branch
      %220 = sbr.rel (%p217) target = $region40
    $region39: #{discriminator_forward.5} parent=5 // pred_region
      %s221 = ssub.s32 %s13, 1
      %s222 = smul.u32 32, %s18
      %p223 = scmp.lt.s32.totalorder %s222, 63
      %s224 = scalar_select %p223, %s222, 63
      %s225 = smul.addr %s224, 4
      %s226 = scalar_lea.vmem %s0, %s225
      %p227 = pneg %p39
      %p228 = pneg %p36
      %p229 = pneg %p60
      %p230 = pneg %p57
      %p231 = pneg %p81
      %p232 = pneg %p78
      %p233 = pneg %p102
      %p234 = pneg %p99
      %p235 = pneg %p123
      %p236 = pneg %p120
      %p237 = pneg %p149
      %p238 = pneg %p146
      %s239 = smul.u32 32, %s18
      %p240 = scmp.lt.s32.totalorder %s239, 63
      %s241 = scalar_select %p240, %s239, 63
      %s242 = smul.addr %s241, 4
      %s243 = scalar_lea.vmem %s5, %s242
      %p244 = pneg %p175
      %p245 = pneg %p172
      %p246 = scmp.lt.s32.totalorder %s18, 1
      %s247 = scalar_select %p246, %s18, 1
      %s248 = smul.addr %s247, 8
      %s249 = scalar_lea.vmem %s6, %s248
      %s250 = smul.u32 32, %s18
      %p251 = scmp.lt.s32.totalorder %s250, 63
      %s252 = scalar_select %p251, %s250, 63
      %s253 = smul.addr %s252, 4
      %s254 = scalar_lea.vmem %s0, %s253
      %s255 = smul.u32 32, %s18
      %s256 = smul.u32 32, %s18
      %p257 = scmp.lt.s32.totalorder %s256, 63
      %s258 = scalar_select %p257, %s256, 63
      %s259 = smul.addr %s258, 4
      %s260 = scalar_lea.vmem %s5, %s259
      %s261 = smul.u32 32, %s18
      %p262 = scmp.lt.s32.totalorder %s18, 1
      %s263 = scalar_select %p262, %s18, 1
      %s264 = smul.addr %s263, 8
      %s265 = scalar_lea.vmem %s6, %s264
      %v266 = vld [vmem:[%s254] sm:$0xf]
      %v267 = vld [vmem:[%s254 + $0x4] sm:$0xf]
      %v268 = vld [vmem:[%s254 + $0x8] sm:$0xf]
      %v269 = vld [vmem:[%s254 + $0xc] sm:$0xf]
      %v270 = vld [vmem:[%s254 + $0x10] sm:$0xf]
      %v271 = vld [vmem:[%s254 + $0x14] sm:$0xf]
      %v272 = vld [vmem:[%s254 + $0x18] sm:$0xf]
      %v273 = vld [vmem:[%s254 + $0x1c] sm:$0xf]
      %v274 = vld [vmem:[%s254 + $0x20] sm:$0xf]
      %v275 = vld [vmem:[%s254 + $0x24] sm:$0xf]
      %v276 = vld [vmem:[%s254 + $0x28] sm:$0xf]
      %v277 = vld [vmem:[%s254 + $0x2c] sm:$0xf]
      %v278 = vld [vmem:[%s254 + $0x30] sm:$0xf]
      %v279 = vld [vmem:[%s254 + $0x34] sm:$0xf]
      %v280 = vld [vmem:[%s254 + $0x38] sm:$0xf]
      %v281 = vld [vmem:[%s254 + $0x3c] sm:$0xf]
      %v282 = vld [vmem:[%s254 + $0x40] sm:$0xf]
      %v283 = vld [vmem:[%s254 + $0x44] sm:$0xf]
      %v284 = vld [vmem:[%s254 + $0x48] sm:$0xf]
      %v285 = vld [vmem:[%s254 + $0x4c] sm:$0xf]
      %v286 = vld [vmem:[%s254 + $0x50] sm:$0xf]
      %v287 = vld [vmem:[%s254 + $0x54] sm:$0xf]
      %v288 = vld [vmem:[%s254 + $0x58] sm:$0xf]
      %v289 = vld [vmem:[%s254 + $0x5c] sm:$0xf]
      %v290 = vld [vmem:[%s254 + $0x60] sm:$0xf]
      %v291 = vld [vmem:[%s254 + $0x64] sm:$0xf]
      %v292 = vld [vmem:[%s254 + $0x68] sm:$0xf]
      %v293 = vld [vmem:[%s254 + $0x6c] sm:$0xf]
      %v294 = vld [vmem:[%s254 + $0x70] sm:$0xf]
      %v295 = vld [vmem:[%s254 + $0x74] sm:$0xf]
      %v296 = vld [vmem:[%s254 + $0x78] sm:$0xf]
      %v297 = vld [vmem:[%s254 + $0x7c] sm:$0xf]
      %v298 = vunpack.c.l.bf16 %v266
      %v299 = vunpack.c.l.bf16 %v267
      %v300 = vunpack.c.l.bf16 %v268
      %v301 = vunpack.c.l.bf16 %v269
      %v302 = vunpack.c.l.bf16 %v270
      %v303 = vunpack.c.l.bf16 %v271
      %v304 = vunpack.c.l.bf16 %v272
      %v305 = vunpack.c.l.bf16 %v273
      %v306 = vunpack.c.l.bf16 %v274
      %v307 = vunpack.c.l.bf16 %v275
      %v308 = vunpack.c.l.bf16 %v276
      %v309 = vunpack.c.l.bf16 %v277
      %v310 = vunpack.c.l.bf16 %v278
      %v311 = vunpack.c.l.bf16 %v279
      %v312 = vunpack.c.l.bf16 %v280
      %v313 = vunpack.c.l.bf16 %v281
      %v314 = vunpack.c.l.bf16 %v282
      %v315 = vunpack.c.l.bf16 %v283
      %v316 = vunpack.c.l.bf16 %v284
      %v317 = vunpack.c.l.bf16 %v285
      %v318 = vunpack.c.l.bf16 %v286
      %v319 = vunpack.c.l.bf16 %v287
      %v320 = vunpack.c.l.bf16 %v288
      %v321 = vunpack.c.l.bf16 %v289
      %v322 = vunpack.c.l.bf16 %v290
      %v323 = vunpack.c.l.bf16 %v291
      %v324 = vunpack.c.l.bf16 %v292
      %v325 = vunpack.c.l.bf16 %v293
      %v326 = vunpack.c.l.bf16 %v294
      %v327 = vunpack.c.l.bf16 %v295
      %v328 = vunpack.c.l.bf16 %v296
      %v329 = vunpack.c.l.bf16 %v297
      %v330 = vld [vmem:[%s1] sm:$0x1]
      %v332 = vperm.slane %v330, 0
      %v334 = vmul.f32 %v298, %v332
      %v335 = vmul.f32 %v299, %v332
      %v336 = vmul.f32 %v300, %v332
      %v337 = vmul.f32 %v301, %v332
      %v338 = vmul.f32 %v302, %v332
      %v339 = vmul.f32 %v303, %v332
      %v340 = vmul.f32 %v304, %v332
      %v341 = vmul.f32 %v305, %v332
      %v342 = vmul.f32 %v306, %v332
      %v343 = vmul.f32 %v307, %v332
      %v344 = vmul.f32 %v308, %v332
      %v345 = vmul.f32 %v309, %v332
      %v346 = vmul.f32 %v310, %v332
      %v347 = vmul.f32 %v311, %v332
      %v348 = vmul.f32 %v312, %v332
      %v349 = vmul.f32 %v313, %v332
      %v350 = vmul.f32 %v314, %v332
      %v351 = vmul.f32 %v315, %v332
      %v352 = vmul.f32 %v316, %v332
      %v353 = vmul.f32 %v317, %v332
      %v354 = vmul.f32 %v318, %v332
      %v355 = vmul.f32 %v319, %v332
      %v356 = vmul.f32 %v320, %v332
      %v357 = vmul.f32 %v321, %v332
      %v358 = vmul.f32 %v322, %v332
      %v359 = vmul.f32 %v323, %v332
      %v360 = vmul.f32 %v324, %v332
      %v361 = vmul.f32 %v325, %v332
      %v362 = vmul.f32 %v326, %v332
      %v363 = vmul.f32 %v327, %v332
      %v364 = vmul.f32 %v328, %v332
      %v365 = vmul.f32 %v329, %v332
      %v366 = vld [vmem:[%s2] sm:$0x1]
      %v368 = vperm.slane %v366, 0
      %v370 = vadd.f32 %v334, %v368
      %v371 = vadd.f32 %v335, %v368
      %v372 = vadd.f32 %v336, %v368
      %v373 = vadd.f32 %v337, %v368
      %v374 = vadd.f32 %v338, %v368
      %v375 = vadd.f32 %v339, %v368
      %v376 = vadd.f32 %v340, %v368
      %v377 = vadd.f32 %v341, %v368
      %v378 = vadd.f32 %v342, %v368
      %v379 = vadd.f32 %v343, %v368
      %v380 = vadd.f32 %v344, %v368
      %v381 = vadd.f32 %v345, %v368
      %v382 = vadd.f32 %v346, %v368
      %v383 = vadd.f32 %v347, %v368
      %v384 = vadd.f32 %v348, %v368
      %v385 = vadd.f32 %v349, %v368
      %v386 = vadd.f32 %v350, %v368
      %v387 = vadd.f32 %v351, %v368
      %v388 = vadd.f32 %v352, %v368
      %v389 = vadd.f32 %v353, %v368
      %v390 = vadd.f32 %v354, %v368
      %v391 = vadd.f32 %v355, %v368
      %v392 = vadd.f32 %v356, %v368
      %v393 = vadd.f32 %v357, %v368
      %v394 = vadd.f32 %v358, %v368
      %v395 = vadd.f32 %v359, %v368
      %v396 = vadd.f32 %v360, %v368
      %v397 = vadd.f32 %v361, %v368
      %v398 = vadd.f32 %v362, %v368
      %v399 = vadd.f32 %v363, %v368
      %v400 = vadd.f32 %v364, %v368
      %v401 = vadd.f32 %v365, %v368
      %vm402 = vcmp.gt.f32.partialorder %v370, 0.0
      %vm403 = vcmp.gt.f32.partialorder %v371, 0.0
      %vm404 = vcmp.gt.f32.partialorder %v372, 0.0
      %vm405 = vcmp.gt.f32.partialorder %v373, 0.0
      %vm406 = vcmp.gt.f32.partialorder %v374, 0.0
      %vm407 = vcmp.gt.f32.partialorder %v375, 0.0
      %vm408 = vcmp.gt.f32.partialorder %v376, 0.0
      %vm409 = vcmp.gt.f32.partialorder %v377, 0.0
      %vm410 = vcmp.gt.f32.partialorder %v378, 0.0
      %vm411 = vcmp.gt.f32.partialorder %v379, 0.0
      %vm412 = vcmp.gt.f32.partialorder %v380, 0.0
      %vm413 = vcmp.gt.f32.partialorder %v381, 0.0
      %vm414 = vcmp.gt.f32.partialorder %v382, 0.0
      %vm415 = vcmp.gt.f32.partialorder %v383, 0.0
      %vm416 = vcmp.gt.f32.partialorder %v384, 0.0
      %vm417 = vcmp.gt.f32.partialorder %v385, 0.0
      %vm418 = vcmp.gt.f32.partialorder %v386, 0.0
      %vm419 = vcmp.gt.f32.partialorder %v387, 0.0
      %vm420 = vcmp.gt.f32.partialorder %v388, 0.0
      %vm421 = vcmp.gt.f32.partialorder %v389, 0.0
      %vm422 = vcmp.gt.f32.partialorder %v390, 0.0
      %vm423 = vcmp.gt.f32.partialorder %v391, 0.0
      %vm424 = vcmp.gt.f32.partialorder %v392, 0.0
      %vm425 = vcmp.gt.f32.partialorder %v393, 0.0
      %vm426 = vcmp.gt.f32.partialorder %v394, 0.0
      %vm427 = vcmp.gt.f32.partialorder %v395, 0.0
      %vm428 = vcmp.gt.f32.partialorder %v396, 0.0
      %vm429 = vcmp.gt.f32.partialorder %v397, 0.0
      %vm430 = vcmp.gt.f32.partialorder %v398, 0.0
      %vm431 = vcmp.gt.f32.partialorder %v399, 0.0
      %vm432 = vcmp.gt.f32.partialorder %v400, 0.0
      %vm433 = vcmp.gt.f32.partialorder %v401, 0.0
      %v434 = vmul.f32 %v370, 0.2
      %v435 = vmul.f32 %v371, 0.2
      %v436 = vmul.f32 %v372, 0.2
      %v437 = vmul.f32 %v373, 0.2
      %v438 = vmul.f32 %v374, 0.2
      %v439 = vmul.f32 %v375, 0.2
      %v440 = vmul.f32 %v376, 0.2
      %v441 = vmul.f32 %v377, 0.2
      %v442 = vmul.f32 %v378, 0.2
      %v443 = vmul.f32 %v379, 0.2
      %v444 = vmul.f32 %v380, 0.2
      %v445 = vmul.f32 %v381, 0.2
      %v446 = vmul.f32 %v382, 0.2
      %v447 = vmul.f32 %v383, 0.2
      %v448 = vmul.f32 %v384, 0.2
      %v449 = vmul.f32 %v385, 0.2
      %v450 = vmul.f32 %v386, 0.2
      %v451 = vmul.f32 %v387, 0.2
      %v452 = vmul.f32 %v388, 0.2
      %v453 = vmul.f32 %v389, 0.2
      %v454 = vmul.f32 %v390, 0.2
      %v455 = vmul.f32 %v391, 0.2
      %v456 = vmul.f32 %v392, 0.2
      %v457 = vmul.f32 %v393, 0.2
      %v458 = vmul.f32 %v394, 0.2
      %v459 = vmul.f32 %v395, 0.2
      %v460 = vmul.f32 %v396, 0.2
      %v461 = vmul.f32 %v397, 0.2
      %v462 = vmul.f32 %v398, 0.2
      %v463 = vmul.f32 %v399, 0.2
      %v464 = vmul.f32 %v400, 0.2
      %v465 = vmul.f32 %v401, 0.2
      %v466 = vsel %vm402, %v370, %v434
      %v467 = vsel %vm403, %v371, %v435
      %v468 = vsel %vm404, %v372, %v436
      %v469 = vsel %vm405, %v373, %v437
      %v470 = vsel %vm406, %v374, %v438
      %v471 = vsel %vm407, %v375, %v439
      %v472 = vsel %vm408, %v376, %v440
      %v473 = vsel %vm409, %v377, %v441
      %v474 = vsel %vm410, %v378, %v442
      %v475 = vsel %vm411, %v379, %v443
      %v476 = vsel %vm412, %v380, %v444
      %v477 = vsel %vm413, %v381, %v445
      %v478 = vsel %vm414, %v382, %v446
      %v479 = vsel %vm415, %v383, %v447
      %v480 = vsel %vm416, %v384, %v448
      %v481 = vsel %vm417, %v385, %v449
      %v482 = vsel %vm418, %v386, %v450
      %v483 = vsel %vm419, %v387, %v451
      %v484 = vsel %vm420, %v388, %v452
      %v485 = vsel %vm421, %v389, %v453
      %v486 = vsel %vm422, %v390, %v454
      %v487 = vsel %vm423, %v391, %v455
      %v488 = vsel %vm424, %v392, %v456
      %v489 = vsel %vm425, %v393, %v457
      %v490 = vsel %vm426, %v394, %v458
      %v491 = vsel %vm427, %v395, %v459
      %v492 = vsel %vm428, %v396, %v460
      %v493 = vsel %vm429, %v397, %v461
      %v494 = vsel %vm430, %v398, %v462
      %v495 = vsel %vm431, %v399, %v463
      %v496 = vsel %vm432, %v400, %v464
      %v497 = vsel %vm433, %v401, %v465
      %v498 = vpack.c.bf16 %v467, %v466
      %v499 = vpack.c.bf16 %v469, %v468
      %v500 = vpack.c.bf16 %v471, %v470
      %v501 = vpack.c.bf16 %v473, %v472
      %v502 = vpack.c.bf16 %v475, %v474
      %v503 = vpack.c.bf16 %v477, %v476
      %v504 = vpack.c.bf16 %v479, %v478
      %v505 = vpack.c.bf16 %v481, %v480
      %v506 = vpack.c.bf16 %v483, %v482
      %v507 = vpack.c.bf16 %v485, %v484
      %v508 = vpack.c.bf16 %v487, %v486
      %v509 = vpack.c.bf16 %v489, %v488
      %v510 = vpack.c.bf16 %v491, %v490
      %v511 = vpack.c.bf16 %v493, %v492
      %v512 = vpack.c.bf16 %v495, %v494
      %v513 = vpack.c.bf16 %v497, %v496
      %v514 = vld [vmem:[%s3] sm:$0xf]
      %v515 = vld [vmem:[%s3 + $0x4] sm:$0xf]
      %v516 = vld [vmem:[%s3 + $0x8] sm:$0xf]
      %v517 = vld [vmem:[%s3 + $0xc] sm:$0xf]
      %v518 = vld [vmem:[%s3 + $0x10] sm:$0xf]
      %v519 = vld [vmem:[%s3 + $0x14] sm:$0xf]
      %v520 = vld [vmem:[%s3 + $0x18] sm:$0xf]
      %v521 = vld [vmem:[%s3 + $0x1c] sm:$0xf]
      %v522 = vld [vmem:[%s3 + $0x20] sm:$0xf]
      %v523 = vld [vmem:[%s3 + $0x24] sm:$0xf]
      %v524 = vld [vmem:[%s3 + $0x28] sm:$0xf]
      %v525 = vld [vmem:[%s3 + $0x2c] sm:$0xf]
      %v526 = vld [vmem:[%s3 + $0x30] sm:$0xf]
      %v527 = vld [vmem:[%s3 + $0x34] sm:$0xf]
      %v528 = vld [vmem:[%s3 + $0x38] sm:$0xf]
      %v529 = vld [vmem:[%s3 + $0x3c] sm:$0xf]
      %v530 = vld [vmem:[%s4] sm:$0x1]
      %v532 = vperm.slane %v530, 0
      %v550 = vunpack.c.l.b16 %v514
      %v551 = vunpack.c.l.b16 %v515
      %v552 = vunpack.c.l.b16 %v516
      %v553 = vunpack.c.l.b16 %v517
      %v554 = vunpack.c.l.b16 %v518
      %v555 = vunpack.c.l.b16 %v519
      %v556 = vunpack.c.l.b16 %v520
      %v557 = vunpack.c.l.b16 %v521
      %v558 = vunpack.c.l.b16 %v522
      %v559 = vunpack.c.l.b16 %v523
      %v560 = vunpack.c.l.b16 %v524
      %v561 = vunpack.c.l.b16 %v525
      %v562 = vunpack.c.l.b16 %v526
      %v563 = vunpack.c.l.b16 %v527
      %v564 = vunpack.c.l.b16 %v528
      %v565 = vunpack.c.l.b16 %v529
      %v566 = vpack.c.b16 %v551, %v550
      %v567 = vpack.c.b16 %v553, %v552
      %v568 = vpack.c.b16 %v555, %v554
      %v569 = vpack.c.b16 %v557, %v556
      %v570 = vpack.c.b16 %v559, %v558
      %v571 = vpack.c.b16 %v561, %v560
      %v572 = vpack.c.b16 %v563, %v562
      %v573 = vpack.c.b16 %v565, %v564
      %582 = vmatpush.bf16.msra.mxu0 %v573
      %583 = vmatpush.bf16.msra.mxu0 %v572
      %584 = vmatpush.bf16.msra.mxu0 %v571
      %585 = vmatpush.bf16.msra.mxu0 %v570
      %586 = vmatpush.bf16.msra.mxu0 %v569
      %587 = vmatpush.bf16.msra.mxu0 %v568
      %588 = vmatpush.bf16.msra.mxu0 %v567
      %589 = vmatpush.bf16.msra.mxu0 %v566
      %590 = vmatmul.bf16.gmra.mxu0 %v498
      %v591 = vpop.f32.mrf.mxu0
      %v592 = vadd.f32 %v532, %v591
      %v593 = vpop.f32.mrf.mxu0
      %v594 = vadd.f32 %v532, %v593
      %595 = vmatmul.bf16.gmra.mxu0 %v499
      %v596 = vpop.f32.mrf.mxu0
      %v597 = vadd.f32 %v532, %v596
      %v598 = vpop.f32.mrf.mxu0
      %v599 = vadd.f32 %v532, %v598
      %600 = vmatmul.bf16.gmra.mxu0 %v500
      %v601 = vpop.f32.mrf.mxu0
      %v602 = vadd.f32 %v532, %v601
      %v603 = vpop.f32.mrf.mxu0
      %v604 = vadd.f32 %v532, %v603
      %605 = vmatmul.bf16.gmra.mxu0 %v501
      %v606 = vpop.f32.mrf.mxu0
      %v607 = vadd.f32 %v532, %v606
      %v608 = vpop.f32.mrf.mxu0
      %v609 = vadd.f32 %v532, %v608
      %610 = vmatmul.bf16.gmra.mxu0 %v502
      %v611 = vpop.f32.mrf.mxu0
      %v612 = vadd.f32 %v532, %v611
      %v613 = vpop.f32.mrf.mxu0
      %v614 = vadd.f32 %v532, %v613
      %615 = vmatmul.bf16.gmra.mxu0 %v503
      %v616 = vpop.f32.mrf.mxu0
      %v617 = vadd.f32 %v532, %v616
      %v618 = vpop.f32.mrf.mxu0
      %v619 = vadd.f32 %v532, %v618
      %620 = vmatmul.bf16.gmra.mxu0 %v504
      %v621 = vpop.f32.mrf.mxu0
      %v622 = vadd.f32 %v532, %v621
      %v623 = vpop.f32.mrf.mxu0
      %v624 = vadd.f32 %v532, %v623
      %625 = vmatmul.bf16.gmra.mxu0 %v505
      %v626 = vpop.f32.mrf.mxu0
      %v627 = vadd.f32 %v532, %v626
      %v628 = vpop.f32.mrf.mxu0
      %v629 = vadd.f32 %v532, %v628
      %630 = vmatmul.bf16.gmra.mxu0 %v506
      %v631 = vpop.f32.mrf.mxu0
      %v632 = vadd.f32 %v532, %v631
      %v633 = vpop.f32.mrf.mxu0
      %v634 = vadd.f32 %v532, %v633
      %635 = vmatmul.bf16.gmra.mxu0 %v507
      %v636 = vpop.f32.mrf.mxu0
      %v637 = vadd.f32 %v532, %v636
      %v638 = vpop.f32.mrf.mxu0
      %v639 = vadd.f32 %v532, %v638
      %640 = vmatmul.bf16.gmra.mxu0 %v508
      %v641 = vpop.f32.mrf.mxu0
      %v642 = vadd.f32 %v532, %v641
      %v643 = vpop.f32.mrf.mxu0
      %v644 = vadd.f32 %v532, %v643
      %645 = vmatmul.bf16.gmra.mxu0 %v509
      %v646 = vpop.f32.mrf.mxu0
      %v647 = vadd.f32 %v532, %v646
      %v648 = vpop.f32.mrf.mxu0
      %v649 = vadd.f32 %v532, %v648
      %650 = vmatmul.bf16.gmra.mxu0 %v510
      %v651 = vpop.f32.mrf.mxu0
      %v652 = vadd.f32 %v532, %v651
      %v653 = vpop.f32.mrf.mxu0
      %v654 = vadd.f32 %v532, %v653
      %655 = vmatmul.bf16.gmra.mxu0 %v511
      %v656 = vpop.f32.mrf.mxu0
      %v657 = vadd.f32 %v532, %v656
      %v658 = vpop.f32.mrf.mxu0
      %v659 = vadd.f32 %v532, %v658
      %660 = vmatmul.bf16.gmra.mxu0 %v512
      %v661 = vpop.f32.mrf.mxu0
      %v662 = vadd.f32 %v532, %v661
      %v663 = vpop.f32.mrf.mxu0
      %v664 = vadd.f32 %v532, %v663
      %665 = vmatmul.bf16.gmra.mxu0 %v513
      %v666 = vpop.f32.mrf.mxu0
      %v667 = vadd.f32 %v532, %v666
      %v668 = vpop.f32.mrf.mxu0
      %v669 = vadd.f32 %v532, %v668
      %670 = vdwg.mxu0
      %v671 = vadd.f32 %v592, %v594
      %v672 = vadd.f32 %v671, %v597
      %v673 = vadd.f32 %v672, %v599
      %v674 = vadd.f32 %v673, %v602
      %v675 = vadd.f32 %v674, %v604
      %v676 = vadd.f32 %v675, %v607
      %v677 = vadd.f32 %v676, %v609
      %v678 = vadd.f32 %v677, %v612
      %v679 = vadd.f32 %v678, %v614
      %v680 = vadd.f32 %v679, %v617
      %v681 = vadd.f32 %v680, %v619
      %v682 = vadd.f32 %v681, %v622
      %v683 = vadd.f32 %v682, %v624
      %v684 = vadd.f32 %v683, %v627
      %v685 = vadd.f32 %v684, %v629
      %v686 = vadd.f32 %v685, %v632
      %v687 = vadd.f32 %v686, %v634
      %v688 = vadd.f32 %v687, %v637
      %v689 = vadd.f32 %v688, %v639
      %v690 = vadd.f32 %v689, %v642
      %v691 = vadd.f32 %v690, %v644
      %v692 = vadd.f32 %v691, %v647
      %v693 = vadd.f32 %v692, %v649
      %v694 = vadd.f32 %v693, %v652
      %v695 = vadd.f32 %v694, %v654
      %v696 = vadd.f32 %v695, %v657
      %v697 = vadd.f32 %v696, %v659
      %v698 = vadd.f32 %v697, %v662
      %v699 = vadd.f32 %v698, %v664
      %v700 = vadd.f32 %v699, %v667
      %v701 = vadd.f32 %v700, %v669
      %v702 = vrot.slane %v701, 4
      %v703 = vadd.f32 %v701, %v702
      %v704 = vrot.slane %v703, 2
      %v705 = vadd.f32 %v703, %v704
      %v706 = vrot.slane %v705, 1
      %v707 = vadd.f32 %v705, %v706
      %v708 = vmul.f32 %v592, %v592
      %v709 = vmul.f32 %v594, %v594
      %v710 = vmul.f32 %v597, %v597
      %v711 = vmul.f32 %v599, %v599
      %v712 = vmul.f32 %v602, %v602
      %v713 = vmul.f32 %v604, %v604
      %v714 = vmul.f32 %v607, %v607
      %v715 = vmul.f32 %v609, %v609
      %v716 = vmul.f32 %v612, %v612
      %v717 = vmul.f32 %v614, %v614
      %v718 = vmul.f32 %v617, %v617
      %v719 = vmul.f32 %v619, %v619
      %v720 = vmul.f32 %v622, %v622
      %v721 = vmul.f32 %v624, %v624
      %v722 = vmul.f32 %v627, %v627
      %v723 = vmul.f32 %v629, %v629
      %v724 = vmul.f32 %v632, %v632
      %v725 = vmul.f32 %v634, %v634
      %v726 = vmul.f32 %v637, %v637
      %v727 = vmul.f32 %v639, %v639
      %v728 = vmul.f32 %v642, %v642
      %v729 = vmul.f32 %v644, %v644
      %v730 = vmul.f32 %v647, %v647
      %v731 = vmul.f32 %v649, %v649
      %v732 = vmul.f32 %v652, %v652
      %v733 = vmul.f32 %v654, %v654
      %v734 = vmul.f32 %v657, %v657
      %v735 = vmul.f32 %v659, %v659
      %v736 = vmul.f32 %v662, %v662
      %v737 = vmul.f32 %v664, %v664
      %v738 = vmul.f32 %v667, %v667
      %v739 = vmul.f32 %v669, %v669
      %v740 = vadd.f32 %v708, %v709
      %v741 = vadd.f32 %v740, %v710
      %v742 = vadd.f32 %v741, %v711
      %v743 = vadd.f32 %v742, %v712
      %v744 = vadd.f32 %v743, %v713
      %v745 = vadd.f32 %v744, %v714
      %v746 = vadd.f32 %v745, %v715
      %v747 = vadd.f32 %v746, %v716
      %v748 = vadd.f32 %v747, %v717
      %v749 = vadd.f32 %v748, %v718
      %v750 = vadd.f32 %v749, %v719
      %v751 = vadd.f32 %v750, %v720
      %v752 = vadd.f32 %v751, %v721
      %v753 = vadd.f32 %v752, %v722
      %v754 = vadd.f32 %v753, %v723
      %v755 = vadd.f32 %v754, %v724
      %v756 = vadd.f32 %v755, %v725
      %v757 = vadd.f32 %v756, %v726
      %v758 = vadd.f32 %v757, %v727
      %v759 = vadd.f32 %v758, %v728
      %v760 = vadd.f32 %v759, %v729
      %v761 = vadd.f32 %v760, %v730
      %v762 = vadd.f32 %v761, %v731
      %v763 = vadd.f32 %v762, %v732
      %v764 = vadd.f32 %v763, %v733
      %v765 = vadd.f32 %v764, %v734
      %v766 = vadd.f32 %v765, %v735
      %v767 = vadd.f32 %v766, %v736
      %v768 = vadd.f32 %v767, %v737
      %v769 = vadd.f32 %v768, %v738
      %v770 = vadd.f32 %v769, %v739
      %v771 = vrot.slane %v770, 4
      %v772 = vadd.f32 %v770, %v771
      %v773 = vrot.slane %v772, 2
      %v774 = vadd.f32 %v772, %v773
      %v775 = vrot.slane %v774, 1
      %v776 = vadd.f32 %v774, %v775
      %vm777 = vcmask 1040384
      %v778 = vsel %vm777, %v707, %v776
      %vm779 = vcmask 1041408
      %v780 = vsel %vm779, %v778, 0.0
      %781 = vst [vmem:[%s265] sm:$0xff] %v780
      %v782 = vpack.c.bf16 %v592, %v592
      %v783 = vpack.c.bf16 %v594, %v594
      %v784 = vpack.c.bf16 %v597, %v597
      %v785 = vpack.c.bf16 %v599, %v599
      %v786 = vpack.c.bf16 %v602, %v602
      %v787 = vpack.c.bf16 %v604, %v604
      %v788 = vpack.c.bf16 %v607, %v607
      %v789 = vpack.c.bf16 %v609, %v609
      %v790 = vpack.c.bf16 %v612, %v612
      %v791 = vpack.c.bf16 %v614, %v614
      %v792 = vpack.c.bf16 %v617, %v617
      %v793 = vpack.c.bf16 %v619, %v619
      %v794 = vpack.c.bf16 %v622, %v622
      %v795 = vpack.c.bf16 %v624, %v624
      %v796 = vpack.c.bf16 %v627, %v627
      %v797 = vpack.c.bf16 %v629, %v629
      %v798 = vpack.c.bf16 %v632, %v632
      %v799 = vpack.c.bf16 %v634, %v634
      %v800 = vpack.c.bf16 %v637, %v637
      %v801 = vpack.c.bf16 %v639, %v639
      %v802 = vpack.c.bf16 %v642, %v642
      %v803 = vpack.c.bf16 %v644, %v644
      %v804 = vpack.c.bf16 %v647, %v647
      %v805 = vpack.c.bf16 %v649, %v649
      %v806 = vpack.c.bf16 %v652, %v652
      %v807 = vpack.c.bf16 %v654, %v654
      %v808 = vpack.c.bf16 %v657, %v657
      %v809 = vpack.c.bf16 %v659, %v659
      %v810 = vpack.c.bf16 %v662, %v662
      %v811 = vpack.c.bf16 %v664, %v664
      %v812 = vpack.c.bf16 %v667, %v667
      %v813 = vpack.c.bf16 %v669, %v669
      %814 = vst [vmem:[%s260] sm:$0xf] %v782
      %815 = vst [vmem:[%s260 + $0x4] sm:$0xf] %v783
      %816 = vst [vmem:[%s260 + $0x8] sm:$0xf] %v784
      %817 = vst [vmem:[%s260 + $0xc] sm:$0xf] %v785
      %818 = vst [vmem:[%s260 + $0x10] sm:$0xf] %v786
      %819 = vst [vmem:[%s260 + $0x14] sm:$0xf] %v787
      %820 = vst [vmem:[%s260 + $0x18] sm:$0xf] %v788
      %821 = vst [vmem:[%s260 + $0x1c] sm:$0xf] %v789
      %822 = vst [vmem:[%s260 + $0x20] sm:$0xf] %v790
      %823 = vst [vmem:[%s260 + $0x24] sm:$0xf] %v791
      %824 = vst [vmem:[%s260 + $0x28] sm:$0xf] %v792
      %825 = vst [vmem:[%s260 + $0x2c] sm:$0xf] %v793
      %826 = vst [vmem:[%s260 + $0x30] sm:$0xf] %v794
      %827 = vst [vmem:[%s260 + $0x34] sm:$0xf] %v795
      %828 = vst [vmem:[%s260 + $0x38] sm:$0xf] %v796
      %829 = vst [vmem:[%s260 + $0x3c] sm:$0xf] %v797
      %830 = vst [vmem:[%s260 + $0x40] sm:$0xf] %v798
      %831 = vst [vmem:[%s260 + $0x44] sm:$0xf] %v799
      %832 = vst [vmem:[%s260 + $0x48] sm:$0xf] %v800
      %833 = vst [vmem:[%s260 + $0x4c] sm:$0xf] %v801
      %834 = vst [vmem:[%s260 + $0x50] sm:$0xf] %v802
      %835 = vst [vmem:[%s260 + $0x54] sm:$0xf] %v803
      %836 = vst [vmem:[%s260 + $0x58] sm:$0xf] %v804
      %837 = vst [vmem:[%s260 + $0x5c] sm:$0xf] %v805
      %838 = vst [vmem:[%s260 + $0x60] sm:$0xf] %v806
      %839 = vst [vmem:[%s260 + $0x64] sm:$0xf] %v807
      %840 = vst [vmem:[%s260 + $0x68] sm:$0xf] %v808
      %841 = vst [vmem:[%s260 + $0x6c] sm:$0xf] %v809
      %842 = vst [vmem:[%s260 + $0x70] sm:$0xf] %v810
      %843 = vst [vmem:[%s260 + $0x74] sm:$0xf] %v811
      %844 = vst [vmem:[%s260 + $0x78] sm:$0xf] %v812
      %845 = vst [vmem:[%s260 + $0x7c] sm:$0xf] %v813
      %s846 = smul.u32 32, %s18
      %p847 = scmp.lt.s32.totalorder %s846, 63
      %s848 = scalar_select %p847, %s846, 63
      %s849 = smul.addr %s848, 4
      %s850 = scalar_lea.vmem %s5, %s849
      %p851 = scmp.lt.s32.totalorder %s18, 1
      %s852 = scalar_select %p851, %s18, 1
      %s853 = smul.addr %s852, 8
      %s854 = scalar_lea.vmem %s6, %s853
      // Predicated region
      $region41: #{discriminator_forward.5} parent=39 // pred_check
        %p855 = pneg %p146
      $region42: #{discriminator_forward.5} parent=39 // pred_check_branch
        %857 = sbr.rel (%p855) target = $region44
      $region43: #{discriminator_forward.5} parent=39 // pred_region
        %s858 = smul.u32 32, %s18
      $region44: #{discriminator_forward.5} parent=39 // pred_fallthru
        _
      // Predicated region
      $region45: #{discriminator_forward.5} parent=39 // pred_check
        %p859 = pneg %p172
      $region46: #{discriminator_forward.5} parent=39 // pred_check_branch
        %861 = sbr.rel (%p859) target = $region48
      $region47: #{discriminator_forward.5} parent=39 // pred_region
        _
      $region48: #{discriminator_forward.5} parent=39 // pred_fallthru
        _
    $region40: #{discriminator_forward.5} parent=5 // pred_fallthru
      _
    %p862 = scmp.le.s32.totalorder 2, %s13
    // Predicated region
    $region49: #{discriminator_forward.5} parent=5 // pred_check
      %p863 = pneg %p862
    $region50: #{discriminator_forward.5} parent=5 // pred_check_branch
      %865 = sbr.rel (%p863) target = $region52
    $region51: #{discriminator_forward.5} parent=5 // pred_region
      %s866 = ssub.s32 %s13, 2
      // Predicated region
      $region53: #{discriminator_forward.5} parent=51 // pred_check
        %p867 = pneg %p152
      $region54: #{discriminator_forward.5} parent=51 // pred_check_branch
        %869 = sbr.rel (%p867) target = $region56
      $region55: #{discriminator_forward.5} parent=51 // pred_region
        %s870 = smul.u32 32, %s19
        %p871 = scmp.lt.s32.totalorder %s870, 63
        %s872 = scalar_select %p871, %s870, 63
        %s873 = smul.addr %s872, 4
        %s874 = scalar_lea.vmem %s5, %s873
      $region56: #{discriminator_forward.5} parent=51 // pred_fallthru
        _
      // Predicated region
      $region57: #{discriminator_forward.5} parent=51 // pred_check
        %p875 = pneg %p178
      $region58: #{discriminator_forward.5} parent=51 // pred_check_branch
        %877 = sbr.rel (%p875) target = $region60
      $region59: #{discriminator_forward.5} parent=51 // pred_region
        %p878 = scmp.lt.s32.totalorder %s19, 1
        %s879 = scalar_select %p878, %s19, 1
        %s880 = smul.addr %s879, 8
        %s881 = scalar_lea.vmem %s6, %s880
      $region60: #{discriminator_forward.5} parent=51 // pred_fallthru
        _
    $region52: #{discriminator_forward.5} parent=5 // pred_fallthru
      _
  $region6: #{discriminator_forward.5} parent=0 // loop_footer
    %s17 = sadd.s32 1, %s13
  $region7: #{discriminator_forward.5} parent=0 // loop_footer_branch
    %12 = sbr.rel target = $region3
  $region8: #{discriminator_forward.5} parent=0 // loop_exit
    _

// kernel: tile.25
$region0: #{tile.25}
  #allocation0 [shape = 's32[1]{0}', space=sflag, size = 0x4, scoped, tag = 'scoped memory for tile.25']
  %s0 = inlined_call_operand.vmem [shape: f32[16], index: 0, kind: input, shape index: {}]
  %s1 = inlined_call_operand.vmem [shape: f32[16,16], index: 1, kind: output, shape index: {}]
  // Predicated region
  $region2: #{tile.25} parent=0 // pred_check
    _
  $region3: #{tile.25} parent=0 // pred_check_branch
    %3 = sbr.rel (0) target = $region5
  $region4: #{tile.25} parent=0 // pred_region
    _
  $region5: #{tile.25} parent=0 // pred_fallthru
    _
  %v4 = vld [vmem:[%s0] ss:$0 sm:$0xff]
  %5 = vst [vmem:[%s1] sm:$0xff] %v4
  %s6 = scalar_lea.vmem %s1, 8
  %7 = vst [vmem:[%s6] sm:$0xff] %v4

// kernel: tile.30
$region0: #{tile.30}
  %s0 = inlined_call_operand.vmem [shape: f32[16,16], index: 0, kind: input, shape index: {}]
  %s1 = inlined_call_operand.vmem [shape: f32[1,256], index: 1, kind: output, shape index: {}]
  $region1: #{tile.30} parent=0
    #allocation0 [shape = 'u8[8192]{0}', space=vmem, size = 0x2000, scoped, tag = 'scoped mem for output reshape']
    %s2 = smov 3
    %v3 = vld [vmem:[%s0] ss:$8 sm:%s2]
    %vm4 = vcmask 130048
    %5 = vst.msk [vmem:[#allocation0] ss:$8 sm:$0x3] %vm4, %v3
    %s6 = scalar_lea.vmem %s0, 7
    %s7 = smov 3
    %v8 = vld [vmem:[%s6] ss:$8 sm:%s7]
    %9 = vrot.lane.b32.xlu0 %v8, 112
    %v10 = vpop.permute.xlu0 %9
    %vm11 = vcmask 1048448
    %12 = vst.msk [vmem:[#allocation0] ss:$8 sm:$0x3] %vm11, %v10
    %s13 = scalar_lea.vmem %s0, 6
    %s14 = smov 3
    %v15 = vld [vmem:[%s13] ss:$8 sm:%s14]
    %16 = vrot.lane.b32.xlu0 %v15, 96
    %v17 = vpop.permute.xlu0 %16
    %vm18 = vcmask 917248
    %19 = vst.msk [vmem:[#allocation0] ss:$8 sm:$0x3] %vm18, %v17
    %s20 = scalar_lea.vmem %s0, 5
    %s21 = smov 3
    %v22 = vld [vmem:[%s20] ss:$8 sm:%s21]
    %23 = vrot.lane.b32.xlu0 %v22, 80
    %v24 = vpop.permute.xlu0 %23
    %vm25 = vcmask 786048
    %26 = vst.msk [vmem:[#allocation0] ss:$8 sm:$0x3] %vm25, %v24
    %s27 = scalar_lea.vmem %s0, 4
    %s28 = smov 3
    %v29 = vld [vmem:[%s27] ss:$8 sm:%s28]
    %30 = vrot.lane.b32.xlu0 %v29, 64
    %v31 = vpop.permute.xlu0 %30
    %vm32 = vcmask 654848
    %33 = vst.msk [vmem:[#allocation0] ss:$8 sm:$0x3] %vm32, %v31
    %s34 = scalar_lea.vmem %s0, 3
    %s35 = smov 3
    %v36 = vld [vmem:[%s34] ss:$8 sm:%s35]
    %37 = vrot.lane.b32.xlu0 %v36, 48
    %v38 = vpop.permute.xlu0 %37
    %vm39 = vcmask 523648
    %40 = vst.msk [vmem:[#allocation0] ss:$8 sm:$0x3] %vm39, %v38
    %s41 = scalar_lea.vmem %s0, 2
    %s42 = smov 3
    %v43 = vld [vmem:[%s41] ss:$8 sm:%s42]
    %44 = vrot.lane.b32.xlu0 %v43, 32
    %v45 = vpop.permute.xlu0 %44
    %vm46 = vcmask 392448
    %47 = vst.msk [vmem:[#allocation0] ss:$8 sm:$0x3] %vm46, %v45
    %s48 = scalar_lea.vmem %s0, 1
    %s49 = smov 3
    %v50 = vld [vmem:[%s48] ss:$8 sm:%s49]
    %51 = vrot.lane.b32.xlu0 %v50, 16
    %v52 = vpop.permute.xlu0 %51
    %vm53 = vcmask 261248
    %54 = vst.msk [vmem:[#allocation0] ss:$8 sm:$0x3] %vm53, %v52
    %s56 = ssub.s32 2, 1
    %v57 = vld [vmem:[#allocation0] sm:%s56]
    %s59 = ssub.s32 2, 1
    %60 = vst [vmem:[%s1] sm:%s59] %v57
    %s61 = scalar_lea.vmem [#allocation0], 8
    %v62 = vld [vmem:[%s61] sm:%s56]
    %s64 = ssub.s32 2, 1
    %s65 = scalar_lea.vmem %s1, 1
    %66 = vst [vmem:[%s65] sm:%s64] %v62

// kernel: discriminator_forward.6
$region0: #{discriminator_forward.6}
  #allocation0 [shape = 'u32[]', space=smem, size = 0x4, offset = 0x4, fixed_abs, tag = 'smem constant byte address 0x4 - core index']
  #allocation1 [shape = 'u32[72,128]{1,0:T(1,128)}', space=vmem, size = 0x9000, scoped, tag = 'internal scratch']
  %s0 = inlined_call_operand.vmem [shape: bf16[128,256], index: 0, kind: input, shape index: {}]
  %s1 = inlined_call_operand.vmem [shape: f32[1,256], index: 1, kind: input, shape index: {}]
  %s2 = inlined_call_operand.vmem [shape: f32[1,256], index: 2, kind: input, shape index: {}]
  %s3 = inlined_call_operand.vmem [shape: bf16[256,128], index: 3, kind: input, shape index: {}]
  %s4 = inlined_call_operand.vmem [shape: f32[1,128], index: 4, kind: input, shape index: {}]
  %s5 = inlined_call_operand.vmem [shape: bf16[128,128], index: 5, kind: output, shape index: {0}]
  %s6 = inlined_call_operand.vmem [shape: f32[1,8,128], index: 6, kind: output, shape index: {1}]
  %7 = xla_tuple %s5, %s6
  %s8 = sld [smem:[#allocation0]]
  $region38: #{discriminator_forward.6} parent=0
    _
  %s10 = ssub.s32 1, %s8
  %s11 = scalar_select 0, %s10, %s8
  // Predicated region
  $region2: #{discriminator_forward.6} parent=0 // pred_check
    _
  $region3: #{discriminator_forward.6} parent=0 // pred_check_branch
    %13 = sbr.rel (0) target = $region5
  $region4: #{discriminator_forward.6} parent=0 // pred_region
    _
  $region5: #{discriminator_forward.6} parent=0 // pred_fallthru
    _
  // Predicated region
  $region6: #{discriminator_forward.6} parent=0 // pred_check
    _
  $region7: #{discriminator_forward.6} parent=0 // pred_check_branch
    %15 = sbr.rel (0) target = $region9
  $region8: #{discriminator_forward.6} parent=0 // pred_region
    _
  $region9: #{discriminator_forward.6} parent=0 // pred_fallthru
    _
  // Predicated region
  $region10: #{discriminator_forward.6} parent=0 // pred_check
    _
  $region11: #{discriminator_forward.6} parent=0 // pred_check_branch
    %17 = sbr.rel (0) target = $region13
  $region12: #{discriminator_forward.6} parent=0 // pred_region
    _
  $region13: #{discriminator_forward.6} parent=0 // pred_fallthru
    _
  // Predicated region
  $region14: #{discriminator_forward.6} parent=0 // pred_check
    _
  $region15: #{discriminator_forward.6} parent=0 // pred_check_branch
    %19 = sbr.rel (0) target = $region17
  $region16: #{discriminator_forward.6} parent=0 // pred_region
    _
  $region17: #{discriminator_forward.6} parent=0 // pred_fallthru
    _
  // Predicated region
  $region18: #{discriminator_forward.6} parent=0 // pred_check
    _
  $region19: #{discriminator_forward.6} parent=0 // pred_check_branch
    %21 = sbr.rel (0) target = $region21
  $region20: #{discriminator_forward.6} parent=0 // pred_region
    _
  $region21: #{discriminator_forward.6} parent=0 // pred_fallthru
    _
  %v22 = vld [vmem:[%s0] sm:$0xff]
  %v23 = vld [vmem:[%s0 + $0x8] sm:$0xff]
  %v24 = vld [vmem:[%s0 + $0x10] sm:$0xff]
  %v25 = vld [vmem:[%s0 + $0x18] sm:$0xff]
  %v26 = vld [vmem:[%s0 + $0x20] sm:$0xff]
  %v27 = vld [vmem:[%s0 + $0x28] sm:$0xff]
  %v28 = vld [vmem:[%s0 + $0x30] sm:$0xff]
  %v29 = vld [vmem:[%s0 + $0x38] sm:$0xff]
  %v30 = vld [vmem:[%s0 + $0x40] sm:$0xff]
  %v31 = vld [vmem:[%s0 + $0x48] sm:$0xff]
  %v32 = vld [vmem:[%s0 + $0x50] sm:$0xff]
  %v33 = vld [vmem:[%s0 + $0x58] sm:$0xff]
  %v34 = vld [vmem:[%s0 + $0x60] sm:$0xff]
  %v35 = vld [vmem:[%s0 + $0x68] sm:$0xff]
  %v36 = vld [vmem:[%s0 + $0x70] sm:$0xff]
  %v37 = vld [vmem:[%s0 + $0x78] sm:$0xff]
  %v38 = vunpack.c.l.bf16 %v22
  %v39 = vunpack.c.h.bf16 %v22
  %v40 = vunpack.c.l.bf16 %v23
  %v41 = vunpack.c.h.bf16 %v23
  %v42 = vunpack.c.l.bf16 %v24
  %v43 = vunpack.c.h.bf16 %v24
  %v44 = vunpack.c.l.bf16 %v25
  %v45 = vunpack.c.h.bf16 %v25
  %v46 = vunpack.c.l.bf16 %v26
  %v47 = vunpack.c.h.bf16 %v26
  %v48 = vunpack.c.l.bf16 %v27
  %v49 = vunpack.c.h.bf16 %v27
  %v50 = vunpack.c.l.bf16 %v28
  %v51 = vunpack.c.h.bf16 %v28
  %v52 = vunpack.c.l.bf16 %v29
  %v53 = vunpack.c.h.bf16 %v29
  %v54 = vunpack.c.l.bf16 %v30
  %v55 = vunpack.c.h.bf16 %v30
  %v56 = vunpack.c.l.bf16 %v31
  %v57 = vunpack.c.h.bf16 %v31
  %v58 = vunpack.c.l.bf16 %v32
  %v59 = vunpack.c.h.bf16 %v32
  %v60 = vunpack.c.l.bf16 %v33
  %v61 = vunpack.c.h.bf16 %v33
  %v62 = vunpack.c.l.bf16 %v34
  %v63 = vunpack.c.h.bf16 %v34
  %v64 = vunpack.c.l.bf16 %v35
  %v65 = vunpack.c.h.bf16 %v35
  %v66 = vunpack.c.l.bf16 %v36
  %v67 = vunpack.c.h.bf16 %v36
  %v68 = vunpack.c.l.bf16 %v37
  %v69 = vunpack.c.h.bf16 %v37
  %v70 = vld [vmem:[%s1] sm:$0x3]
  %v72 = vperm.slane %v70, 0
  %v73 = vperm.slane %v70, 1
  %v76 = vmul.f32 %v38, %v72
  %v77 = vmul.f32 %v39, %v73
  %v78 = vmul.f32 %v40, %v72
  %v79 = vmul.f32 %v41, %v73
  %v80 = vmul.f32 %v42, %v72
  %v81 = vmul.f32 %v43, %v73
  %v82 = vmul.f32 %v44, %v72
  %v83 = vmul.f32 %v45, %v73
  %v84 = vmul.f32 %v46, %v72
  %v85 = vmul.f32 %v47, %v73
  %v86 = vmul.f32 %v48, %v72
  %v87 = vmul.f32 %v49, %v73
  %v88 = vmul.f32 %v50, %v72
  %v89 = vmul.f32 %v51, %v73
  %v90 = vmul.f32 %v52, %v72
  %v91 = vmul.f32 %v53, %v73
  %v92 = vmul.f32 %v54, %v72
  %v93 = vmul.f32 %v55, %v73
  %v94 = vmul.f32 %v56, %v72
  %v95 = vmul.f32 %v57, %v73
  %v96 = vmul.f32 %v58, %v72
  %v97 = vmul.f32 %v59, %v73
  %v98 = vmul.f32 %v60, %v72
  %v99 = vmul.f32 %v61, %v73
  %v100 = vmul.f32 %v62, %v72
  %v101 = vmul.f32 %v63, %v73
  %v102 = vmul.f32 %v64, %v72
  %v103 = vmul.f32 %v65, %v73
  %v104 = vmul.f32 %v66, %v72
  %v105 = vmul.f32 %v67, %v73
  %v106 = vmul.f32 %v68, %v72
  %v107 = vmul.f32 %v69, %v73
  %v108 = vld [vmem:[%s2] sm:$0x3]
  %v110 = vperm.slane %v108, 0
  %v111 = vperm.slane %v108, 1
  %v114 = vadd.f32 %v76, %v110
  %v115 = vadd.f32 %v77, %v111
  %v116 = vadd.f32 %v78, %v110
  %v117 = vadd.f32 %v79, %v111
  %v118 = vadd.f32 %v80, %v110
  %v119 = vadd.f32 %v81, %v111
  %v120 = vadd.f32 %v82, %v110
  %v121 = vadd.f32 %v83, %v111
  %v122 = vadd.f32 %v84, %v110
  %v123 = vadd.f32 %v85, %v111
  %v124 = vadd.f32 %v86, %v110
  %v125 = vadd.f32 %v87, %v111
  %v126 = vadd.f32 %v88, %v110
  %v127 = vadd.f32 %v89, %v111
  %v128 = vadd.f32 %v90, %v110
  %v129 = vadd.f32 %v91, %v111
  %v130 = vadd.f32 %v92, %v110
  %v131 = vadd.f32 %v93, %v111
  %v132 = vadd.f32 %v94, %v110
  %v133 = vadd.f32 %v95, %v111
  %v134 = vadd.f32 %v96, %v110
  %v135 = vadd.f32 %v97, %v111
  %v136 = vadd.f32 %v98, %v110
  %v137 = vadd.f32 %v99, %v111
  %v138 = vadd.f32 %v100, %v110
  %v139 = vadd.f32 %v101, %v111
  %v140 = vadd.f32 %v102, %v110
  %v141 = vadd.f32 %v103, %v111
  %v142 = vadd.f32 %v104, %v110
  %v143 = vadd.f32 %v105, %v111
  %v144 = vadd.f32 %v106, %v110
  %v145 = vadd.f32 %v107, %v111
  %vm146 = vcmp.gt.f32.partialorder %v114, 0.0
  %vm147 = vcmp.gt.f32.partialorder %v115, 0.0
  %vm148 = vcmp.gt.f32.partialorder %v116, 0.0
  %vm149 = vcmp.gt.f32.partialorder %v117, 0.0
  %vm150 = vcmp.gt.f32.partialorder %v118, 0.0
  %vm151 = vcmp.gt.f32.partialorder %v119, 0.0
  %vm152 = vcmp.gt.f32.partialorder %v120, 0.0
  %vm153 = vcmp.gt.f32.partialorder %v121, 0.0
  %vm154 = vcmp.gt.f32.partialorder %v122, 0.0
  %vm155 = vcmp.gt.f32.partialorder %v123, 0.0
  %vm156 = vcmp.gt.f32.partialorder %v124, 0.0
  %vm157 = vcmp.gt.f32.partialorder %v125, 0.0
  %vm158 = vcmp.gt.f32.partialorder %v126, 0.0
  %vm159 = vcmp.gt.f32.partialorder %v127, 0.0
  %vm160 = vcmp.gt.f32.partialorder %v128, 0.0
  %vm161 = vcmp.gt.f32.partialorder %v129, 0.0
  %vm162 = vcmp.gt.f32.partialorder %v130, 0.0
  %vm163 = vcmp.gt.f32.partialorder %v131, 0.0
  %vm164 = vcmp.gt.f32.partialorder %v132, 0.0
  %vm165 = vcmp.gt.f32.partialorder %v133, 0.0
  %vm166 = vcmp.gt.f32.partialorder %v134, 0.0
  %vm167 = vcmp.gt.f32.partialorder %v135, 0.0
  %vm168 = vcmp.gt.f32.partialorder %v136, 0.0
  %vm169 = vcmp.gt.f32.partialorder %v137, 0.0
  %vm170 = vcmp.gt.f32.partialorder %v138, 0.0
  %vm171 = vcmp.gt.f32.partialorder %v139, 0.0
  %vm172 = vcmp.gt.f32.partialorder %v140, 0.0
  %vm173 = vcmp.gt.f32.partialorder %v141, 0.0
  %vm174 = vcmp.gt.f32.partialorder %v142, 0.0
  %vm175 = vcmp.gt.f32.partialorder %v143, 0.0
  %vm176 = vcmp.gt.f32.partialorder %v144, 0.0
  %vm177 = vcmp.gt.f32.partialorder %v145, 0.0
  %v178 = vmul.f32 %v114, 0.2
  %v179 = vmul.f32 %v115, 0.2
  %v180 = vmul.f32 %v116, 0.2
  %v181 = vmul.f32 %v117, 0.2
  %v182 = vmul.f32 %v118, 0.2
  %v183 = vmul.f32 %v119, 0.2
  %v184 = vmul.f32 %v120, 0.2
  %v185 = vmul.f32 %v121, 0.2
  %v186 = vmul.f32 %v122, 0.2
  %v187 = vmul.f32 %v123, 0.2
  %v188 = vmul.f32 %v124, 0.2
  %v189 = vmul.f32 %v125, 0.2
  %v190 = vmul.f32 %v126, 0.2
  %v191 = vmul.f32 %v127, 0.2
  %v192 = vmul.f32 %v128, 0.2
  %v193 = vmul.f32 %v129, 0.2
  %v194 = vmul.f32 %v130, 0.2
  %v195 = vmul.f32 %v131, 0.2
  %v196 = vmul.f32 %v132, 0.2
  %v197 = vmul.f32 %v133, 0.2
  %v198 = vmul.f32 %v134, 0.2
  %v199 = vmul.f32 %v135, 0.2
  %v200 = vmul.f32 %v136, 0.2
  %v201 = vmul.f32 %v137, 0.2
  %v202 = vmul.f32 %v138, 0.2
  %v203 = vmul.f32 %v139, 0.2
  %v204 = vmul.f32 %v140, 0.2
  %v205 = vmul.f32 %v141, 0.2
  %v206 = vmul.f32 %v142, 0.2
  %v207 = vmul.f32 %v143, 0.2
  %v208 = vmul.f32 %v144, 0.2
  %v209 = vmul.f32 %v145, 0.2
  %v210 = vsel %vm146, %v114, %v178
  %v211 = vsel %vm147, %v115, %v179
  %v212 = vsel %vm148, %v116, %v180
  %v213 = vsel %vm149, %v117, %v181
  %v214 = vsel %vm150, %v118, %v182
  %v215 = vsel %vm151, %v119, %v183
  %v216 = vsel %vm152, %v120, %v184
  %v217 = vsel %vm153, %v121, %v185
  %v218 = vsel %vm154, %v122, %v186
  %v219 = vsel %vm155, %v123, %v187
  %v220 = vsel %vm156, %v124, %v188
  %v221 = vsel %vm157, %v125, %v189
  %v222 = vsel %vm158, %v126, %v190
  %v223 = vsel %vm159, %v127, %v191
  %v224 = vsel %vm160, %v128, %v192
  %v225 = vsel %vm161, %v129, %v193
  %v226 = vsel %vm162, %v130, %v194
  %v227 = vsel %vm163, %v131, %v195
  %v228 = vsel %vm164, %v132, %v196
  %v229 = vsel %vm165, %v133, %v197
  %v230 = vsel %vm166, %v134, %v198
  %v231 = vsel %vm167, %v135, %v199
  %v232 = vsel %vm168, %v136, %v200
  %v233 = vsel %vm169, %v137, %v201
  %v234 = vsel %vm170, %v138, %v202
  %v235 = vsel %vm171, %v139, %v203
  %v236 = vsel %vm172, %v140, %v204
  %v237 = vsel %vm173, %v141, %v205
  %v238 = vsel %vm174, %v142, %v206
  %v239 = vsel %vm175, %v143, %v207
  %v240 = vsel %vm176, %v144, %v208
  %v241 = vsel %vm177, %v145, %v209
  %v242 = vpack.c.bf16 %v212, %v210
  %v243 = vpack.c.bf16 %v213, %v211
  %v244 = vpack.c.bf16 %v216, %v214
  %v245 = vpack.c.bf16 %v217, %v215
  %v246 = vpack.c.bf16 %v220, %v218
  %v247 = vpack.c.bf16 %v221, %v219
  %v248 = vpack.c.bf16 %v224, %v222
  %v249 = vpack.c.bf16 %v225, %v223
  %v250 = vpack.c.bf16 %v228, %v226
  %v251 = vpack.c.bf16 %v229, %v227
  %v252 = vpack.c.bf16 %v232, %v230
  %v253 = vpack.c.bf16 %v233, %v231
  %v254 = vpack.c.bf16 %v236, %v234
  %v255 = vpack.c.bf16 %v237, %v235
  %v256 = vpack.c.bf16 %v240, %v238
  %v257 = vpack.c.bf16 %v241, %v239
  %v258 = vld [vmem:[%s3] sm:$0xf]
  %v259 = vld [vmem:[%s3 + $0x4] sm:$0xf]
  %v260 = vld [vmem:[%s3 + $0x8] sm:$0xf]
  %v261 = vld [vmem:[%s3 + $0xc] sm:$0xf]
  %v262 = vld [vmem:[%s3 + $0x10] sm:$0xf]
  %v263 = vld [vmem:[%s3 + $0x14] sm:$0xf]
  %v264 = vld [vmem:[%s3 + $0x18] sm:$0xf]
  %v265 = vld [vmem:[%s3 + $0x1c] sm:$0xf]
  %v266 = vld [vmem:[%s3 + $0x20] sm:$0xf]
  %v267 = vld [vmem:[%s3 + $0x24] sm:$0xf]
  %v268 = vld [vmem:[%s3 + $0x28] sm:$0xf]
  %v269 = vld [vmem:[%s3 + $0x2c] sm:$0xf]
  %v270 = vld [vmem:[%s3 + $0x30] sm:$0xf]
  %v271 = vld [vmem:[%s3 + $0x34] sm:$0xf]
  %v272 = vld [vmem:[%s3 + $0x38] sm:$0xf]
  %v273 = vld [vmem:[%s3 + $0x3c] sm:$0xf]
  %v274 = vld [vmem:[%s3 + $0x40] sm:$0xf]
  %v275 = vld [vmem:[%s3 + $0x44] sm:$0xf]
  %v276 = vld [vmem:[%s3 + $0x48] sm:$0xf]
  %v277 = vld [vmem:[%s3 + $0x4c] sm:$0xf]
  %v278 = vld [vmem:[%s3 + $0x50] sm:$0xf]
  %v279 = vld [vmem:[%s3 + $0x54] sm:$0xf]
  %v280 = vld [vmem:[%s3 + $0x58] sm:$0xf]
  %v281 = vld [vmem:[%s3 + $0x5c] sm:$0xf]
  %v282 = vld [vmem:[%s3 + $0x60] sm:$0xf]
  %v283 = vld [vmem:[%s3 + $0x64] sm:$0xf]
  %v284 = vld [vmem:[%s3 + $0x68] sm:$0xf]
  %v285 = vld [vmem:[%s3 + $0x6c] sm:$0xf]
  %v286 = vld [vmem:[%s3 + $0x70] sm:$0xf]
  %v287 = vld [vmem:[%s3 + $0x74] sm:$0xf]
  %v288 = vld [vmem:[%s3 + $0x78] sm:$0xf]
  %v289 = vld [vmem:[%s3 + $0x7c] sm:$0xf]
  %v290 = vld [vmem:[%s4] sm:$0x1]
  %v292 = vperm.slane %v290, 0
  %v326 = vunpack.c.l.b16 %v258
  %v327 = vunpack.c.l.b16 %v259
  %v328 = vunpack.c.l.b16 %v260
  %v329 = vunpack.c.l.b16 %v261
  %v330 = vunpack.c.l.b16 %v262
  %v331 = vunpack.c.l.b16 %v263
  %v332 = vunpack.c.l.b16 %v264
  %v333 = vunpack.c.l.b16 %v265
  %v334 = vunpack.c.l.b16 %v266
  %v335 = vunpack.c.l.b16 %v267
  %v336 = vunpack.c.l.b16 %v268
  %v337 = vunpack.c.l.b16 %v269
  %v338 = vunpack.c.l.b16 %v270
  %v339 = vunpack.c.l.b16 %v271
  %v340 = vunpack.c.l.b16 %v272
  %v341 = vunpack.c.l.b16 %v273
  %v342 = vunpack.c.l.b16 %v274
  %v343 = vunpack.c.l.b16 %v275
  %v344 = vunpack.c.l.b16 %v276
  %v345 = vunpack.c.l.b16 %v277
  %v346 = vunpack.c.l.b16 %v278
  %v347 = vunpack.c.l.b16 %v279
  %v348 = vunpack.c.l.b16 %v280
  %v349 = vunpack.c.l.b16 %v281
  %v350 = vunpack.c.l.b16 %v282
  %v351 = vunpack.c.l.b16 %v283
  %v352 = vunpack.c.l.b16 %v284
  %v353 = vunpack.c.l.b16 %v285
  %v354 = vunpack.c.l.b16 %v286
  %v355 = vunpack.c.l.b16 %v287
  %v356 = vunpack.c.l.b16 %v288
  %v357 = vunpack.c.l.b16 %v289
  %v358 = vpack.c.b16 %v327, %v326
  %v359 = vpack.c.b16 %v329, %v328
  %v360 = vpack.c.b16 %v331, %v330
  %v361 = vpack.c.b16 %v333, %v332
  %v362 = vpack.c.b16 %v335, %v334
  %v363 = vpack.c.b16 %v337, %v336
  %v364 = vpack.c.b16 %v339, %v338
  %v365 = vpack.c.b16 %v341, %v340
  %v366 = vpack.c.b16 %v343, %v342
  %v367 = vpack.c.b16 %v345, %v344
  %v368 = vpack.c.b16 %v347, %v346
  %v369 = vpack.c.b16 %v349, %v348
  %v370 = vpack.c.b16 %v351, %v350
  %v371 = vpack.c.b16 %v353, %v352
  %v372 = vpack.c.b16 %v355, %v354
  %v373 = vpack.c.b16 %v357, %v356
  %390 = vmatpush.bf16.msra.mxu0 %v365
  %391 = vmatpush.bf16.msra.mxu0 %v364
  %392 = vmatpush.bf16.msra.mxu0 %v363
  %393 = vmatpush.bf16.msra.mxu0 %v362
  %394 = vmatpush.bf16.msra.mxu0 %v361
  %395 = vmatpush.bf16.msra.mxu0 %v360
  %396 = vmatpush.bf16.msra.mxu0 %v359
  %397 = vmatpush.bf16.msra.mxu0 %v358
  %398 = vmatmul.bf16.gmra.mxu0 %v242
  %v399 = vpop.f32.mrf.mxu0
  %v400 = vadd.f32 %v292, %v399
  %v401 = vpop.f32.mrf.mxu0
  %v402 = vadd.f32 %v292, %v401
  %403 = vmatmul.bf16.gmra.mxu0 %v244
  %v404 = vpop.f32.mrf.mxu0
  %v405 = vadd.f32 %v292, %v404
  %v406 = vpop.f32.mrf.mxu0
  %v407 = vadd.f32 %v292, %v406
  %408 = vmatmul.bf16.gmra.mxu0 %v246
  %v409 = vpop.f32.mrf.mxu0
  %v410 = vadd.f32 %v292, %v409
  %v411 = vpop.f32.mrf.mxu0
  %v412 = vadd.f32 %v292, %v411
  %413 = vmatmul.bf16.gmra.mxu0 %v248
  %v414 = vpop.f32.mrf.mxu0
  %v415 = vadd.f32 %v292, %v414
  %v416 = vpop.f32.mrf.mxu0
  %v417 = vadd.f32 %v292, %v416
  %418 = vmatmul.bf16.gmra.mxu0 %v250
  %v419 = vpop.f32.mrf.mxu0
  %v420 = vadd.f32 %v292, %v419
  %v421 = vpop.f32.mrf.mxu0
  %v422 = vadd.f32 %v292, %v421
  %423 = vmatmul.bf16.gmra.mxu0 %v252
  %v424 = vpop.f32.mrf.mxu0
  %v425 = vadd.f32 %v292, %v424
  %v426 = vpop.f32.mrf.mxu0
  %v427 = vadd.f32 %v292, %v426
  %428 = vmatmul.bf16.gmra.mxu0 %v254
  %v429 = vpop.f32.mrf.mxu0
  %v430 = vadd.f32 %v292, %v429
  %v431 = vpop.f32.mrf.mxu0
  %v432 = vadd.f32 %v292, %v431
  %433 = vmatmul.bf16.gmra.mxu0 %v256
  %v434 = vpop.f32.mrf.mxu0
  %v435 = vadd.f32 %v292, %v434
  %v436 = vpop.f32.mrf.mxu0
  %v437 = vadd.f32 %v292, %v436
  %438 = vdwg.mxu0
  %439 = vmatpush.bf16.msra.mxu0 %v373
  %440 = vmatpush.bf16.msra.mxu0 %v372
  %441 = vmatpush.bf16.msra.mxu0 %v371
  %442 = vmatpush.bf16.msra.mxu0 %v370
  %443 = vmatpush.bf16.msra.mxu0 %v369
  %444 = vmatpush.bf16.msra.mxu0 %v368
  %445 = vmatpush.bf16.msra.mxu0 %v367
  %446 = vmatpush.bf16.msra.mxu0 %v366
  %447 = vmatmul.bf16.gmra.mxu0 %v243
  %v448 = vpop.f32.mrf.mxu0
  %v449 = vadd.f32 %v400, %v448
  %v450 = vpop.f32.mrf.mxu0
  %v451 = vadd.f32 %v402, %v450
  %452 = vmatmul.bf16.gmra.mxu0 %v245
  %v453 = vpop.f32.mrf.mxu0
  %v454 = vadd.f32 %v405, %v453
  %v455 = vpop.f32.mrf.mxu0
  %v456 = vadd.f32 %v407, %v455
  %457 = vmatmul.bf16.gmra.mxu0 %v247
  %v458 = vpop.f32.mrf.mxu0
  %v459 = vadd.f32 %v410, %v458
  %v460 = vpop.f32.mrf.mxu0
  %v461 = vadd.f32 %v412, %v460
  %462 = vmatmul.bf16.gmra.mxu0 %v249
  %v463 = vpop.f32.mrf.mxu0
  %v464 = vadd.f32 %v415, %v463
  %v465 = vpop.f32.mrf.mxu0
  %v466 = vadd.f32 %v417, %v465
  %467 = vmatmul.bf16.gmra.mxu0 %v251
  %v468 = vpop.f32.mrf.mxu0
  %v469 = vadd.f32 %v420, %v468
  %v470 = vpop.f32.mrf.mxu0
  %v471 = vadd.f32 %v422, %v470
  %472 = vmatmul.bf16.gmra.mxu0 %v253
  %v473 = vpop.f32.mrf.mxu0
  %v474 = vadd.f32 %v425, %v473
  %v475 = vpop.f32.mrf.mxu0
  %v476 = vadd.f32 %v427, %v475
  %477 = vmatmul.bf16.gmra.mxu0 %v255
  %v478 = vpop.f32.mrf.mxu0
  %v479 = vadd.f32 %v430, %v478
  %v480 = vpop.f32.mrf.mxu0
  %v481 = vadd.f32 %v432, %v480
  %482 = vmatmul.bf16.gmra.mxu0 %v257
  %v483 = vpop.f32.mrf.mxu0
  %v484 = vadd.f32 %v435, %v483
  %v485 = vpop.f32.mrf.mxu0
  %v486 = vadd.f32 %v437, %v485
  %487 = vdwg.mxu0
  %v488 = vadd.f32 %v449, %v451
  %v489 = vadd.f32 %v488, %v454
  %v490 = vadd.f32 %v489, %v456
  %v491 = vadd.f32 %v490, %v459
  %v492 = vadd.f32 %v491, %v461
  %v493 = vadd.f32 %v492, %v464
  %v494 = vadd.f32 %v493, %v466
  %v495 = vadd.f32 %v494, %v469
  %v496 = vadd.f32 %v495, %v471
  %v497 = vadd.f32 %v496, %v474
  %v498 = vadd.f32 %v497, %v476
  %v499 = vadd.f32 %v498, %v479
  %v500 = vadd.f32 %v499, %v481
  %v501 = vadd.f32 %v500, %v484
  %v502 = vadd.f32 %v501, %v486
  %v503 = vrot.slane %v502, 4
  %v504 = vadd.f32 %v502, %v503
  %v505 = vrot.slane %v504, 2
  %v506 = vadd.f32 %v504, %v505
  %v507 = vrot.slane %v506, 1
  %v508 = vadd.f32 %v506, %v507
  %v509 = vmul.f32 %v449, %v449
  %v510 = vmul.f32 %v451, %v451
  %v511 = vmul.f32 %v454, %v454
  %v512 = vmul.f32 %v456, %v456
  %v513 = vmul.f32 %v459, %v459
  %v514 = vmul.f32 %v461, %v461
  %v515 = vmul.f32 %v464, %v464
  %v516 = vmul.f32 %v466, %v466
  %v517 = vmul.f32 %v469, %v469
  %v518 = vmul.f32 %v471, %v471
  %v519 = vmul.f32 %v474, %v474
  %v520 = vmul.f32 %v476, %v476
  %v521 = vmul.f32 %v479, %v479
  %v522 = vmul.f32 %v481, %v481
  %v523 = vmul.f32 %v484, %v484
  %v524 = vmul.f32 %v486, %v486
  %v525 = vadd.f32 %v509, %v510
  %v526 = vadd.f32 %v525, %v511
  %v527 = vadd.f32 %v526, %v512
  %v528 = vadd.f32 %v527, %v513
  %v529 = vadd.f32 %v528, %v514
  %v530 = vadd.f32 %v529, %v515
  %v531 = vadd.f32 %v530, %v516
  %v532 = vadd.f32 %v531, %v517
  %v533 = vadd.f32 %v532, %v518
  %v534 = vadd.f32 %v533, %v519
  %v535 = vadd.f32 %v534, %v520
  %v536 = vadd.f32 %v535, %v521
  %v537 = vadd.f32 %v536, %v522
  %v538 = vadd.f32 %v537, %v523
  %v539 = vadd.f32 %v538, %v524
  %v540 = vrot.slane %v539, 4
  %v541 = vadd.f32 %v539, %v540
  %v542 = vrot.slane %v541, 2
  %v543 = vadd.f32 %v541, %v542
  %v544 = vrot.slane %v543, 1
  %v545 = vadd.f32 %v543, %v544
  %vm546 = vcmask 1040384
  %v547 = vsel %vm546, %v508, %v545
  %vm548 = vcmask 1041408
  %v549 = vsel %vm548, %v547, 0.0
  %550 = vst [vmem:[%s6] sm:$0xff] %v549
  %v551 = vpack.c.bf16 %v449, %v449
  %v552 = vpack.c.bf16 %v451, %v451
  %v553 = vpack.c.bf16 %v454, %v454
  %v554 = vpack.c.bf16 %v456, %v456
  %v555 = vpack.c.bf16 %v459, %v459
  %v556 = vpack.c.bf16 %v461, %v461
  %v557 = vpack.c.bf16 %v464, %v464
  %v558 = vpack.c.bf16 %v466, %v466
  %v559 = vpack.c.bf16 %v469, %v469
  %v560 = vpack.c.bf16 %v471, %v471
  %v561 = vpack.c.bf16 %v474, %v474
  %v562 = vpack.c.bf16 %v476, %v476
  %v563 = vpack.c.bf16 %v479, %v479
  %v564 = vpack.c.bf16 %v481, %v481
  %v565 = vpack.c.bf16 %v484, %v484
  %v566 = vpack.c.bf16 %v486, %v486
  %567 = vst [vmem:[%s5] sm:$0xf] %v551
  %568 = vst [vmem:[%s5 + $0x4] sm:$0xf] %v552
  %569 = vst [vmem:[%s5 + $0x8] sm:$0xf] %v553
  %570 = vst [vmem:[%s5 + $0xc] sm:$0xf] %v554
  %571 = vst [vmem:[%s5 + $0x10] sm:$0xf] %v555
  %572 = vst [vmem:[%s5 + $0x14] sm:$0xf] %v556
  %573 = vst [vmem:[%s5 + $0x18] sm:$0xf] %v557
  %574 = vst [vmem:[%s5 + $0x1c] sm:$0xf] %v558
  %575 = vst [vmem:[%s5 + $0x20] sm:$0xf] %v559
  %576 = vst [vmem:[%s5 + $0x24] sm:$0xf] %v560
  %577 = vst [vmem:[%s5 + $0x28] sm:$0xf] %v561
  %578 = vst [vmem:[%s5 + $0x2c] sm:$0xf] %v562
  %579 = vst [vmem:[%s5 + $0x30] sm:$0xf] %v563
  %580 = vst [vmem:[%s5 + $0x34] sm:$0xf] %v564
  %581 = vst [vmem:[%s5 + $0x38] sm:$0xf] %v565
  %582 = vst [vmem:[%s5 + $0x3c] sm:$0xf] %v566
  // Predicated region
  $region22: #{discriminator_forward.6} parent=0 // pred_check
    _
  $region23: #{discriminator_forward.6} parent=0 // pred_check_branch
    %584 = sbr.rel (0) target = $region25
  $region24: #{discriminator_forward.6} parent=0 // pred_region
    _
  $region25: #{discriminator_forward.6} parent=0 // pred_fallthru
    _
  // Predicated region
  $region26: #{discriminator_forward.6} parent=0 // pred_check
    _
  $region27: #{discriminator_forward.6} parent=0 // pred_check_branch
    %586 = sbr.rel (0) target = $region29
  $region28: #{discriminator_forward.6} parent=0 // pred_region
    _
  $region29: #{discriminator_forward.6} parent=0 // pred_fallthru
    _
  // Predicated region
  $region30: #{discriminator_forward.6} parent=0 // pred_check
    _
  $region31: #{discriminator_forward.6} parent=0 // pred_check_branch
    %588 = sbr.rel (0) target = $region33
  $region32: #{discriminator_forward.6} parent=0 // pred_region
    _
  $region33: #{discriminator_forward.6} parent=0 // pred_fallthru
    _
  // Predicated region
  $region34: #{discriminator_forward.6} parent=0 // pred_check
    _
  $region35: #{discriminator_forward.6} parent=0 // pred_check_branch
    %590 = sbr.rel (0) target = $region37
  $region36: #{discriminator_forward.6} parent=0 // pred_region
    _
  $region37: #{discriminator_forward.6} parent=0 // pred_fallthru
    _

// kernel: tile.35
$region0: #{tile.35}
  #allocation0 [shape = 's32[1]{0}', space=sflag, size = 0x4, scoped, tag = 'scoped memory for tile.35']
  %s0 = inlined_call_operand.vmem [shape: f32[32], index: 0, kind: input, shape index: {}]
  %s1 = inlined_call_operand.vmem [shape: f32[16,32], index: 1, kind: output, shape index: {}]
  // Predicated region
  $region2: #{tile.35} parent=0 // pred_check
    _
  $region3: #{tile.35} parent=0 // pred_check_branch
    %3 = sbr.rel (0) target = $region5
  $region4: #{tile.35} parent=0 // pred_region
    _
  $region5: #{tile.35} parent=0 // pred_fallthru
    _
  %v4 = vld [vmem:[%s0] ss:$0 sm:$0xff]
  %5 = vst [vmem:[%s1] sm:$0xff] %v4
  %s6 = scalar_lea.vmem %s1, 8
  %7 = vst [vmem:[%s6] sm:$0xff] %v4

// kernel: tile.40
$region0: #{tile.40}
  %s0 = inlined_call_operand.vmem [shape: f32[16,32], index: 0, kind: input, shape index: {}]
  %s1 = inlined_call_operand.vmem [shape: f32[1,512], index: 1, kind: output, shape index: {}]
  $region1: #{tile.40} parent=0
    #allocation0 [shape = 'u8[16384]{0}', space=vmem, size = 0x4000, scoped, tag = 'scoped mem for output reshape']
    %v2 = vld [vmem:[%s0] ss:$4 sm:$0xf]
    %vm3 = vcmask 261120
    %4 = vst.msk [vmem:[#allocation0] ss:$8 sm:$0xf] %vm3, %v2
    %s5 = scalar_lea.vmem %s0, 3
    %v6 = vld [vmem:[%s5] ss:$4 sm:$0xf]
    %7 = vrot.lane.b32.xlu0 %v6, 96
    %v8 = vpop.permute.xlu0 %7
    %vm9 = vcmask 1048320
    %10 = vst.msk [vmem:[#allocation0] ss:$8 sm:$0xf] %vm9, %v8
    %s11 = scalar_lea.vmem %s0, 2
    %v12 = vld [vmem:[%s11] ss:$4 sm:$0xf]
    %13 = vrot.lane.b32.xlu0 %v12, 64
    %v14 = vpop.permute.xlu0 %13
    %vm15 = vcmask 785920
    %16 = vst.msk [vmem:[#allocation0] ss:$8 sm:$0xf] %vm15, %v14
    %s17 = scalar_lea.vmem %s0, 1
    %v18 = vld [vmem:[%s17] ss:$4 sm:$0xf]
    %19 = vrot.lane.b32.xlu0 %v18, 32
    %v20 = vpop.permute.xlu0 %19
    %vm21 = vcmask 523520
    %22 = vst.msk [vmem:[#allocation0] ss:$8 sm:$0xf] %vm21, %v20
    %s24 = ssub.s32 2, 1
    %v25 = vld [vmem:[#allocation0] sm:%s24]
    %s27 = ssub.s32 2, 1
    %28 = vst [vmem:[%s1] sm:%s27] %v25
    %s29 = scalar_lea.vmem [#allocation0], 8
    %v30 = vld [vmem:[%s29] sm:%s24]
    %s32 = ssub.s32 2, 1
    %s33 = scalar_lea.vmem %s1, 1
    %34 = vst [vmem:[%s33] sm:%s32] %v30
    %s35 = scalar_lea.vmem [#allocation0], 16
    %v36 = vld [vmem:[%s35] sm:%s24]
    %s38 = ssub.s32 2, 1
    %s39 = scalar_lea.vmem %s1, 2
    %40 = vst [vmem:[%s39] sm:%s38] %v36
    %s41 = scalar_lea.vmem [#allocation0], 24
    %v42 = vld [vmem:[%s41] sm:%s24]
    %s44 = ssub.s32 2, 1
    %s45 = scalar_lea.vmem %s1, 3
    %46 = vst [vmem:[%s45] sm:%s44] %v42

// kernel: discriminator_forward.7
$region0: #{discriminator_forward.7}
  #allocation0 [shape = 'u32[]', space=smem, size = 0x4, offset = 0x4, fixed_abs, tag = 'smem constant byte address 0x4 - core index']
  #allocation1 [shape = 'u32[72,128]{1,0:T(1,128)}', space=vmem, size = 0x9000, scoped, tag = 'internal scratch']
  %s0 = inlined_call_operand.vmem [shape: bf16[32,512], index: 0, kind: input, shape index: {}]
  %s1 = inlined_call_operand.vmem [shape: f32[1,512], index: 1, kind: input, shape index: {}]
  %s2 = inlined_call_operand.vmem [shape: f32[1,512], index: 2, kind: input, shape index: {}]
  %s3 = inlined_call_operand.vmem [shape: bf16[512,128], index: 3, kind: input, shape index: {}]
  %s4 = inlined_call_operand.vmem [shape: f32[1,128], index: 4, kind: input, shape index: {}]
  %s5 = inlined_call_operand.vmem [shape: bf16[32,128], index: 5, kind: output, shape index: {0}]
  %s6 = inlined_call_operand.vmem [shape: f32[1,8,128], index: 6, kind: output, shape index: {1}]
  %7 = xla_tuple %s5, %s6
  %s8 = sld [smem:[#allocation0]]
  $region38: #{discriminator_forward.7} parent=0
    _
  %s10 = ssub.s32 1, %s8
  %s11 = scalar_select 0, %s10, %s8
  // Predicated region
  $region2: #{discriminator_forward.7} parent=0 // pred_check
    _
  $region3: #{discriminator_forward.7} parent=0 // pred_check_branch
    %13 = sbr.rel (0) target = $region5
  $region4: #{discriminator_forward.7} parent=0 // pred_region
    _
  $region5: #{discriminator_forward.7} parent=0 // pred_fallthru
    _
  // Predicated region
  $region6: #{discriminator_forward.7} parent=0 // pred_check
    _
  $region7: #{discriminator_forward.7} parent=0 // pred_check_branch
    %15 = sbr.rel (0) target = $region9
  $region8: #{discriminator_forward.7} parent=0 // pred_region
    _
  $region9: #{discriminator_forward.7} parent=0 // pred_fallthru
    _
  // Predicated region
  $region10: #{discriminator_forward.7} parent=0 // pred_check
    _
  $region11: #{discriminator_forward.7} parent=0 // pred_check_branch
    %17 = sbr.rel (0) target = $region13
  $region12: #{discriminator_forward.7} parent=0 // pred_region
    _
  $region13: #{discriminator_forward.7} parent=0 // pred_fallthru
    _
  // Predicated region
  $region14: #{discriminator_forward.7} parent=0 // pred_check
    _
  $region15: #{discriminator_forward.7} parent=0 // pred_check_branch
    %19 = sbr.rel (0) target = $region17
  $region16: #{discriminator_forward.7} parent=0 // pred_region
    _
  $region17: #{discriminator_forward.7} parent=0 // pred_fallthru
    _
  // Predicated region
  $region18: #{discriminator_forward.7} parent=0 // pred_check
    _
  $region19: #{discriminator_forward.7} parent=0 // pred_check_branch
    %21 = sbr.rel (0) target = $region21
  $region20: #{discriminator_forward.7} parent=0 // pred_region
    _
  $region21: #{discriminator_forward.7} parent=0 // pred_fallthru
    _
  %v22 = vld [vmem:[%s0] sm:$0xff]
  %v23 = vld [vmem:[%s0 + $0x8] sm:$0xff]
  %v24 = vld [vmem:[%s0 + $0x10] sm:$0xff]
  %v25 = vld [vmem:[%s0 + $0x18] sm:$0xff]
  %v26 = vld [vmem:[%s0 + $0x20] sm:$0xff]
  %v27 = vld [vmem:[%s0 + $0x28] sm:$0xff]
  %v28 = vld [vmem:[%s0 + $0x30] sm:$0xff]
  %v29 = vld [vmem:[%s0 + $0x38] sm:$0xff]
  %v30 = vunpack.c.l.bf16 %v22
  %v31 = vunpack.c.h.bf16 %v22
  %v32 = vunpack.c.l.bf16 %v23
  %v33 = vunpack.c.h.bf16 %v23
  %v34 = vunpack.c.l.bf16 %v24
  %v35 = vunpack.c.h.bf16 %v24
  %v36 = vunpack.c.l.bf16 %v25
  %v37 = vunpack.c.h.bf16 %v25
  %v38 = vunpack.c.l.bf16 %v26
  %v39 = vunpack.c.h.bf16 %v26
  %v40 = vunpack.c.l.bf16 %v27
  %v41 = vunpack.c.h.bf16 %v27
  %v42 = vunpack.c.l.bf16 %v28
  %v43 = vunpack.c.h.bf16 %v28
  %v44 = vunpack.c.l.bf16 %v29
  %v45 = vunpack.c.h.bf16 %v29
  %v46 = vld [vmem:[%s1] sm:$0xf]
  %v48 = vperm.slane %v46, 0
  %v49 = vperm.slane %v46, 1
  %v50 = vperm.slane %v46, 2
  %v51 = vperm.slane %v46, 3
  %v56 = vmul.f32 %v30, %v48
  %v57 = vmul.f32 %v31, %v49
  %v58 = vmul.f32 %v32, %v50
  %v59 = vmul.f32 %v33, %v51
  %v60 = vmul.f32 %v34, %v48
  %v61 = vmul.f32 %v35, %v49
  %v62 = vmul.f32 %v36, %v50
  %v63 = vmul.f32 %v37, %v51
  %v64 = vmul.f32 %v38, %v48
  %v65 = vmul.f32 %v39, %v49
  %v66 = vmul.f32 %v40, %v50
  %v67 = vmul.f32 %v41, %v51
  %v68 = vmul.f32 %v42, %v48
  %v69 = vmul.f32 %v43, %v49
  %v70 = vmul.f32 %v44, %v50
  %v71 = vmul.f32 %v45, %v51
  %v72 = vld [vmem:[%s2] sm:$0xf]
  %v74 = vperm.slane %v72, 0
  %v75 = vperm.slane %v72, 1
  %v76 = vperm.slane %v72, 2
  %v77 = vperm.slane %v72, 3
  %v82 = vadd.f32 %v56, %v74
  %v83 = vadd.f32 %v57, %v75
  %v84 = vadd.f32 %v58, %v76
  %v85 = vadd.f32 %v59, %v77
  %v86 = vadd.f32 %v60, %v74
  %v87 = vadd.f32 %v61, %v75
  %v88 = vadd.f32 %v62, %v76
  %v89 = vadd.f32 %v63, %v77
  %v90 = vadd.f32 %v64, %v74
  %v91 = vadd.f32 %v65, %v75
  %v92 = vadd.f32 %v66, %v76
  %v93 = vadd.f32 %v67, %v77
  %v94 = vadd.f32 %v68, %v74
  %v95 = vadd.f32 %v69, %v75
  %v96 = vadd.f32 %v70, %v76
  %v97 = vadd.f32 %v71, %v77
  %vm98 = vcmp.gt.f32.partialorder %v82, 0.0
  %vm99 = vcmp.gt.f32.partialorder %v83, 0.0
  %vm100 = vcmp.gt.f32.partialorder %v84, 0.0
  %vm101 = vcmp.gt.f32.partialorder %v85, 0.0
  %vm102 = vcmp.gt.f32.partialorder %v86, 0.0
  %vm103 = vcmp.gt.f32.partialorder %v87, 0.0
  %vm104 = vcmp.gt.f32.partialorder %v88, 0.0
  %vm105 = vcmp.gt.f32.partialorder %v89, 0.0
  %vm106 = vcmp.gt.f32.partialorder %v90, 0.0
  %vm107 = vcmp.gt.f32.partialorder %v91, 0.0
  %vm108 = vcmp.gt.f32.partialorder %v92, 0.0
  %vm109 = vcmp.gt.f32.partialorder %v93, 0.0
  %vm110 = vcmp.gt.f32.partialorder %v94, 0.0
  %vm111 = vcmp.gt.f32.partialorder %v95, 0.0
  %vm112 = vcmp.gt.f32.partialorder %v96, 0.0
  %vm113 = vcmp.gt.f32.partialorder %v97, 0.0
  %v114 = vmul.f32 %v82, 0.2
  %v115 = vmul.f32 %v83, 0.2
  %v116 = vmul.f32 %v84, 0.2
  %v117 = vmul.f32 %v85, 0.2
  %v118 = vmul.f32 %v86, 0.2
  %v119 = vmul.f32 %v87, 0.2
  %v120 = vmul.f32 %v88, 0.2
  %v121 = vmul.f32 %v89, 0.2
  %v122 = vmul.f32 %v90, 0.2
  %v123 = vmul.f32 %v91, 0.2
  %v124 = vmul.f32 %v92, 0.2
  %v125 = vmul.f32 %v93, 0.2
  %v126 = vmul.f32 %v94, 0.2
  %v127 = vmul.f32 %v95, 0.2
  %v128 = vmul.f32 %v96, 0.2
  %v129 = vmul.f32 %v97, 0.2
  %v130 = vsel %vm98, %v82, %v114
  %v131 = vsel %vm99, %v83, %v115
  %v132 = vsel %vm100, %v84, %v116
  %v133 = vsel %vm101, %v85, %v117
  %v134 = vsel %vm102, %v86, %v118
  %v135 = vsel %vm103, %v87, %v119
  %v136 = vsel %vm104, %v88, %v120
  %v137 = vsel %vm105, %v89, %v121
  %v138 = vsel %vm106, %v90, %v122
  %v139 = vsel %vm107, %v91, %v123
  %v140 = vsel %vm108, %v92, %v124
  %v141 = vsel %vm109, %v93, %v125
  %v142 = vsel %vm110, %v94, %v126
  %v143 = vsel %vm111, %v95, %v127
  %v144 = vsel %vm112, %v96, %v128
  %v145 = vsel %vm113, %v97, %v129
  %v146 = vpack.c.bf16 %v134, %v130
  %v147 = vpack.c.bf16 %v135, %v131
  %v148 = vpack.c.bf16 %v136, %v132
  %v149 = vpack.c.bf16 %v137, %v133
  %v150 = vpack.c.bf16 %v142, %v138
  %v151 = vpack.c.bf16 %v143, %v139
  %v152 = vpack.c.bf16 %v144, %v140
  %v153 = vpack.c.bf16 %v145, %v141
  %v154 = vld [vmem:[%s3] sm:$0xf]
  %v155 = vld [vmem:[%s3 + $0x4] sm:$0xf]
  %v156 = vld [vmem:[%s3 + $0x8] sm:$0xf]
  %v157 = vld [vmem:[%s3 + $0xc] sm:$0xf]
  %v158 = vld [vmem:[%s3 + $0x10] sm:$0xf]
  %v159 = vld [vmem:[%s3 + $0x14] sm:$0xf]
  %v160 = vld [vmem:[%s3 + $0x18] sm:$0xf]
  %v161 = vld [vmem:[%s3 + $0x1c] sm:$0xf]
  %v162 = vld [vmem:[%s3 + $0x20] sm:$0xf]
  %v163 = vld [vmem:[%s3 + $0x24] sm:$0xf]
  %v164 = vld [vmem:[%s3 + $0x28] sm:$0xf]
  %v165 = vld [vmem:[%s3 + $0x2c] sm:$0xf]
  %v166 = vld [vmem:[%s3 + $0x30] sm:$0xf]
  %v167 = vld [vmem:[%s3 + $0x34] sm:$0xf]
  %v168 = vld [vmem:[%s3 + $0x38] sm:$0xf]
  %v169 = vld [vmem:[%s3 + $0x3c] sm:$0xf]
  %v170 = vld [vmem:[%s3 + $0x40] sm:$0xf]
  %v171 = vld [vmem:[%s3 + $0x44] sm:$0xf]
  %v172 = vld [vmem:[%s3 + $0x48] sm:$0xf]
  %v173 = vld [vmem:[%s3 + $0x4c] sm:$0xf]
  %v174 = vld [vmem:[%s3 + $0x50] sm:$0xf]
  %v175 = vld [vmem:[%s3 + $0x54] sm:$0xf]
  %v176 = vld [vmem:[%s3 + $0x58] sm:$0xf]
  %v177 = vld [vmem:[%s3 + $0x5c] sm:$0xf]
  %v178 = vld [vmem:[%s3 + $0x60] sm:$0xf]
  %v179 = vld [vmem:[%s3 + $0x64] sm:$0xf]
  %v180 = vld [vmem:[%s3 + $0x68] sm:$0xf]
  %v181 = vld [vmem:[%s3 + $0x6c] sm:$0xf]
  %v182 = vld [vmem:[%s3 + $0x70] sm:$0xf]
  %v183 = vld [vmem:[%s3 + $0x74] sm:$0xf]
  %v184 = vld [vmem:[%s3 + $0x78] sm:$0xf]
  %v185 = vld [vmem:[%s3 + $0x7c] sm:$0xf]
  %v186 = vld [vmem:[%s3 + $0x80] sm:$0xf]
  %v187 = vld [vmem:[%s3 + $0x84] sm:$0xf]
  %v188 = vld [vmem:[%s3 + $0x88] sm:$0xf]
  %v189 = vld [vmem:[%s3 + $0x8c] sm:$0xf]
  %v190 = vld [vmem:[%s3 + $0x90] sm:$0xf]
  %v191 = vld [vmem:[%s3 + $0x94] sm:$0xf]
  %v192 = vld [vmem:[%s3 + $0x98] sm:$0xf]
  %v193 = vld [vmem:[%s3 + $0x9c] sm:$0xf]
  %v194 = vld [vmem:[%s3 + $0xa0] sm:$0xf]
  %v195 = vld [vmem:[%s3 + $0xa4] sm:$0xf]
  %v196 = vld [vmem:[%s3 + $0xa8] sm:$0xf]
  %v197 = vld [vmem:[%s3 + $0xac] sm:$0xf]
  %v198 = vld [vmem:[%s3 + $0xb0] sm:$0xf]
  %v199 = vld [vmem:[%s3 + $0xb4] sm:$0xf]
  %v200 = vld [vmem:[%s3 + $0xb8] sm:$0xf]
  %v201 = vld [vmem:[%s3 + $0xbc] sm:$0xf]
  %v202 = vld [vmem:[%s3 + $0xc0] sm:$0xf]
  %v203 = vld [vmem:[%s3 + $0xc4] sm:$0xf]
  %v204 = vld [vmem:[%s3 + $0xc8] sm:$0xf]
  %v205 = vld [vmem:[%s3 + $0xcc] sm:$0xf]
  %v206 = vld [vmem:[%s3 + $0xd0] sm:$0xf]
  %v207 = vld [vmem:[%s3 + $0xd4] sm:$0xf]
  %v208 = vld [vmem:[%s3 + $0xd8] sm:$0xf]
  %v209 = vld [vmem:[%s3 + $0xdc] sm:$0xf]
  %v210 = vld [vmem:[%s3 + $0xe0] sm:$0xf]
  %v211 = vld [vmem:[%s3 + $0xe4] sm:$0xf]
  %v212 = vld [vmem:[%s3 + $0xe8] sm:$0xf]
  %v213 = vld [vmem:[%s3 + $0xec] sm:$0xf]
  %v214 = vld [vmem:[%s3 + $0xf0] sm:$0xf]
  %v215 = vld [vmem:[%s3 + $0xf4] sm:$0xf]
  %v216 = vld [vmem:[%s3 + $0xf8] sm:$0xf]
  %v217 = vld [vmem:[%s3 + $0xfc] sm:$0xf]
  %v218 = vld [vmem:[%s4] sm:$0x1]
  %v220 = vperm.slane %v218, 0
  %v286 = vunpack.c.l.b16 %v154
  %v287 = vunpack.c.l.b16 %v155
  %v288 = vunpack.c.l.b16 %v156
  %v289 = vunpack.c.l.b16 %v157
  %v290 = vunpack.c.l.b16 %v158
  %v291 = vunpack.c.l.b16 %v159
  %v292 = vunpack.c.l.b16 %v160
  %v293 = vunpack.c.l.b16 %v161
  %v294 = vunpack.c.l.b16 %v162
  %v295 = vunpack.c.l.b16 %v163
  %v296 = vunpack.c.l.b16 %v164
  %v297 = vunpack.c.l.b16 %v165
  %v298 = vunpack.c.l.b16 %v166
  %v299 = vunpack.c.l.b16 %v167
  %v300 = vunpack.c.l.b16 %v168
  %v301 = vunpack.c.l.b16 %v169
  %v302 = vunpack.c.l.b16 %v170
  %v303 = vunpack.c.l.b16 %v171
  %v304 = vunpack.c.l.b16 %v172
  %v305 = vunpack.c.l.b16 %v173
  %v306 = vunpack.c.l.b16 %v174
  %v307 = vunpack.c.l.b16 %v175
  %v308 = vunpack.c.l.b16 %v176
  %v309 = vunpack.c.l.b16 %v177
  %v310 = vunpack.c.l.b16 %v178
  %v311 = vunpack.c.l.b16 %v179
  %v312 = vunpack.c.l.b16 %v180
  %v313 = vunpack.c.l.b16 %v181
  %v314 = vunpack.c.l.b16 %v182
  %v315 = vunpack.c.l.b16 %v183
  %v316 = vunpack.c.l.b16 %v184
  %v317 = vunpack.c.l.b16 %v185
  %v318 = vunpack.c.l.b16 %v186
  %v319 = vunpack.c.l.b16 %v187
  %v320 = vunpack.c.l.b16 %v188
  %v321 = vunpack.c.l.b16 %v189
  %v322 = vunpack.c.l.b16 %v190
  %v323 = vunpack.c.l.b16 %v191
  %v324 = vunpack.c.l.b16 %v192
  %v325 = vunpack.c.l.b16 %v193
  %v326 = vunpack.c.l.b16 %v194
  %v327 = vunpack.c.l.b16 %v195
  %v328 = vunpack.c.l.b16 %v196
  %v329 = vunpack.c.l.b16 %v197
  %v330 = vunpack.c.l.b16 %v198
  %v331 = vunpack.c.l.b16 %v199
  %v332 = vunpack.c.l.b16 %v200
  %v333 = vunpack.c.l.b16 %v201
  %v334 = vunpack.c.l.b16 %v202
  %v335 = vunpack.c.l.b16 %v203
  %v336 = vunpack.c.l.b16 %v204
  %v337 = vunpack.c.l.b16 %v205
  %v338 = vunpack.c.l.b16 %v206
  %v339 = vunpack.c.l.b16 %v207
  %v340 = vunpack.c.l.b16 %v208
  %v341 = vunpack.c.l.b16 %v209
  %v342 = vunpack.c.l.b16 %v210
  %v343 = vunpack.c.l.b16 %v211
  %v344 = vunpack.c.l.b16 %v212
  %v345 = vunpack.c.l.b16 %v213
  %v346 = vunpack.c.l.b16 %v214
  %v347 = vunpack.c.l.b16 %v215
  %v348 = vunpack.c.l.b16 %v216
  %v349 = vunpack.c.l.b16 %v217
  %v350 = vpack.c.b16 %v287, %v286
  %v351 = vpack.c.b16 %v289, %v288
  %v352 = vpack.c.b16 %v291, %v290
  %v353 = vpack.c.b16 %v293, %v292
  %v354 = vpack.c.b16 %v295, %v294
  %v355 = vpack.c.b16 %v297, %v296
  %v356 = vpack.c.b16 %v299, %v298
  %v357 = vpack.c.b16 %v301, %v300
  %v358 = vpack.c.b16 %v303, %v302
  %v359 = vpack.c.b16 %v305, %v304
  %v360 = vpack.c.b16 %v307, %v306
  %v361 = vpack.c.b16 %v309, %v308
  %v362 = vpack.c.b16 %v311, %v310
  %v363 = vpack.c.b16 %v313, %v312
  %v364 = vpack.c.b16 %v315, %v314
  %v365 = vpack.c.b16 %v317, %v316
  %v366 = vpack.c.b16 %v319, %v318
  %v367 = vpack.c.b16 %v321, %v320
  %v368 = vpack.c.b16 %v323, %v322
  %v369 = vpack.c.b16 %v325, %v324
  %v370 = vpack.c.b16 %v327, %v326
  %v371 = vpack.c.b16 %v329, %v328
  %v372 = vpack.c.b16 %v331, %v330
  %v373 = vpack.c.b16 %v333, %v332
  %v374 = vpack.c.b16 %v335, %v334
  %v375 = vpack.c.b16 %v337, %v336
  %v376 = vpack.c.b16 %v339, %v338
  %v377 = vpack.c.b16 %v341, %v340
  %v378 = vpack.c.b16 %v343, %v342
  %v379 = vpack.c.b16 %v345, %v344
  %v380 = vpack.c.b16 %v347, %v346
  %v381 = vpack.c.b16 %v349, %v348
  %414 = vmatpush.bf16.msra.mxu0 %v357
  %415 = vmatpush.bf16.msra.mxu0 %v356
  %416 = vmatpush.bf16.msra.mxu0 %v355
  %417 = vmatpush.bf16.msra.mxu0 %v354
  %418 = vmatpush.bf16.msra.mxu0 %v353
  %419 = vmatpush.bf16.msra.mxu0 %v352
  %420 = vmatpush.bf16.msra.mxu0 %v351
  %421 = vmatpush.bf16.msra.mxu0 %v350
  %422 = vmatmul.bf16.gmra.mxu0 %v146
  %v423 = vpop.f32.mrf.mxu0
  %v424 = vadd.f32 %v220, %v423
  %v425 = vpop.f32.mrf.mxu0
  %v426 = vadd.f32 %v220, %v425
  %427 = vmatmul.bf16.gmra.mxu0 %v150
  %v428 = vpop.f32.mrf.mxu0
  %v429 = vadd.f32 %v220, %v428
  %v430 = vpop.f32.mrf.mxu0
  %v431 = vadd.f32 %v220, %v430
  %432 = vdwg.mxu0
  %433 = vmatpush.bf16.msra.mxu0 %v365
  %434 = vmatpush.bf16.msra.mxu0 %v364
  %435 = vmatpush.bf16.msra.mxu0 %v363
  %436 = vmatpush.bf16.msra.mxu0 %v362
  %437 = vmatpush.bf16.msra.mxu0 %v361
  %438 = vmatpush.bf16.msra.mxu0 %v360
  %439 = vmatpush.bf16.msra.mxu0 %v359
  %440 = vmatpush.bf16.msra.mxu0 %v358
  %441 = vmatmul.bf16.gmra.mxu0 %v147
  %v442 = vpop.f32.mrf.mxu0
  %v443 = vadd.f32 %v424, %v442
  %v444 = vpop.f32.mrf.mxu0
  %v445 = vadd.f32 %v426, %v444
  %446 = vmatmul.bf16.gmra.mxu0 %v151
  %v447 = vpop.f32.mrf.mxu0
  %v448 = vadd.f32 %v429, %v447
  %v449 = vpop.f32.mrf.mxu0
  %v450 = vadd.f32 %v431, %v449
  %451 = vdwg.mxu0
  %452 = vmatpush.bf16.msra.mxu0 %v373
  %453 = vmatpush.bf16.msra.mxu0 %v372
  %454 = vmatpush.bf16.msra.mxu0 %v371
  %455 = vmatpush.bf16.msra.mxu0 %v370
  %456 = vmatpush.bf16.msra.mxu0 %v369
  %457 = vmatpush.bf16.msra.mxu0 %v368
  %458 = vmatpush.bf16.msra.mxu0 %v367
  %459 = vmatpush.bf16.msra.mxu0 %v366
  %460 = vmatmul.bf16.gmra.mxu0 %v148
  %v461 = vpop.f32.mrf.mxu0
  %v462 = vadd.f32 %v443, %v461
  %v463 = vpop.f32.mrf.mxu0
  %v464 = vadd.f32 %v445, %v463
  %465 = vmatmul.bf16.gmra.mxu0 %v152
  %v466 = vpop.f32.mrf.mxu0
  %v467 = vadd.f32 %v448, %v466
  %v468 = vpop.f32.mrf.mxu0
  %v469 = vadd.f32 %v450, %v468
  %470 = vdwg.mxu0
  %471 = vmatpush.bf16.msra.mxu0 %v381
  %472 = vmatpush.bf16.msra.mxu0 %v380
  %473 = vmatpush.bf16.msra.mxu0 %v379
  %474 = vmatpush.bf16.msra.mxu0 %v378
  %475 = vmatpush.bf16.msra.mxu0 %v377
  %476 = vmatpush.bf16.msra.mxu0 %v376
  %477 = vmatpush.bf16.msra.mxu0 %v375
  %478 = vmatpush.bf16.msra.mxu0 %v374
  %479 = vmatmul.bf16.gmra.mxu0 %v149
  %v480 = vpop.f32.mrf.mxu0
  %v481 = vadd.f32 %v462, %v480
  %v482 = vpop.f32.mrf.mxu0
  %v483 = vadd.f32 %v464, %v482
  %484 = vmatmul.bf16.gmra.mxu0 %v153
  %v485 = vpop.f32.mrf.mxu0
  %v486 = vadd.f32 %v467, %v485
  %v487 = vpop.f32.mrf.mxu0
  %v488 = vadd.f32 %v469, %v487
  %489 = vdwg.mxu0
  %v490 = vadd.f32 %v481, %v483
  %v491 = vadd.f32 %v490, %v486
  %v492 = vadd.f32 %v491, %v488
  %v493 = vrot.slane %v492, 4
  %v494 = vadd.f32 %v492, %v493
  %v495 = vrot.slane %v494, 2
  %v496 = vadd.f32 %v494, %v495
  %v497 = vrot.slane %v496, 1
  %v498 = vadd.f32 %v496, %v497
  %v499 = vmul.f32 %v481, %v481
  %v500 = vmul.f32 %v483, %v483
  %v501 = vmul.f32 %v486, %v486
  %v502 = vmul.f32 %v488, %v488
  %v503 = vadd.f32 %v499, %v500
  %v504 = vadd.f32 %v503, %v501
  %v505 = vadd.f32 %v504, %v502
  %v506 = vrot.slane %v505, 4
  %v507 = vadd.f32 %v505, %v506
  %v508 = vrot.slane %v507, 2
  %v509 = vadd.f32 %v507, %v508
  %v510 = vrot.slane %v509, 1
  %v511 = vadd.f32 %v509, %v510
  %vm512 = vcmask 1040384
  %v513 = vsel %vm512, %v498, %v511
  %vm514 = vcmask 1041408
  %v515 = vsel %vm514, %v513, 0.0
  %516 = vst [vmem:[%s6] sm:$0xff] %v515
  %v517 = vpack.c.bf16 %v481, %v481
  %v518 = vpack.c.bf16 %v483, %v483
  %v519 = vpack.c.bf16 %v486, %v486
  %v520 = vpack.c.bf16 %v488, %v488
  %521 = vst [vmem:[%s5] sm:$0xf] %v517
  %522 = vst [vmem:[%s5 + $0x4] sm:$0xf] %v518
  %523 = vst [vmem:[%s5 + $0x8] sm:$0xf] %v519
  %524 = vst [vmem:[%s5 + $0xc] sm:$0xf] %v520
  // Predicated region
  $region22: #{discriminator_forward.7} parent=0 // pred_check
    _
  $region23: #{discriminator_forward.7} parent=0 // pred_check_branch
    %526 = sbr.rel (0) target = $region25
  $region24: #{discriminator_forward.7} parent=0 // pred_region
    _
  $region25: #{discriminator_forward.7} parent=0 // pred_fallthru
    _
  // Predicated region
  $region26: #{discriminator_forward.7} parent=0 // pred_check
    _
  $region27: #{discriminator_forward.7} parent=0 // pred_check_branch
    %528 = sbr.rel (0) target = $region29
  $region28: #{discriminator_forward.7} parent=0 // pred_region
    _
  $region29: #{discriminator_forward.7} parent=0 // pred_fallthru
    _
  // Predicated region
  $region30: #{discriminator_forward.7} parent=0 // pred_check
    _
  $region31: #{discriminator_forward.7} parent=0 // pred_check_branch
    %530 = sbr.rel (0) target = $region33
  $region32: #{discriminator_forward.7} parent=0 // pred_region
    _
  $region33: #{discriminator_forward.7} parent=0 // pred_fallthru
    _
  // Predicated region
  $region34: #{discriminator_forward.7} parent=0 // pred_check
    _
  $region35: #{discriminator_forward.7} parent=0 // pred_check_branch
    %532 = sbr.rel (0) target = $region37
  $region36: #{discriminator_forward.7} parent=0 // pred_region
    _
  $region37: #{discriminator_forward.7} parent=0 // pred_fallthru
    _

</llo_original>
